<compile_context>
chip_gen: v7x
topology: tpu7x:2x2x1
jax: 0.10.0
libtpu: 0.0.40
codegen_flags: <defaults>
</compile_context>

<pallas_src>
import numpy as np

import jax
import jax.numpy as jnp
from jax.experimental import pallas as pl
from jax.experimental.pallas import tpu as pltpu


# conv hyper-parameters shared by every (transposed) conv in SimpleVAE
_K = 4          # kernel size
_STRIDE = 2
_PAD = 1
_KK = _K * _K   # 16 spatial taps


# --------------------------------------------------------------------------- #
# init-time constant construction (numpy)
# --------------------------------------------------------------------------- #
def _gather_wide(h_in, w_in, h_out, w_out):
    """Qwide[hi*w_in+wi, o*S_out + ho*w_out+wo] = 1 iff hi=2ho+ki-1, wi=2wo+kj-1 (o=ki*K+kj)."""
    s_in, s_out = h_in * w_in, h_out * w_out
    q = np.zeros((s_in, _KK * s_out), np.float32)
    for ki in range(_K):
        for kj in range(_K):
            o = ki * _K + kj
            for ho in range(h_out):
                for wo in range(w_out):
                    hi = _STRIDE * ho + ki - _PAD
                    wi = _STRIDE * wo + kj - _PAD
                    if 0 <= hi < h_in and 0 <= wi < w_in:
                        q[hi * w_in + wi, o * s_out + ho * w_out + wo] = 1.0
    return q


def _scatter_tall(h_in, w_in, h_out, w_out):
    """Rtall[o*S_in + hi*w_in+wi, ho*w_out+wo] = 1 iff ho=2hi+ki-1, wo=2wi+kj-1."""
    s_in, s_out = h_in * w_in, h_out * w_out
    r = np.zeros((_KK * s_in, s_out), np.float32)
    for ki in range(_K):
        for kj in range(_K):
            o = ki * _K + kj
            for hi in range(h_in):
                for wi in range(w_in):
                    ho = _STRIDE * hi + ki - _PAD
                    wo = _STRIDE * wi + kj - _PAD
                    if 0 <= ho < h_out and 0 <= wo < w_out:
                        r[o * s_in + hi * w_in + wi, ho * w_out + wo] = 1.0
    return r


def _conv_mix_wide(w, scale, batch):
    """Conv2d weight (C_out, C_in, K, K) -> (B*C_out, KK*B*C_in); BN scale folded in."""
    eye = np.eye(batch, dtype=np.float32)
    blocks = []
    for ki in range(_K):
        for kj in range(_K):
            a = scale[:, None] * w[:, :, ki, kj]            # (C_out, C_in)
            blocks.append(np.kron(eye, a))
    return np.concatenate(blocks, axis=1).astype(np.float32)


def _tconv_mix_tall(w, scale, batch):
    """ConvTranspose2d weight (C_in, C_out, K, K) -> (KK*B*C_out, B*C_in); BN scale folded in."""
    eye = np.eye(batch, dtype=np.float32)
    blocks = []
    for ki in range(_K):
        for kj in range(_K):
            a = scale[:, None] * w[:, :, ki, kj].T          # (C_out, C_in)
            blocks.append(np.kron(eye, a))
    return np.concatenate(blocks, axis=0).astype(np.float32)


def _bn_params(n):
    gamma = 1.0 + 0.01 * np.arange(n, dtype=np.float32)
    beta = 0.01 * np.arange(n, dtype=np.float32)
    mean = np.zeros((n,), np.float32)
    var = np.ones((n,), np.float32)
    return gamma, beta, mean, var


def _fold_bn(bias, gamma, beta, mean, var, eps=1e-5):
    scale = gamma / np.sqrt(var + eps)
    shift = (bias - mean) * scale + beta
    return scale.astype(np.float32), shift.astype(np.float32)


def init_params(key, batch_size=2):
    """Builds raw (PyTorch-layout) params and the folded matrices the fused kernel consumes.

    The kernel params are specialised to `batch_size` (channel-mixing matrices are
    block-diagonal over the batch)."""
    ks = jax.random.split(key, 18)
    rnd_w = lambda k, shape: np.asarray(0.05 * jax.random.normal(k, shape, jnp.float32))
    rnd_b = lambda k, n: np.asarray(0.01 * jax.random.normal(k, (n,), jnp.float32))
    B = batch_size

    raw = {}
    # encoder convs (Conv2D_BN_ReLU): 1->8 and 8->16, k=4, s=2, p=1
    raw["conv1_w"] = rnd_w(ks[0], (8, 1, 4, 4))
    raw["conv1_ss"] = _fold_bn(rnd_b(ks[1], 8), *_bn_params(8))
    raw["conv2_w"] = rnd_w(ks[2], (16, 8, 4, 4))
    raw["conv2_ss"] = _fold_bn(rnd_b(ks[3], 16), *_bn_params(16))
    # FC_BN_ReLU: 256 -> 64 -> 32 (weights stored [in, out])
    raw["fc1_w"] = rnd_w(ks[4], (256, 64))
    raw["fc1_ss"] = _fold_bn(rnd_b(ks[5], 64), *_bn_params(64))
    raw["fc2_w"] = rnd_w(ks[6], (64, 32))
    raw["fc2_ss"] = _fold_bn(rnd_b(ks[7], 32), *_bn_params(32))
    # mean / stddev heads: Linear(32 -> 16, bias=False)
    raw["mean_w"] = rnd_w(ks[8], (32, 16))
    raw["std_w"] = rnd_w(ks[9], (32, 16))
    # generator FCs: 16 -> 64 -> 256 (= 16*4*4)
    raw["gfc1_w"] = rnd_w(ks[10], (16, 64))
    raw["gfc1_ss"] = _fold_bn(rnd_b(ks[11], 64), *_bn_params(64))
    raw["gfc2_w"] = rnd_w(ks[12], (64, 256))
    raw["gfc2_ss"] = _fold_bn(rnd_b(ks[13], 256), *_bn_params(256))
    # gen_conv1: ConvTranspose2d(16, 8, 4, s=2, p=1) + BN + ReLU
    raw["gen_conv1_w"] = rnd_w(ks[14], (16, 8, 4, 4))
    raw["gen_conv1_ss"] = _fold_bn(rnd_b(ks[15], 8), *_bn_params(8))
    # gen_conv2: ConvTranspose2d(8, 1, 4, s=2, p=1) with bias, then Sigmoid
    raw["gen_conv2_w"] = rnd_w(ks[16], (8, 1, 4, 4))
    raw["gen_conv2_b"] = rnd_b(ks[17], 1)

    # ---- fold everything into the matrices the fused kernel consumes ----
    p = {}
    s1, sh1 = raw["conv1_ss"]
    p["c1_qw"] = jnp.asarray(_gather_wide(16, 16, 8, 8))                     # (256, 1024)
    p["c1_bd"] = jnp.asarray(_conv_mix_wide(raw["conv1_w"], s1, B))          # (B*8, 16*B)
    p["c1_sh"] = jnp.asarray(np.tile(sh1, B).reshape(B * 8, 1))

    s2, sh2 = raw["conv2_ss"]
    p["c2_qw"] = jnp.asarray(_gather_wide(8, 8, 4, 4))                       # (64, 256)
    p["c2_bd"] = jnp.asarray(_conv_mix_wide(raw["conv2_w"], s2, B))          # (B*16, 16*B*8)
    p["c2_sh"] = jnp.asarray(np.tile(sh2, B).reshape(B * 16, 1))

    sf1, shf1 = raw["fc1_ss"]
    p["fc1_w"] = jnp.asarray(raw["fc1_w"] * sf1[None, :])
    p["fc1_b"] = jnp.asarray(shf1.reshape(1, -1))
    sf2, shf2 = raw["fc2_ss"]
    p["fc2_w"] = jnp.asarray(raw["fc2_w"] * sf2[None, :])
    p["fc2_b"] = jnp.asarray(shf2.reshape(1, -1))

    p["heads_w"] = jnp.asarray(np.concatenate([raw["mean_w"], raw["std_w"]], axis=1))  # (32, 32)

    sg1, shg1 = raw["gfc1_ss"]
    p["gfc1_w"] = jnp.asarray(raw["gfc1_w"] * sg1[None, :])
    p["gfc1_b"] = jnp.asarray(shg1.reshape(1, -1))
    sg2, shg2 = raw["gfc2_ss"]
    p["gfc2_w"] = jnp.asarray(raw["gfc2_w"] * sg2[None, :])
    p["gfc2_b"] = jnp.asarray(shg2.reshape(1, -1))

    st1, sht1 = raw["gen_conv1_ss"]
    p["g1_rt"] = jnp.asarray(_scatter_tall(4, 4, 8, 8))                      # (256, 64)
    p["g1_bd"] = jnp.asarray(_tconv_mix_tall(raw["gen_conv1_w"], st1, B))    # (16*B*8, B*16)
    p["g1_sh"] = jnp.asarray(np.tile(sht1, B).reshape(B * 8, 1))

    p["g2_rt"] = jnp.asarray(_scatter_tall(8, 8, 16, 16))                    # (1024, 256)
    p["g2_bd"] = jnp.asarray(_tconv_mix_tall(raw["gen_conv2_w"],
                                             np.ones((1,), np.float32), B))  # (16*B, B*8)
    p["g2_sh"] = jnp.asarray(np.tile(raw["gen_conv2_b"], B).reshape(B, 1))

    return p, raw


_PARAM_ORDER = ("c1_qw", "c1_bd", "c1_sh",
                "c2_qw", "c2_bd", "c2_sh",
                "fc1_w", "fc1_b", "fc2_w", "fc2_b", "heads_w",
                "gfc1_w", "gfc1_b", "gfc2_w", "gfc2_b",
                "g1_rt", "g1_bd", "g1_sh",
                "g2_rt", "g2_bd", "g2_sh")


# --------------------------------------------------------------------------- #
# the single fused kernel
# --------------------------------------------------------------------------- #
def _simple_vae_kernel(x_ref,
                       c1_qw, c1_bd, c1_sh,
                       c2_qw, c2_bd, c2_sh,
                       fc1_w, fc1_b, fc2_w, fc2_b, heads_w,
                       gfc1_w, gfc1_b, gfc2_w, gfc2_b,
                       g1_rt, g1_bd, g1_sh,
                       g2_rt, g2_bd, g2_sh,
                       mu_ref, sigma_ref, out_ref):
    f32 = jnp.float32
    batch = x_ref.shape[0]

    def conv(act, qw_ref, bd_ref, sh_ref):
        # stride-2 / pad-1 / 4x4 conv + folded-BN shift + ReLU on (B*C_in, H*W).
        s_out = qw_ref.shape[1] // _KK
        gw = jnp.dot(act, qw_ref[...], preferred_element_type=f32)          # (B*C_in, KK*S_out)
        g = jnp.concatenate(
            [gw[:, o * s_out:(o + 1) * s_out] for o in range(_KK)], axis=0)  # (KK*B*C_in, S_out)
        y = jnp.dot(bd_ref[...], g, preferred_element_type=f32) + sh_ref[...]
        return jnp.maximum(y, 0.0)

    def tconv(act, rt_ref, bd_ref, sh_ref, relu):
        # stride-2 / pad-1 / 4x4 transposed conv (+ folded-BN shift) on (B*C_in, H*W).
        h = jnp.dot(bd_ref[...], act, preferred_element_type=f32)           # (KK*B*C_out, S_in)
        bc_out = h.shape[0] // _KK
        hw = jnp.concatenate(
            [h[o * bc_out:(o + 1) * bc_out, :] for o in range(_KK)], axis=1)  # (B*C_out, KK*S_in)
        y = jnp.dot(hw, rt_ref[...], preferred_element_type=f32) + sh_ref[...]
        return jnp.maximum(y, 0.0) if relu else y

    def fc(v, w_ref, b_ref, relu):
        y = jnp.dot(v, w_ref[...], preferred_element_type=f32)
        if b_ref is not None:
            y = y + b_ref[...]
        return jnp.maximum(y, 0.0) if relu else y

    # ------------------------------ encoder ------------------------------ #
    x = x_ref[...]                                   # (B, 256)   C_in = 1
    h1 = conv(x, c1_qw, c1_bd, c1_sh)                # (B*8,  64)  8x8
    h2 = conv(h1, c2_qw, c2_bd, c2_sh)               # (B*16, 16)  4x4

    # flatten (B*16, 16) -> (B, 256), matching torch .view(B, -1) on NCHW
    c_out2 = h2.shape[0] // batch
    s2 = h2.shape[1]
    feats = jnp.concatenate(
        [jnp.concatenate([h2[b * c_out2 + c: b * c_out2 + c + 1, :]
                          for c in range(c_out2)], axis=1)
         for b in range(batch)], axis=0)             # (B, 256)

    m1 = fc(feats, fc1_w, fc1_b, True)               # (B, 64)
    m2 = fc(m1, fc2_w, fc2_b, True)                  # (B, 32)
    heads = fc(m2, heads_w, None, False)             # (B, 32) = [mean | log_stddev]
    n_lat = heads.shape[1] // 2
    mu = heads[:, :n_lat]
    sigma = heads[:, n_lat:]
    mu_ref[...] = mu
    sigma_ref[...] = sigma

    # reparametrization (inference mode): sample = mean
    # TODO(synk): training-mode sampling (mean + log_stddev * N(0,1)) not implemented.
    sample = mu

    # ------------------------------ decoder ------------------------------ #
    d1 = fc(sample, gfc1_w, gfc1_b, True)            # (B, 64)
    d2 = fc(d1, gfc2_w, gfc2_b, True)                # (B, 256)

    # un-flatten (B, 256) -> (B*16, 16), matching torch .view(B, 16, 4, 4)
    d3 = jnp.concatenate(
        [d2[b: b + 1, c * s2:(c + 1) * s2]
         for b in range(batch) for c in range(c_out2)], axis=0)   # (B*16, 16)

    d4 = tconv(d3, g1_rt, g1_bd, g1_sh, True)        # (B*8, 64)    8x8
    d5 = tconv(d4, g2_rt, g2_bd, g2_sh, False)       # (B,   256)  16x16

    # sigmoid read-out (reciprocal off the VALU path)
    out_ref[...] = pl.reciprocal(1.0 + jnp.exp(-d5), approx=False)


def simple_vae_forward(params, x):
    """SimpleVAE forward (inference mode, quant_method=None); x is NCHW (B, 1, 16, 16)."""
    # TODO(synk): quantization path (compute_integral_part / linear_quantize /
    # log_linear_quantize) is external to the module and skipped (quant_method=None).
    batch = x.shape[0]
    assert params["c1_sh"].shape[0] == batch * 8, (
        "params were initialised for a different batch size")
    x2 = x.reshape(batch, -1).astype(jnp.float32)     # (B, H*W), C_in == 1

    vmem = pl.BlockSpec(memory_space=pltpu.MemorySpace.VMEM)
    inputs = (x2,) + tuple(params[k] for k in _PARAM_ORDER)

    mu, sigma, out_flat = pl.pallas_call(
        _simple_vae_kernel,
        out_shape=(
            jax.ShapeDtypeStruct((batch, 16), jnp.float32),
            jax.ShapeDtypeStruct((batch, 16), jnp.float32),
            jax.ShapeDtypeStruct((batch, 256), jnp.float32),
        ),
        in_specs=[vmem] * len(inputs),
        out_specs=(vmem, vmem, vmem),
    )(*inputs)

    return {"mu": mu, "sigma": sigma, "out": out_flat.reshape(batch, 1, 16, 16)}


# --------------------------------------------------------------------------- #
# plain-XLA reference (used only for numerical validation in __main__)
# --------------------------------------------------------------------------- #
def reference_forward(raw, x):
    hp = jax.lax.Precision.HIGHEST
    dn = ("NCHW", "OIHW", "NCHW")

    def conv(v, w, ss):
        scale, shift = ss
        y = jax.lax.conv_general_dilated(v, jnp.asarray(w), (2, 2), ((1, 1), (1, 1)),
                                         dimension_numbers=dn, precision=hp)
        return jnp.maximum(y * scale[None, :, None, None] + shift[None, :, None, None], 0.0)

    def tconv(v, w, scale, shift, relu):
        wt = jnp.flip(jnp.asarray(w), (2, 3)).transpose(1, 0, 2, 3)   # (C_out, C_in, k, k)
        y = jax.lax.conv_general_dilated(v, wt, (1, 1), ((2, 2), (2, 2)),
                                         lhs_dilation=(2, 2),
                                         dimension_numbers=dn, precision=hp)
        y = y * scale[None, :, None, None] + shift[None, :, None, None]
        return jnp.maximum(y, 0.0) if relu else y

    def fc(v, w, ss, relu):
        scale, shift = ss
        y = jnp.dot(v, jnp.asarray(w), precision=hp) * scale[None, :] + shift[None, :]
        return jnp.maximum(y, 0.0) if relu else y

    b = x.shape[0]
    h = conv(x, raw["conv1_w"], raw["conv1_ss"])
    h = conv(h, raw["conv2_w"], raw["conv2_ss"])
    feats = h.reshape(b, -1)
    m = fc(feats, raw["fc1_w"], raw["fc1_ss"], True)
    m = fc(m, raw["fc2_w"], raw["fc2_ss"], True)
    mu = jnp.dot(m, jnp.asarray(raw["mean_w"]), precision=hp)
    sigma = jnp.dot(m, jnp.asarray(raw["std_w"]), precision=hp)
    g = fc(mu, raw["gfc1_w"], raw["gfc1_ss"], True)          # eval-mode sample == mu
    g = fc(g, raw["gfc2_w"], raw["gfc2_ss"], True)
    g = g.reshape(b, 16, 4, 4)
    g = tconv(g, raw["gen_conv1_w"], *raw["gen_conv1_ss"], True)
    out = tconv(g, raw["gen_conv2_w"], np.ones((1,), np.float32), raw["gen_conv2_b"], False)
    return mu, sigma, jax.nn.sigmoid(out)


if __name__ == "__main__":
    key = jax.random.PRNGKey(0)
    k_param, k_x = jax.random.split(key)
    params, raw = init_params(k_param, batch_size=2)
    x = jax.random.uniform(k_x, (2, 1, 16, 16), jnp.float32)   # NCHW, like PyTorch

    fwd = jax.jit(simple_vae_forward)
    out = fwd(params, x)
    jax.block_until_ready(out)

    assert out["mu"].shape == (2, 16)
    assert out["sigma"].shape == (2, 16)
    assert out["out"].shape == (2, 1, 16, 16)
    assert bool(jnp.all((out["out"] >= 0.0) & (out["out"] <= 1.0)))

    # numerical check of the fused kernel against a plain-XLA reference
    mu_r, sigma_r, out_r = reference_forward(raw, x)
    np.testing.assert_allclose(np.asarray(out["mu"]), np.asarray(mu_r), rtol=2e-3, atol=2e-3)
    np.testing.assert_allclose(np.asarray(out["sigma"]), np.asarray(sigma_r), rtol=2e-3, atol=2e-3)
    np.testing.assert_allclose(np.asarray(out["out"]), np.asarray(out_r), rtol=2e-3, atol=2e-3)

    print("KERNEL_OK")
</pallas_src>

<mosaic_0001>
module attributes {stable_mosaic.version = 11 : i64} {
  func.func @_simple_vae_kernel(%arg0: memref<2x256xf32, #tpu.memory_space<vmem>>, %arg1: memref<256x1024xf32, #tpu.memory_space<vmem>>, %arg2: memref<16x32xf32, #tpu.memory_space<vmem>>, %arg3: memref<16x1xf32, #tpu.memory_space<vmem>>, %arg4: memref<64x256xf32, #tpu.memory_space<vmem>>, %arg5: memref<32x256xf32, #tpu.memory_space<vmem>>, %arg6: memref<32x1xf32, #tpu.memory_space<vmem>>, %arg7: memref<256x64xf32, #tpu.memory_space<vmem>>, %arg8: memref<1x64xf32, #tpu.memory_space<vmem>>, %arg9: memref<64x32xf32, #tpu.memory_space<vmem>>, %arg10: memref<1x32xf32, #tpu.memory_space<vmem>>, %arg11: memref<32x32xf32, #tpu.memory_space<vmem>>, %arg12: memref<16x64xf32, #tpu.memory_space<vmem>>, %arg13: memref<1x64xf32, #tpu.memory_space<vmem>>, %arg14: memref<64x256xf32, #tpu.memory_space<vmem>>, %arg15: memref<1x256xf32, #tpu.memory_space<vmem>>, %arg16: memref<256x64xf32, #tpu.memory_space<vmem>>, %arg17: memref<256x32xf32, #tpu.memory_space<vmem>>, %arg18: memref<16x1xf32, #tpu.memory_space<vmem>>, %arg19: memref<1024x256xf32, #tpu.memory_space<vmem>>, %arg20: memref<32x16xf32, #tpu.memory_space<vmem>>, %arg21: memref<2x1xf32, #tpu.memory_space<vmem>>, %arg22: memref<2x16xf32, #tpu.memory_space<vmem>>, %arg23: memref<2x16xf32, #tpu.memory_space<vmem>>, %arg24: memref<2x256xf32, #tpu.memory_space<vmem>>) attributes {dimension_semantics = [], scalar_prefetch = 0 : i64, scratch_operands = 0 : i64, tpu.core_type = #tpu.core_type<tc>} {
    %c0 = arith.constant 0 : index
    %c0_0 = arith.constant 0 : index
    %0 = vector.load %arg0[%c0, %c0_0] : memref<2x256xf32, #tpu.memory_space<vmem>>, vector<2x256xf32>
    %c0_1 = arith.constant 0 : index
    %c0_2 = arith.constant 0 : index
    %1 = vector.load %arg1[%c0_1, %c0_2] : memref<256x1024xf32, #tpu.memory_space<vmem>>, vector<256x1024xf32>
    %cst = arith.constant dense<0.000000e+00> : vector<2x1024xf32>
    %2 = tpu.matmul %0, %1, %cst {dimension_numbers = #tpu.dot_dimension_numbers<[1], [0], [0], [1], [0, 0, 1, 1], [], []>} : vector<2x256xf32>, vector<256x1024xf32>, vector<2x1024xf32> -> vector<2x1024xf32>
    %3 = vector.extract_strided_slice %2 {offsets = [0, 0], sizes = [2, 64], strides = [1, 1]} : vector<2x1024xf32> to vector<2x64xf32>
    %4 = vector.extract_strided_slice %2 {offsets = [0, 64], sizes = [2, 64], strides = [1, 1]} : vector<2x1024xf32> to vector<2x64xf32>
    %5 = vector.extract_strided_slice %2 {offsets = [0, 128], sizes = [2, 64], strides = [1, 1]} : vector<2x1024xf32> to vector<2x64xf32>
    %6 = vector.extract_strided_slice %2 {offsets = [0, 192], sizes = [2, 64], strides = [1, 1]} : vector<2x1024xf32> to vector<2x64xf32>
    %7 = vector.extract_strided_slice %2 {offsets = [0, 256], sizes = [2, 64], strides = [1, 1]} : vector<2x1024xf32> to vector<2x64xf32>
    %8 = vector.extract_strided_slice %2 {offsets = [0, 320], sizes = [2, 64], strides = [1, 1]} : vector<2x1024xf32> to vector<2x64xf32>
    %9 = vector.extract_strided_slice %2 {offsets = [0, 384], sizes = [2, 64], strides = [1, 1]} : vector<2x1024xf32> to vector<2x64xf32>
    %10 = vector.extract_strided_slice %2 {offsets = [0, 448], sizes = [2, 64], strides = [1, 1]} : vector<2x1024xf32> to vector<2x64xf32>
    %11 = vector.extract_strided_slice %2 {offsets = [0, 512], sizes = [2, 64], strides = [1, 1]} : vector<2x1024xf32> to vector<2x64xf32>
    %12 = vector.extract_strided_slice %2 {offsets = [0, 576], sizes = [2, 64], strides = [1, 1]} : vector<2x1024xf32> to vector<2x64xf32>
    %13 = vector.extract_strided_slice %2 {offsets = [0, 640], sizes = [2, 64], strides = [1, 1]} : vector<2x1024xf32> to vector<2x64xf32>
    %14 = vector.extract_strided_slice %2 {offsets = [0, 704], sizes = [2, 64], strides = [1, 1]} : vector<2x1024xf32> to vector<2x64xf32>
    %15 = vector.extract_strided_slice %2 {offsets = [0, 768], sizes = [2, 64], strides = [1, 1]} : vector<2x1024xf32> to vector<2x64xf32>
    %16 = vector.extract_strided_slice %2 {offsets = [0, 832], sizes = [2, 64], strides = [1, 1]} : vector<2x1024xf32> to vector<2x64xf32>
    %17 = vector.extract_strided_slice %2 {offsets = [0, 896], sizes = [2, 64], strides = [1, 1]} : vector<2x1024xf32> to vector<2x64xf32>
    %18 = vector.extract_strided_slice %2 {offsets = [0, 960], sizes = [2, 64], strides = [1, 1]} : vector<2x1024xf32> to vector<2x64xf32>
    %19 = tpu.concatenate %3, %4, %5, %6, %7, %8, %9, %10, %11, %12, %13, %14, %15, %16, %17, %18 in 0 : vector<2x64xf32>, vector<2x64xf32>, vector<2x64xf32>, vector<2x64xf32>, vector<2x64xf32>, vector<2x64xf32>, vector<2x64xf32>, vector<2x64xf32>, vector<2x64xf32>, vector<2x64xf32>, vector<2x64xf32>, vector<2x64xf32>, vector<2x64xf32>, vector<2x64xf32>, vector<2x64xf32>, vector<2x64xf32> -> vector<32x64xf32>
    %c0_3 = arith.constant 0 : index
    %c0_4 = arith.constant 0 : index
    %20 = vector.load %arg2[%c0_3, %c0_4] : memref<16x32xf32, #tpu.memory_space<vmem>>, vector<16x32xf32>
    %cst_5 = arith.constant dense<0.000000e+00> : vector<16x64xf32>
    %21 = tpu.matmul %20, %19, %cst_5 {dimension_numbers = #tpu.dot_dimension_numbers<[1], [0], [0], [1], [0, 0, 1, 1], [], []>} : vector<16x32xf32>, vector<32x64xf32>, vector<16x64xf32> -> vector<16x64xf32>
    %c0_6 = arith.constant 0 : index
    %c0_7 = arith.constant 0 : index
    %22 = vector.load %arg3[%c0_6, %c0_7] : memref<16x1xf32, #tpu.memory_space<vmem>>, vector<16x1xf32>
    %23 = vector.broadcast %22 : vector<16x1xf32> to vector<16x64xf32>
    %24 = arith.addf %21, %23 : vector<16x64xf32>
    %cst_8 = arith.constant 0.000000e+00 : f32
    %25 = vector.broadcast %cst_8 : f32 to vector<16x64xf32>
    %26 = arith.maximumf %24, %25 : vector<16x64xf32>
    %c0_9 = arith.constant 0 : index
    %c0_10 = arith.constant 0 : index
    %27 = vector.load %arg4[%c0_9, %c0_10] : memref<64x256xf32, #tpu.memory_space<vmem>>, vector<64x256xf32>
    %cst_11 = arith.constant dense<0.000000e+00> : vector<16x256xf32>
    %28 = tpu.matmul %26, %27, %cst_11 {dimension_numbers = #tpu.dot_dimension_numbers<[1], [0], [0], [1], [0, 0, 1, 1], [], []>} : vector<16x64xf32>, vector<64x256xf32>, vector<16x256xf32> -> vector<16x256xf32>
    %29 = vector.extract_strided_slice %28 {offsets = [0, 0], sizes = [16, 16], strides = [1, 1]} : vector<16x256xf32> to vector<16x16xf32>
    %30 = vector.extract_strided_slice %28 {offsets = [0, 16], sizes = [16, 16], strides = [1, 1]} : vector<16x256xf32> to vector<16x16xf32>
    %31 = vector.extract_strided_slice %28 {offsets = [0, 32], sizes = [16, 16], strides = [1, 1]} : vector<16x256xf32> to vector<16x16xf32>
    %32 = vector.extract_strided_slice %28 {offsets = [0, 48], sizes = [16, 16], strides = [1, 1]} : vector<16x256xf32> to vector<16x16xf32>
    %33 = vector.extract_strided_slice %28 {offsets = [0, 64], sizes = [16, 16], strides = [1, 1]} : vector<16x256xf32> to vector<16x16xf32>
    %34 = vector.extract_strided_slice %28 {offsets = [0, 80], sizes = [16, 16], strides = [1, 1]} : vector<16x256xf32> to vector<16x16xf32>
    %35 = vector.extract_strided_slice %28 {offsets = [0, 96], sizes = [16, 16], strides = [1, 1]} : vector<16x256xf32> to vector<16x16xf32>
    %36 = vector.extract_strided_slice %28 {offsets = [0, 112], sizes = [16, 16], strides = [1, 1]} : vector<16x256xf32> to vector<16x16xf32>
    %37 = vector.extract_strided_slice %28 {offsets = [0, 128], sizes = [16, 16], strides = [1, 1]} : vector<16x256xf32> to vector<16x16xf32>
    %38 = vector.extract_strided_slice %28 {offsets = [0, 144], sizes = [16, 16], strides = [1, 1]} : vector<16x256xf32> to vector<16x16xf32>
    %39 = vector.extract_strided_slice %28 {offsets = [0, 160], sizes = [16, 16], strides = [1, 1]} : vector<16x256xf32> to vector<16x16xf32>
    %40 = vector.extract_strided_slice %28 {offsets = [0, 176], sizes = [16, 16], strides = [1, 1]} : vector<16x256xf32> to vector<16x16xf32>
    %41 = vector.extract_strided_slice %28 {offsets = [0, 192], sizes = [16, 16], strides = [1, 1]} : vector<16x256xf32> to vector<16x16xf32>
    %42 = vector.extract_strided_slice %28 {offsets = [0, 208], sizes = [16, 16], strides = [1, 1]} : vector<16x256xf32> to vector<16x16xf32>
    %43 = vector.extract_strided_slice %28 {offsets = [0, 224], sizes = [16, 16], strides = [1, 1]} : vector<16x256xf32> to vector<16x16xf32>
    %44 = vector.extract_strided_slice %28 {offsets = [0, 240], sizes = [16, 16], strides = [1, 1]} : vector<16x256xf32> to vector<16x16xf32>
    %45 = tpu.concatenate %29, %30, %31, %32, %33, %34, %35, %36, %37, %38, %39, %40, %41, %42, %43, %44 in 0 : vector<16x16xf32>, vector<16x16xf32>, vector<16x16xf32>, vector<16x16xf32>, vector<16x16xf32>, vector<16x16xf32>, vector<16x16xf32>, vector<16x16xf32>, vector<16x16xf32>, vector<16x16xf32>, vector<16x16xf32>, vector<16x16xf32>, vector<16x16xf32>, vector<16x16xf32>, vector<16x16xf32>, vector<16x16xf32> -> vector<256x16xf32>
    %c0_12 = arith.constant 0 : index
    %c0_13 = arith.constant 0 : index
    %46 = vector.load %arg5[%c0_12, %c0_13] : memref<32x256xf32, #tpu.memory_space<vmem>>, vector<32x256xf32>
    %cst_14 = arith.constant dense<0.000000e+00> : vector<32x16xf32>
    %47 = tpu.matmul %46, %45, %cst_14 {dimension_numbers = #tpu.dot_dimension_numbers<[1], [0], [0], [1], [0, 0, 1, 1], [], []>} : vector<32x256xf32>, vector<256x16xf32>, vector<32x16xf32> -> vector<32x16xf32>
    %c0_15 = arith.constant 0 : index
    %c0_16 = arith.constant 0 : index
    %48 = vector.load %arg6[%c0_15, %c0_16] : memref<32x1xf32, #tpu.memory_space<vmem>>, vector<32x1xf32>
    %49 = vector.broadcast %48 : vector<32x1xf32> to vector<32x16xf32>
    %50 = arith.addf %47, %49 : vector<32x16xf32>
    %cst_17 = arith.constant 0.000000e+00 : f32
    %51 = vector.broadcast %cst_17 : f32 to vector<32x16xf32>
    %52 = arith.maximumf %50, %51 : vector<32x16xf32>
    %53 = vector.extract_strided_slice %52 {offsets = [0, 0], sizes = [1, 16], strides = [1, 1]} : vector<32x16xf32> to vector<1x16xf32>
    %54 = vector.extract_strided_slice %52 {offsets = [1, 0], sizes = [1, 16], strides = [1, 1]} : vector<32x16xf32> to vector<1x16xf32>
    %55 = vector.extract_strided_slice %52 {offsets = [2, 0], sizes = [1, 16], strides = [1, 1]} : vector<32x16xf32> to vector<1x16xf32>
    %56 = vector.extract_strided_slice %52 {offsets = [3, 0], sizes = [1, 16], strides = [1, 1]} : vector<32x16xf32> to vector<1x16xf32>
    %57 = vector.extract_strided_slice %52 {offsets = [4, 0], sizes = [1, 16], strides = [1, 1]} : vector<32x16xf32> to vector<1x16xf32>
    %58 = vector.extract_strided_slice %52 {offsets = [5, 0], sizes = [1, 16], strides = [1, 1]} : vector<32x16xf32> to vector<1x16xf32>
    %59 = vector.extract_strided_slice %52 {offsets = [6, 0], sizes = [1, 16], strides = [1, 1]} : vector<32x16xf32> to vector<1x16xf32>
    %60 = vector.extract_strided_slice %52 {offsets = [7, 0], sizes = [1, 16], strides = [1, 1]} : vector<32x16xf32> to vector<1x16xf32>
    %61 = vector.extract_strided_slice %52 {offsets = [8, 0], sizes = [1, 16], strides = [1, 1]} : vector<32x16xf32> to vector<1x16xf32>
    %62 = vector.extract_strided_slice %52 {offsets = [9, 0], sizes = [1, 16], strides = [1, 1]} : vector<32x16xf32> to vector<1x16xf32>
    %63 = vector.extract_strided_slice %52 {offsets = [10, 0], sizes = [1, 16], strides = [1, 1]} : vector<32x16xf32> to vector<1x16xf32>
    %64 = vector.extract_strided_slice %52 {offsets = [11, 0], sizes = [1, 16], strides = [1, 1]} : vector<32x16xf32> to vector<1x16xf32>
    %65 = vector.extract_strided_slice %52 {offsets = [12, 0], sizes = [1, 16], strides = [1, 1]} : vector<32x16xf32> to vector<1x16xf32>
    %66 = vector.extract_strided_slice %52 {offsets = [13, 0], sizes = [1, 16], strides = [1, 1]} : vector<32x16xf32> to vector<1x16xf32>
    %67 = vector.extract_strided_slice %52 {offsets = [14, 0], sizes = [1, 16], strides = [1, 1]} : vector<32x16xf32> to vector<1x16xf32>
    %68 = vector.extract_strided_slice %52 {offsets = [15, 0], sizes = [1, 16], strides = [1, 1]} : vector<32x16xf32> to vector<1x16xf32>
    %69 = tpu.concatenate %53, %54, %55, %56, %57, %58, %59, %60, %61, %62, %63, %64, %65, %66, %67, %68 in 1 : vector<1x16xf32>, vector<1x16xf32>, vector<1x16xf32>, vector<1x16xf32>, vector<1x16xf32>, vector<1x16xf32>, vector<1x16xf32>, vector<1x16xf32>, vector<1x16xf32>, vector<1x16xf32>, vector<1x16xf32>, vector<1x16xf32>, vector<1x16xf32>, vector<1x16xf32>, vector<1x16xf32>, vector<1x16xf32> -> vector<1x256xf32>
    %70 = vector.extract_strided_slice %52 {offsets = [16, 0], sizes = [1, 16], strides = [1, 1]} : vector<32x16xf32> to vector<1x16xf32>
    %71 = vector.extract_strided_slice %52 {offsets = [17, 0], sizes = [1, 16], strides = [1, 1]} : vector<32x16xf32> to vector<1x16xf32>
    %72 = vector.extract_strided_slice %52 {offsets = [18, 0], sizes = [1, 16], strides = [1, 1]} : vector<32x16xf32> to vector<1x16xf32>
    %73 = vector.extract_strided_slice %52 {offsets = [19, 0], sizes = [1, 16], strides = [1, 1]} : vector<32x16xf32> to vector<1x16xf32>
    %74 = vector.extract_strided_slice %52 {offsets = [20, 0], sizes = [1, 16], strides = [1, 1]} : vector<32x16xf32> to vector<1x16xf32>
    %75 = vector.extract_strided_slice %52 {offsets = [21, 0], sizes = [1, 16], strides = [1, 1]} : vector<32x16xf32> to vector<1x16xf32>
    %76 = vector.extract_strided_slice %52 {offsets = [22, 0], sizes = [1, 16], strides = [1, 1]} : vector<32x16xf32> to vector<1x16xf32>
    %77 = vector.extract_strided_slice %52 {offsets = [23, 0], sizes = [1, 16], strides = [1, 1]} : vector<32x16xf32> to vector<1x16xf32>
    %78 = vector.extract_strided_slice %52 {offsets = [24, 0], sizes = [1, 16], strides = [1, 1]} : vector<32x16xf32> to vector<1x16xf32>
    %79 = vector.extract_strided_slice %52 {offsets = [25, 0], sizes = [1, 16], strides = [1, 1]} : vector<32x16xf32> to vector<1x16xf32>
    %80 = vector.extract_strided_slice %52 {offsets = [26, 0], sizes = [1, 16], strides = [1, 1]} : vector<32x16xf32> to vector<1x16xf32>
    %81 = vector.extract_strided_slice %52 {offsets = [27, 0], sizes = [1, 16], strides = [1, 1]} : vector<32x16xf32> to vector<1x16xf32>
    %82 = vector.extract_strided_slice %52 {offsets = [28, 0], sizes = [1, 16], strides = [1, 1]} : vector<32x16xf32> to vector<1x16xf32>
    %83 = vector.extract_strided_slice %52 {offsets = [29, 0], sizes = [1, 16], strides = [1, 1]} : vector<32x16xf32> to vector<1x16xf32>
    %84 = vector.extract_strided_slice %52 {offsets = [30, 0], sizes = [1, 16], strides = [1, 1]} : vector<32x16xf32> to vector<1x16xf32>
    %85 = vector.extract_strided_slice %52 {offsets = [31, 0], sizes = [1, 16], strides = [1, 1]} : vector<32x16xf32> to vector<1x16xf32>
    %86 = tpu.concatenate %70, %71, %72, %73, %74, %75, %76, %77, %78, %79, %80, %81, %82, %83, %84, %85 in 1 : vector<1x16xf32>, vector<1x16xf32>, vector<1x16xf32>, vector<1x16xf32>, vector<1x16xf32>, vector<1x16xf32>, vector<1x16xf32>, vector<1x16xf32>, vector<1x16xf32>, vector<1x16xf32>, vector<1x16xf32>, vector<1x16xf32>, vector<1x16xf32>, vector<1x16xf32>, vector<1x16xf32>, vector<1x16xf32> -> vector<1x256xf32>
    %87 = tpu.concatenate %69, %86 in 0 : vector<1x256xf32>, vector<1x256xf32> -> vector<2x256xf32>
    %c0_18 = arith.constant 0 : index
    %c0_19 = arith.constant 0 : index
    %88 = vector.load %arg7[%c0_18, %c0_19] : memref<256x64xf32, #tpu.memory_space<vmem>>, vector<256x64xf32>
    %cst_20 = arith.constant dense<0.000000e+00> : vector<2x64xf32>
    %89 = tpu.matmul %87, %88, %cst_20 {dimension_numbers = #tpu.dot_dimension_numbers<[1], [0], [0], [1], [0, 0, 1, 1], [], []>} : vector<2x256xf32>, vector<256x64xf32>, vector<2x64xf32> -> vector<2x64xf32>
    %c0_21 = arith.constant 0 : index
    %c0_22 = arith.constant 0 : index
    %90 = vector.load %arg8[%c0_21, %c0_22] : memref<1x64xf32, #tpu.memory_space<vmem>>, vector<1x64xf32>
    %91 = vector.broadcast %90 : vector<1x64xf32> to vector<2x64xf32>
    %92 = arith.addf %89, %91 : vector<2x64xf32>
    %cst_23 = arith.constant 0.000000e+00 : f32
    %93 = vector.broadcast %cst_23 : f32 to vector<2x64xf32>
    %94 = arith.maximumf %92, %93 : vector<2x64xf32>
    %c0_24 = arith.constant 0 : index
    %c0_25 = arith.constant 0 : index
    %95 = vector.load %arg9[%c0_24, %c0_25] : memref<64x32xf32, #tpu.memory_space<vmem>>, vector<64x32xf32>
    %cst_26 = arith.constant dense<0.000000e+00> : vector<2x32xf32>
    %96 = tpu.matmul %94, %95, %cst_26 {dimension_numbers = #tpu.dot_dimension_numbers<[1], [0], [0], [1], [0, 0, 1, 1], [], []>} : vector<2x64xf32>, vector<64x32xf32>, vector<2x32xf32> -> vector<2x32xf32>
    %c0_27 = arith.constant 0 : index
    %c0_28 = arith.constant 0 : index
    %97 = vector.load %arg10[%c0_27, %c0_28] : memref<1x32xf32, #tpu.memory_space<vmem>>, vector<1x32xf32>
    %98 = vector.broadcast %97 : vector<1x32xf32> to vector<2x32xf32>
    %99 = arith.addf %96, %98 : vector<2x32xf32>
    %cst_29 = arith.constant 0.000000e+00 : f32
    %100 = vector.broadcast %cst_29 : f32 to vector<2x32xf32>
    %101 = arith.maximumf %99, %100 : vector<2x32xf32>
    %c0_30 = arith.constant 0 : index
    %c0_31 = arith.constant 0 : index
    %102 = vector.load %arg11[%c0_30, %c0_31] : memref<32x32xf32, #tpu.memory_space<vmem>>, vector<32x32xf32>
    %cst_32 = arith.constant dense<0.000000e+00> : vector<2x32xf32>
    %103 = tpu.matmul %101, %102, %cst_32 {dimension_numbers = #tpu.dot_dimension_numbers<[1], [0], [0], [1], [0, 0, 1, 1], [], []>} : vector<2x32xf32>, vector<32x32xf32>, vector<2x32xf32> -> vector<2x32xf32>
    %104 = vector.extract_strided_slice %103 {offsets = [0, 0], sizes = [2, 16], strides = [1, 1]} : vector<2x32xf32> to vector<2x16xf32>
    %105 = vector.extract_strided_slice %103 {offsets = [0, 16], sizes = [2, 16], strides = [1, 1]} : vector<2x32xf32> to vector<2x16xf32>
    %c0_33 = arith.constant 0 : index
    %c0_34 = arith.constant 0 : index
    %106 = vector.load %arg22[%c0_33, %c0_34] : memref<2x16xf32, #tpu.memory_space<vmem>>, vector<2x16xf32>
    tpu.vector_store %arg22[%c0_33, %c0_34], %104 {strides = array<i32>} : memref<2x16xf32, #tpu.memory_space<vmem>>, vector<2x16xf32>,
    %c0_35 = arith.constant 0 : index
    %c0_36 = arith.constant 0 : index
    %107 = vector.load %arg23[%c0_35, %c0_36] : memref<2x16xf32, #tpu.memory_space<vmem>>, vector<2x16xf32>
    tpu.vector_store %arg23[%c0_35, %c0_36], %105 {strides = array<i32>} : memref<2x16xf32, #tpu.memory_space<vmem>>, vector<2x16xf32>,
    %c0_37 = arith.constant 0 : index
    %c0_38 = arith.constant 0 : index
    %108 = vector.load %arg12[%c0_37, %c0_38] : memref<16x64xf32, #tpu.memory_space<vmem>>, vector<16x64xf32>
    %cst_39 = arith.constant dense<0.000000e+00> : vector<2x64xf32>
    %109 = tpu.matmul %104, %108, %cst_39 {dimension_numbers = #tpu.dot_dimension_numbers<[1], [0], [0], [1], [0, 0, 1, 1], [], []>} : vector<2x16xf32>, vector<16x64xf32>, vector<2x64xf32> -> vector<2x64xf32>
    %c0_40 = arith.constant 0 : index
    %c0_41 = arith.constant 0 : index
    %110 = vector.load %arg13[%c0_40, %c0_41] : memref<1x64xf32, #tpu.memory_space<vmem>>, vector<1x64xf32>
    %111 = vector.broadcast %110 : vector<1x64xf32> to vector<2x64xf32>
    %112 = arith.addf %109, %111 : vector<2x64xf32>
    %cst_42 = arith.constant 0.000000e+00 : f32
    %113 = vector.broadcast %cst_42 : f32 to vector<2x64xf32>
    %114 = arith.maximumf %112, %113 : vector<2x64xf32>
    %c0_43 = arith.constant 0 : index
    %c0_44 = arith.constant 0 : index
    %115 = vector.load %arg14[%c0_43, %c0_44] : memref<64x256xf32, #tpu.memory_space<vmem>>, vector<64x256xf32>
    %cst_45 = arith.constant dense<0.000000e+00> : vector<2x256xf32>
    %116 = tpu.matmul %114, %115, %cst_45 {dimension_numbers = #tpu.dot_dimension_numbers<[1], [0], [0], [1], [0, 0, 1, 1], [], []>} : vector<2x64xf32>, vector<64x256xf32>, vector<2x256xf32> -> vector<2x256xf32>
    %c0_46 = arith.constant 0 : index
    %c0_47 = arith.constant 0 : index
    %117 = vector.load %arg15[%c0_46, %c0_47] : memref<1x256xf32, #tpu.memory_space<vmem>>, vector<1x256xf32>
    %118 = vector.broadcast %117 : vector<1x256xf32> to vector<2x256xf32>
    %119 = arith.addf %116, %118 : vector<2x256xf32>
    %cst_48 = arith.constant 0.000000e+00 : f32
    %120 = vector.broadcast %cst_48 : f32 to vector<2x256xf32>
    %121 = arith.maximumf %119, %120 : vector<2x256xf32>
    %122 = vector.extract_strided_slice %121 {offsets = [0, 0], sizes = [1, 16], strides = [1, 1]} : vector<2x256xf32> to vector<1x16xf32>
    %123 = vector.extract_strided_slice %121 {offsets = [0, 16], sizes = [1, 16], strides = [1, 1]} : vector<2x256xf32> to vector<1x16xf32>
    %124 = vector.extract_strided_slice %121 {offsets = [0, 32], sizes = [1, 16], strides = [1, 1]} : vector<2x256xf32> to vector<1x16xf32>
    %125 = vector.extract_strided_slice %121 {offsets = [0, 48], sizes = [1, 16], strides = [1, 1]} : vector<2x256xf32> to vector<1x16xf32>
    %126 = vector.extract_strided_slice %121 {offsets = [0, 64], sizes = [1, 16], strides = [1, 1]} : vector<2x256xf32> to vector<1x16xf32>
    %127 = vector.extract_strided_slice %121 {offsets = [0, 80], sizes = [1, 16], strides = [1, 1]} : vector<2x256xf32> to vector<1x16xf32>
    %128 = vector.extract_strided_slice %121 {offsets = [0, 96], sizes = [1, 16], strides = [1, 1]} : vector<2x256xf32> to vector<1x16xf32>
    %129 = vector.extract_strided_slice %121 {offsets = [0, 112], sizes = [1, 16], strides = [1, 1]} : vector<2x256xf32> to vector<1x16xf32>
    %130 = vector.extract_strided_slice %121 {offsets = [0, 128], sizes = [1, 16], strides = [1, 1]} : vector<2x256xf32> to vector<1x16xf32>
    %131 = vector.extract_strided_slice %121 {offsets = [0, 144], sizes = [1, 16], strides = [1, 1]} : vector<2x256xf32> to vector<1x16xf32>
    %132 = vector.extract_strided_slice %121 {offsets = [0, 160], sizes = [1, 16], strides = [1, 1]} : vector<2x256xf32> to vector<1x16xf32>
    %133 = vector.extract_strided_slice %121 {offsets = [0, 176], sizes = [1, 16], strides = [1, 1]} : vector<2x256xf32> to vector<1x16xf32>
    %134 = vector.extract_strided_slice %121 {offsets = [0, 192], sizes = [1, 16], strides = [1, 1]} : vector<2x256xf32> to vector<1x16xf32>
    %135 = vector.extract_strided_slice %121 {offsets = [0, 208], sizes = [1, 16], strides = [1, 1]} : vector<2x256xf32> to vector<1x16xf32>
    %136 = vector.extract_strided_slice %121 {offsets = [0, 224], sizes = [1, 16], strides = [1, 1]} : vector<2x256xf32> to vector<1x16xf32>
    %137 = vector.extract_strided_slice %121 {offsets = [0, 240], sizes = [1, 16], strides = [1, 1]} : vector<2x256xf32> to vector<1x16xf32>
    %138 = vector.extract_strided_slice %121 {offsets = [1, 0], sizes = [1, 16], strides = [1, 1]} : vector<2x256xf32> to vector<1x16xf32>
    %139 = vector.extract_strided_slice %121 {offsets = [1, 16], sizes = [1, 16], strides = [1, 1]} : vector<2x256xf32> to vector<1x16xf32>
    %140 = vector.extract_strided_slice %121 {offsets = [1, 32], sizes = [1, 16], strides = [1, 1]} : vector<2x256xf32> to vector<1x16xf32>
    %141 = vector.extract_strided_slice %121 {offsets = [1, 48], sizes = [1, 16], strides = [1, 1]} : vector<2x256xf32> to vector<1x16xf32>
    %142 = vector.extract_strided_slice %121 {offsets = [1, 64], sizes = [1, 16], strides = [1, 1]} : vector<2x256xf32> to vector<1x16xf32>
    %143 = vector.extract_strided_slice %121 {offsets = [1, 80], sizes = [1, 16], strides = [1, 1]} : vector<2x256xf32> to vector<1x16xf32>
    %144 = vector.extract_strided_slice %121 {offsets = [1, 96], sizes = [1, 16], strides = [1, 1]} : vector<2x256xf32> to vector<1x16xf32>
    %145 = vector.extract_strided_slice %121 {offsets = [1, 112], sizes = [1, 16], strides = [1, 1]} : vector<2x256xf32> to vector<1x16xf32>
    %146 = vector.extract_strided_slice %121 {offsets = [1, 128], sizes = [1, 16], strides = [1, 1]} : vector<2x256xf32> to vector<1x16xf32>
    %147 = vector.extract_strided_slice %121 {offsets = [1, 144], sizes = [1, 16], strides = [1, 1]} : vector<2x256xf32> to vector<1x16xf32>
    %148 = vector.extract_strided_slice %121 {offsets = [1, 160], sizes = [1, 16], strides = [1, 1]} : vector<2x256xf32> to vector<1x16xf32>
    %149 = vector.extract_strided_slice %121 {offsets = [1, 176], sizes = [1, 16], strides = [1, 1]} : vector<2x256xf32> to vector<1x16xf32>
    %150 = vector.extract_strided_slice %121 {offsets = [1, 192], sizes = [1, 16], strides = [1, 1]} : vector<2x256xf32> to vector<1x16xf32>
    %151 = vector.extract_strided_slice %121 {offsets = [1, 208], sizes = [1, 16], strides = [1, 1]} : vector<2x256xf32> to vector<1x16xf32>
    %152 = vector.extract_strided_slice %121 {offsets = [1, 224], sizes = [1, 16], strides = [1, 1]} : vector<2x256xf32> to vector<1x16xf32>
    %153 = vector.extract_strided_slice %121 {offsets = [1, 240], sizes = [1, 16], strides = [1, 1]} : vector<2x256xf32> to vector<1x16xf32>
    %154 = tpu.concatenate %122, %123, %124, %125, %126, %127, %128, %129, %130, %131, %132, %133, %134, %135, %136, %137 in 0 : vector<1x16xf32>, vector<1x16xf32>, vector<1x16xf32>, vector<1x16xf32>, vector<1x16xf32>, vector<1x16xf32>, vector<1x16xf32>, vector<1x16xf32>, vector<1x16xf32>, vector<1x16xf32>, vector<1x16xf32>, vector<1x16xf32>, vector<1x16xf32>, vector<1x16xf32>, vector<1x16xf32>, vector<1x16xf32> -> vector<16x16xf32>
    %155 = tpu.concatenate %138, %139, %140, %141, %142, %143, %144, %145, %146, %147, %148, %149, %150, %151, %152, %153 in 0 : vector<1x16xf32>, vector<1x16xf32>, vector<1x16xf32>, vector<1x16xf32>, vector<1x16xf32>, vector<1x16xf32>, vector<1x16xf32>, vector<1x16xf32>, vector<1x16xf32>, vector<1x16xf32>, vector<1x16xf32>, vector<1x16xf32>, vector<1x16xf32>, vector<1x16xf32>, vector<1x16xf32>, vector<1x16xf32> -> vector<16x16xf32>
    %156 = tpu.concatenate %154, %155 in 0 : vector<16x16xf32>, vector<16x16xf32> -> vector<32x16xf32>
    %c0_49 = arith.constant 0 : index
    %c0_50 = arith.constant 0 : index
    %157 = vector.load %arg17[%c0_49, %c0_50] : memref<256x32xf32, #tpu.memory_space<vmem>>, vector<256x32xf32>
    %cst_51 = arith.constant dense<0.000000e+00> : vector<256x16xf32>
    %158 = tpu.matmul %157, %156, %cst_51 {dimension_numbers = #tpu.dot_dimension_numbers<[1], [0], [0], [1], [0, 0, 1, 1], [], []>} : vector<256x32xf32>, vector<32x16xf32>, vector<256x16xf32> -> vector<256x16xf32>
    %159 = vector.extract_strided_slice %158 {offsets = [0, 0], sizes = [16, 16], strides = [1, 1]} : vector<256x16xf32> to vector<16x16xf32>
    %160 = vector.extract_strided_slice %158 {offsets = [16, 0], sizes = [16, 16], strides = [1, 1]} : vector<256x16xf32> to vector<16x16xf32>
    %161 = vector.extract_strided_slice %158 {offsets = [32, 0], sizes = [16, 16], strides = [1, 1]} : vector<256x16xf32> to vector<16x16xf32>
    %162 = vector.extract_strided_slice %158 {offsets = [48, 0], sizes = [16, 16], strides = [1, 1]} : vector<256x16xf32> to vector<16x16xf32>
    %163 = vector.extract_strided_slice %158 {offsets = [64, 0], sizes = [16, 16], strides = [1, 1]} : vector<256x16xf32> to vector<16x16xf32>
    %164 = vector.extract_strided_slice %158 {offsets = [80, 0], sizes = [16, 16], strides = [1, 1]} : vector<256x16xf32> to vector<16x16xf32>
    %165 = vector.extract_strided_slice %158 {offsets = [96, 0], sizes = [16, 16], strides = [1, 1]} : vector<256x16xf32> to vector<16x16xf32>
    %166 = vector.extract_strided_slice %158 {offsets = [112, 0], sizes = [16, 16], strides = [1, 1]} : vector<256x16xf32> to vector<16x16xf32>
    %167 = vector.extract_strided_slice %158 {offsets = [128, 0], sizes = [16, 16], strides = [1, 1]} : vector<256x16xf32> to vector<16x16xf32>
    %168 = vector.extract_strided_slice %158 {offsets = [144, 0], sizes = [16, 16], strides = [1, 1]} : vector<256x16xf32> to vector<16x16xf32>
    %169 = vector.extract_strided_slice %158 {offsets = [160, 0], sizes = [16, 16], strides = [1, 1]} : vector<256x16xf32> to vector<16x16xf32>
    %170 = vector.extract_strided_slice %158 {offsets = [176, 0], sizes = [16, 16], strides = [1, 1]} : vector<256x16xf32> to vector<16x16xf32>
    %171 = vector.extract_strided_slice %158 {offsets = [192, 0], sizes = [16, 16], strides = [1, 1]} : vector<256x16xf32> to vector<16x16xf32>
    %172 = vector.extract_strided_slice %158 {offsets = [208, 0], sizes = [16, 16], strides = [1, 1]} : vector<256x16xf32> to vector<16x16xf32>
    %173 = vector.extract_strided_slice %158 {offsets = [224, 0], sizes = [16, 16], strides = [1, 1]} : vector<256x16xf32> to vector<16x16xf32>
    %174 = vector.extract_strided_slice %158 {offsets = [240, 0], sizes = [16, 16], strides = [1, 1]} : vector<256x16xf32> to vector<16x16xf32>
    %175 = tpu.concatenate %159, %160, %161, %162, %163, %164, %165, %166, %167, %168, %169, %170, %171, %172, %173, %174 in 1 : vector<16x16xf32>, vector<16x16xf32>, vector<16x16xf32>, vector<16x16xf32>, vector<16x16xf32>, vector<16x16xf32>, vector<16x16xf32>, vector<16x16xf32>, vector<16x16xf32>, vector<16x16xf32>, vector<16x16xf32>, vector<16x16xf32>, vector<16x16xf32>, vector<16x16xf32>, vector<16x16xf32>, vector<16x16xf32> -> vector<16x256xf32>
    %c0_52 = arith.constant 0 : index
    %c0_53 = arith.constant 0 : index
    %176 = vector.load %arg16[%c0_52, %c0_53] : memref<256x64xf32, #tpu.memory_space<vmem>>, vector<256x64xf32>
    %cst_54 = arith.constant dense<0.000000e+00> : vector<16x64xf32>
    %177 = tpu.matmul %175, %176, %cst_54 {dimension_numbers = #tpu.dot_dimension_numbers<[1], [0], [0], [1], [0, 0, 1, 1], [], []>} : vector<16x256xf32>, vector<256x64xf32>, vector<16x64xf32> -> vector<16x64xf32>
    %c0_55 = arith.constant 0 : index
    %c0_56 = arith.constant 0 : index
    %178 = vector.load %arg18[%c0_55, %c0_56] : memref<16x1xf32, #tpu.memory_space<vmem>>, vector<16x1xf32>
    %179 = vector.broadcast %178 : vector<16x1xf32> to vector<16x64xf32>
    %180 = arith.addf %177, %179 : vector<16x64xf32>
    %cst_57 = arith.constant 0.000000e+00 : f32
    %181 = vector.broadcast %cst_57 : f32 to vector<16x64xf32>
    %182 = arith.maximumf %180, %181 : vector<16x64xf32>
    %c0_58 = arith.constant 0 : index
    %c0_59 = arith.constant 0 : index
    %183 = vector.load %arg20[%c0_58, %c0_59] : memref<32x16xf32, #tpu.memory_space<vmem>>, vector<32x16xf32>
    %cst_60 = arith.constant dense<0.000000e+00> : vector<32x64xf32>
    %184 = tpu.matmul %183, %182, %cst_60 {dimension_numbers = #tpu.dot_dimension_numbers<[1], [0], [0], [1], [0, 0, 1, 1], [], []>} : vector<32x16xf32>, vector<16x64xf32>, vector<32x64xf32> -> vector<32x64xf32>
    %185 = vector.extract_strided_slice %184 {offsets = [0, 0], sizes = [2, 64], strides = [1, 1]} : vector<32x64xf32> to vector<2x64xf32>
    %186 = vector.extract_strided_slice %184 {offsets = [2, 0], sizes = [2, 64], strides = [1, 1]} : vector<32x64xf32> to vector<2x64xf32>
    %187 = vector.extract_strided_slice %184 {offsets = [4, 0], sizes = [2, 64], strides = [1, 1]} : vector<32x64xf32> to vector<2x64xf32>
    %188 = vector.extract_strided_slice %184 {offsets = [6, 0], sizes = [2, 64], strides = [1, 1]} : vector<32x64xf32> to vector<2x64xf32>
    %189 = vector.extract_strided_slice %184 {offsets = [8, 0], sizes = [2, 64], strides = [1, 1]} : vector<32x64xf32> to vector<2x64xf32>
    %190 = vector.extract_strided_slice %184 {offsets = [10, 0], sizes = [2, 64], strides = [1, 1]} : vector<32x64xf32> to vector<2x64xf32>
    %191 = vector.extract_strided_slice %184 {offsets = [12, 0], sizes = [2, 64], strides = [1, 1]} : vector<32x64xf32> to vector<2x64xf32>
    %192 = vector.extract_strided_slice %184 {offsets = [14, 0], sizes = [2, 64], strides = [1, 1]} : vector<32x64xf32> to vector<2x64xf32>
    %193 = vector.extract_strided_slice %184 {offsets = [16, 0], sizes = [2, 64], strides = [1, 1]} : vector<32x64xf32> to vector<2x64xf32>
    %194 = vector.extract_strided_slice %184 {offsets = [18, 0], sizes = [2, 64], strides = [1, 1]} : vector<32x64xf32> to vector<2x64xf32>
    %195 = vector.extract_strided_slice %184 {offsets = [20, 0], sizes = [2, 64], strides = [1, 1]} : vector<32x64xf32> to vector<2x64xf32>
    %196 = vector.extract_strided_slice %184 {offsets = [22, 0], sizes = [2, 64], strides = [1, 1]} : vector<32x64xf32> to vector<2x64xf32>
    %197 = vector.extract_strided_slice %184 {offsets = [24, 0], sizes = [2, 64], strides = [1, 1]} : vector<32x64xf32> to vector<2x64xf32>
    %198 = vector.extract_strided_slice %184 {offsets = [26, 0], sizes = [2, 64], strides = [1, 1]} : vector<32x64xf32> to vector<2x64xf32>
    %199 = vector.extract_strided_slice %184 {offsets = [28, 0], sizes = [2, 64], strides = [1, 1]} : vector<32x64xf32> to vector<2x64xf32>
    %200 = vector.extract_strided_slice %184 {offsets = [30, 0], sizes = [2, 64], strides = [1, 1]} : vector<32x64xf32> to vector<2x64xf32>
    %201 = tpu.concatenate %185, %186, %187, %188, %189, %190, %191, %192, %193, %194, %195, %196, %197, %198, %199, %200 in 1 : vector<2x64xf32>, vector<2x64xf32>, vector<2x64xf32>, vector<2x64xf32>, vector<2x64xf32>, vector<2x64xf32>, vector<2x64xf32>, vector<2x64xf32>, vector<2x64xf32>, vector<2x64xf32>, vector<2x64xf32>, vector<2x64xf32>, vector<2x64xf32>, vector<2x64xf32>, vector<2x64xf32>, vector<2x64xf32> -> vector<2x1024xf32>
    %c0_61 = arith.constant 0 : index
    %c0_62 = arith.constant 0 : index
    %202 = vector.load %arg19[%c0_61, %c0_62] : memref<1024x256xf32, #tpu.memory_space<vmem>>, vector<1024x256xf32>
    %cst_63 = arith.constant dense<0.000000e+00> : vector<2x256xf32>
    %203 = tpu.matmul %201, %202, %cst_63 {dimension_numbers = #tpu.dot_dimension_numbers<[1], [0], [0], [1], [0, 0, 1, 1], [], []>} : vector<2x1024xf32>, vector<1024x256xf32>, vector<2x256xf32> -> vector<2x256xf32>
    %c0_64 = arith.constant 0 : index
    %c0_65 = arith.constant 0 : index
    %204 = vector.load %arg21[%c0_64, %c0_65] : memref<2x1xf32, #tpu.memory_space<vmem>>, vector<2x1xf32>
    %205 = vector.broadcast %204 : vector<2x1xf32> to vector<2x256xf32>
    %206 = arith.addf %203, %205 : vector<2x256xf32>
    %cst_66 = arith.constant 0.000000e+00 : f32
    %207 = vector.broadcast %cst_66 : f32 to vector<2x256xf32>
    %208 = arith.subf %207, %206 : vector<2x256xf32>
    %209 = math.exp %208 : vector<2x256xf32>
    %cst_67 = arith.constant 1.000000e+00 : f32
    %210 = vector.broadcast %cst_67 : f32 to vector<2x256xf32>
    %211 = arith.addf %210, %209 : vector<2x256xf32>
    %212 = tpu.reciprocal %211 : vector<2x256xf32> -> vector<2x256xf32>
    %c0_68 = arith.constant 0 : index
    %c0_69 = arith.constant 0 : index
    %213 = vector.load %arg24[%c0_68, %c0_69] : memref<2x256xf32, #tpu.memory_space<vmem>>, vector<2x256xf32>
    tpu.vector_store %arg24[%c0_68, %c0_69], %212 {strides = array<i32>} : memref<2x256xf32, #tpu.memory_space<vmem>>, vector<2x256xf32>,
    return
  }
}

</mosaic_0001>

<llo_original>
// kernel: simple_vae_forward.1
$region0: #{simple_vae_forward.1}
  #allocation0 [shape = 'u32[]', space=smem, size = 0x4, offset = 0x4, fixed_abs, tag = 'smem constant byte address 0x4 - core index']
  #allocation1 [shape = 'u32[144,128]{1,0:T(1,128)}', space=vmem, size = 0x12000, scoped, tag = 'internal scratch']
  %s0 = inlined_call_operand.vmem [shape: f32[2,256], index: 0, kind: input, shape index: {}]
  %s1 = inlined_call_operand.hbm [shape: f32[256,1024], index: 1, kind: input, shape index: {}]
  %s2 = inlined_call_operand.vmem [shape: f32[16,32], index: 2, kind: input, shape index: {}]
  %s3 = inlined_call_operand.vmem [shape: f32[16,1], index: 3, kind: input, shape index: {}]
  %s4 = inlined_call_operand.vmem [shape: f32[64,256], index: 4, kind: input, shape index: {}]
  %s5 = inlined_call_operand.vmem [shape: f32[32,256], index: 5, kind: input, shape index: {}]
  %s6 = inlined_call_operand.vmem [shape: f32[32,1], index: 6, kind: input, shape index: {}]
  %s7 = inlined_call_operand.vmem [shape: f32[256,64], index: 7, kind: input, shape index: {}]
  %s8 = inlined_call_operand.vmem [shape: f32[1,64], index: 8, kind: input, shape index: {}]
  %s9 = inlined_call_operand.vmem [shape: f32[64,32], index: 9, kind: input, shape index: {}]
  %s10 = inlined_call_operand.vmem [shape: f32[1,32], index: 10, kind: input, shape index: {}]
  %s11 = inlined_call_operand.vmem [shape: f32[32,32], index: 11, kind: input, shape index: {}]
  %s12 = inlined_call_operand.vmem [shape: f32[16,64], index: 12, kind: input, shape index: {}]
  %s13 = inlined_call_operand.vmem [shape: f32[1,64], index: 13, kind: input, shape index: {}]
  %s14 = inlined_call_operand.vmem [shape: f32[64,256], index: 14, kind: input, shape index: {}]
  %s15 = inlined_call_operand.vmem [shape: f32[1,256], index: 15, kind: input, shape index: {}]
  %s16 = inlined_call_operand.vmem [shape: f32[256,64], index: 16, kind: input, shape index: {}]
  %s17 = inlined_call_operand.vmem [shape: f32[256,32], index: 17, kind: input, shape index: {}]
  %s18 = inlined_call_operand.vmem [shape: f32[16,1], index: 18, kind: input, shape index: {}]
  %s19 = inlined_call_operand.hbm [shape: f32[1024,256], index: 19, kind: input, shape index: {}]
  %s20 = inlined_call_operand.vmem [shape: f32[32,16], index: 20, kind: input, shape index: {}]
  %s21 = inlined_call_operand.vmem [shape: f32[2,1], index: 21, kind: input, shape index: {}]
  %s22 = inlined_call_operand.hbm [shape: f32[2,16], index: 22, kind: output, shape index: {0}]
  %s23 = inlined_call_operand.hbm [shape: f32[2,16], index: 23, kind: output, shape index: {1}]
  %s24 = inlined_call_operand.vmem [shape: f32[2,256], index: 24, kind: output, shape index: {2}]
  %25 = xla_tuple %s22, %s23, %s24
  %s26 = sld [smem:[#allocation0]]
  $region122: #{simple_vae_forward.1} parent=0
    _
  %s28 = ssub.s32 1, %s26
  %s29 = scalar_select 0, %s28, %s26
  $region1: #{simple_vae_forward.1} parent=0
    #allocation2 [shape = 'u8[1048576]{0}', space=vmem, size = 0x100000, scoped, tag = 'input window, operand 1, single buffered']
    #allocation3 [shape = 's32[1]{0}', space=sflag, size = 0x4, scoped, tag = 'scoped memory for simple_vae_forward.1']
    #allocation4 [shape = 's32[1]{0}', space=sflag, size = 0x4, scoped, tag = 'scoped memory for simple_vae_forward.1']
    #allocation5 [shape = 'u8[1048576]{0}', space=vmem, size = 0x100000, scoped, tag = 'input window, operand 19, single buffered']
    #allocation6 [shape = 's32[1]{0}', space=sflag, size = 0x4, scoped, tag = 'scoped memory for simple_vae_forward.1']
    #allocation7 [shape = 'u8[1024]{0}', space=vmem, size = 0x400, scoped, tag = 'output window, operand 0, single buffered']
    #allocation8 [shape = 'u8[1024]{0}', space=vmem, size = 0x400, scoped, tag = 'output window, operand 1, single buffered']
    #allocation9 [shape = 's32[1]{0}', space=sflag, size = 0x4, scoped, tag = 'scoped memory for simple_vae_forward.1']
    %30 = vsyncpa [#allocation3], 0
    %31 = vsyncpa [#allocation6], 0
    %32 = vsyncpa [#allocation4], 0
    %33 = vsyncpa [#allocation9], 0
    // Predicated region
    $region2: #{simple_vae_forward.1} parent=1 // pred_check
      _
    $region3: #{simple_vae_forward.1} parent=1 // pred_check_branch
      %35 = sbr.rel (0) target = $region5
    $region4: #{simple_vae_forward.1} parent=1 // pred_region
      _
    $region5: #{simple_vae_forward.1} parent=1 // pred_fallthru
      _
    // Predicated region
    $region6: #{simple_vae_forward.1} parent=1 // pred_check
      _
    $region7: #{simple_vae_forward.1} parent=1 // pred_check_branch
      %37 = sbr.rel (0) target = $region9
    $region8: #{simple_vae_forward.1} parent=1 // pred_region
      %s39 = ssub.s32 32768, 32768
      %40 = vsyncadd [#allocation3], %s39
      %s41 = sshll.u32 [#allocation2], 4
      %s42 = int_to_ptr.vmem [resolvable:$true] %s41
      %47 = dma.hbm_to_vmem [thread:$0]  %s1, 32768, %s42, [#allocation3], 1024, 1024, 64
    $region9: #{simple_vae_forward.1} parent=1 // pred_fallthru
      _
    // Predicated region
    $region10: #{simple_vae_forward.1} parent=1 // pred_check
      _
    $region11: #{simple_vae_forward.1} parent=1 // pred_check_branch
      %49 = sbr.rel (0) target = $region13
    $region12: #{simple_vae_forward.1} parent=1 // pred_region
      _
    $region13: #{simple_vae_forward.1} parent=1 // pred_fallthru
      _
    // Predicated region
    $region14: #{simple_vae_forward.1} parent=1 // pred_check
      _
    $region15: #{simple_vae_forward.1} parent=1 // pred_check_branch
      %51 = sbr.rel (0) target = $region17
    $region16: #{simple_vae_forward.1} parent=1 // pred_region
      _
    $region17: #{simple_vae_forward.1} parent=1 // pred_fallthru
      _
    // Predicated region
    $region18: #{simple_vae_forward.1} parent=1 // pred_check
      _
    $region19: #{simple_vae_forward.1} parent=1 // pred_check_branch
      %53 = sbr.rel (0) target = $region21
    $region20: #{simple_vae_forward.1} parent=1 // pred_region
      _
    $region21: #{simple_vae_forward.1} parent=1 // pred_fallthru
      _
    // Predicated region
    $region22: #{simple_vae_forward.1} parent=1 // pred_check
      _
    $region23: #{simple_vae_forward.1} parent=1 // pred_check_branch
      %55 = sbr.rel (0) target = $region25
    $region24: #{simple_vae_forward.1} parent=1 // pred_region
      _
    $region25: #{simple_vae_forward.1} parent=1 // pred_fallthru
      _
    // Predicated region
    $region26: #{simple_vae_forward.1} parent=1 // pred_check
      _
    $region27: #{simple_vae_forward.1} parent=1 // pred_check_branch
      %57 = sbr.rel (0) target = $region29
    $region28: #{simple_vae_forward.1} parent=1 // pred_region
      _
    $region29: #{simple_vae_forward.1} parent=1 // pred_fallthru
      _
    // Predicated region
    $region30: #{simple_vae_forward.1} parent=1 // pred_check
      _
    $region31: #{simple_vae_forward.1} parent=1 // pred_check_branch
      %59 = sbr.rel (0) target = $region33
    $region32: #{simple_vae_forward.1} parent=1 // pred_region
      _
    $region33: #{simple_vae_forward.1} parent=1 // pred_fallthru
      _
    // Predicated region
    $region34: #{simple_vae_forward.1} parent=1 // pred_check
      _
    $region35: #{simple_vae_forward.1} parent=1 // pred_check_branch
      %61 = sbr.rel (0) target = $region37
    $region36: #{simple_vae_forward.1} parent=1 // pred_region
      _
    $region37: #{simple_vae_forward.1} parent=1 // pred_fallthru
      _
    // Predicated region
    $region38: #{simple_vae_forward.1} parent=1 // pred_check
      _
    $region39: #{simple_vae_forward.1} parent=1 // pred_check_branch
      %63 = sbr.rel (0) target = $region41
    $region40: #{simple_vae_forward.1} parent=1 // pred_region
      _
    $region41: #{simple_vae_forward.1} parent=1 // pred_fallthru
      _
    // Predicated region
    $region42: #{simple_vae_forward.1} parent=1 // pred_check
      _
    $region43: #{simple_vae_forward.1} parent=1 // pred_check_branch
      %65 = sbr.rel (0) target = $region45
    $region44: #{simple_vae_forward.1} parent=1 // pred_region
      _
    $region45: #{simple_vae_forward.1} parent=1 // pred_fallthru
      _
    // Predicated region
    $region46: #{simple_vae_forward.1} parent=1 // pred_check
      _
    $region47: #{simple_vae_forward.1} parent=1 // pred_check_branch
      %67 = sbr.rel (0) target = $region49
    $region48: #{simple_vae_forward.1} parent=1 // pred_region
      _
    $region49: #{simple_vae_forward.1} parent=1 // pred_fallthru
      _
    // Predicated region
    $region50: #{simple_vae_forward.1} parent=1 // pred_check
      _
    $region51: #{simple_vae_forward.1} parent=1 // pred_check_branch
      %69 = sbr.rel (0) target = $region53
    $region52: #{simple_vae_forward.1} parent=1 // pred_region
      _
    $region53: #{simple_vae_forward.1} parent=1 // pred_fallthru
      _
    // Predicated region
    $region54: #{simple_vae_forward.1} parent=1 // pred_check
      _
    $region55: #{simple_vae_forward.1} parent=1 // pred_check_branch
      %71 = sbr.rel (0) target = $region57
    $region56: #{simple_vae_forward.1} parent=1 // pred_region
      _
    $region57: #{simple_vae_forward.1} parent=1 // pred_fallthru
      _
    // Predicated region
    $region58: #{simple_vae_forward.1} parent=1 // pred_check
      _
    $region59: #{simple_vae_forward.1} parent=1 // pred_check_branch
      %73 = sbr.rel (0) target = $region61
    $region60: #{simple_vae_forward.1} parent=1 // pred_region
      _
    $region61: #{simple_vae_forward.1} parent=1 // pred_fallthru
      _
    // Predicated region
    $region62: #{simple_vae_forward.1} parent=1 // pred_check
      _
    $region63: #{simple_vae_forward.1} parent=1 // pred_check_branch
      %75 = sbr.rel (0) target = $region65
    $region64: #{simple_vae_forward.1} parent=1 // pred_region
      _
    $region65: #{simple_vae_forward.1} parent=1 // pred_fallthru
      _
    // Predicated region
    $region66: #{simple_vae_forward.1} parent=1 // pred_check
      _
    $region67: #{simple_vae_forward.1} parent=1 // pred_check_branch
      %77 = sbr.rel (0) target = $region69
    $region68: #{simple_vae_forward.1} parent=1 // pred_region
      _
    $region69: #{simple_vae_forward.1} parent=1 // pred_fallthru
      _
    // Predicated region
    $region70: #{simple_vae_forward.1} parent=1 // pred_check
      _
    $region71: #{simple_vae_forward.1} parent=1 // pred_check_branch
      %79 = sbr.rel (0) target = $region73
    $region72: #{simple_vae_forward.1} parent=1 // pred_region
      _
    $region73: #{simple_vae_forward.1} parent=1 // pred_fallthru
      _
    // Predicated region
    $region74: #{simple_vae_forward.1} parent=1 // pred_check
      _
    $region75: #{simple_vae_forward.1} parent=1 // pred_check_branch
      %81 = sbr.rel (0) target = $region77
    $region76: #{simple_vae_forward.1} parent=1 // pred_region
      _
    $region77: #{simple_vae_forward.1} parent=1 // pred_fallthru
      _
    // Predicated region
    $region78: #{simple_vae_forward.1} parent=1 // pred_check
      _
    $region79: #{simple_vae_forward.1} parent=1 // pred_check_branch
      %83 = sbr.rel (0) target = $region81
    $region80: #{simple_vae_forward.1} parent=1 // pred_region
      %s85 = ssub.s32 32768, 32768
      %86 = vsyncadd [#allocation6], %s85
      %s87 = sshll.u32 [#allocation5], 4
      %s88 = int_to_ptr.vmem [resolvable:$true] %s87
      %93 = dma.hbm_to_vmem [thread:$0]  %s19, 32768, %s88, [#allocation6], 256, 256, 16
    $region81: #{simple_vae_forward.1} parent=1 // pred_fallthru
      _
    // Predicated region
    $region82: #{simple_vae_forward.1} parent=1 // pred_check
      _
    $region83: #{simple_vae_forward.1} parent=1 // pred_check_branch
      %95 = sbr.rel (0) target = $region85
    $region84: #{simple_vae_forward.1} parent=1 // pred_region
      _
    $region85: #{simple_vae_forward.1} parent=1 // pred_fallthru
      _
    // Predicated region
    $region86: #{simple_vae_forward.1} parent=1 // pred_check
      _
    $region87: #{simple_vae_forward.1} parent=1 // pred_check_branch
      %97 = sbr.rel (0) target = $region89
    $region88: #{simple_vae_forward.1} parent=1 // pred_region
      _
    $region89: #{simple_vae_forward.1} parent=1 // pred_fallthru
      _
    // Predicated region
    $region90: #{simple_vae_forward.1} parent=1 // pred_check
      _
    $region91: #{simple_vae_forward.1} parent=1 // pred_check_branch
      %99 = sbr.rel (0) target = $region93
    $region92: #{simple_vae_forward.1} parent=1 // pred_region
      %100 = dma.done [#allocation3], 32768
    $region93: #{simple_vae_forward.1} parent=1 // pred_fallthru
      _
    // Predicated region
    $region94: #{simple_vae_forward.1} parent=1 // pred_check
      _
    $region95: #{simple_vae_forward.1} parent=1 // pred_check_branch
      %102 = sbr.rel (0) target = $region97
    $region96: #{simple_vae_forward.1} parent=1 // pred_region
      %103 = dma.done [#allocation6], 32768
    $region97: #{simple_vae_forward.1} parent=1 // pred_fallthru
      _
    %v104 = vld [vmem:[%s0] sm:$0xf]
    %v105 = vld [vmem:[#allocation2] sm:$0xff]
    %v106 = vld [vmem:[#allocation2 + $0x8] sm:$0xff]
    %v107 = vld [vmem:[#allocation2 + $0x10] sm:$0xff]
    %v108 = vld [vmem:[#allocation2 + $0x18] sm:$0xff]
    %v109 = vld [vmem:[#allocation2 + $0x20] sm:$0xff]
    %v110 = vld [vmem:[#allocation2 + $0x28] sm:$0xff]
    %v111 = vld [vmem:[#allocation2 + $0x30] sm:$0xff]
    %v112 = vld [vmem:[#allocation2 + $0x38] sm:$0xff]
    %v113 = vld [vmem:[#allocation2 + $0x40] sm:$0xff]
    %v114 = vld [vmem:[#allocation2 + $0x48] sm:$0xff]
    %v115 = vld [vmem:[#allocation2 + $0x50] sm:$0xff]
    %v116 = vld [vmem:[#allocation2 + $0x58] sm:$0xff]
    %v117 = vld [vmem:[#allocation2 + $0x60] sm:$0xff]
    %v118 = vld [vmem:[#allocation2 + $0x68] sm:$0xff]
    %v119 = vld [vmem:[#allocation2 + $0x70] sm:$0xff]
    %v120 = vld [vmem:[#allocation2 + $0x78] sm:$0xff]
    %v121 = vld [vmem:[#allocation2 + $0x80] sm:$0xff]
    %v122 = vld [vmem:[#allocation2 + $0x88] sm:$0xff]
    %v123 = vld [vmem:[#allocation2 + $0x90] sm:$0xff]
    %v124 = vld [vmem:[#allocation2 + $0x98] sm:$0xff]
    %v125 = vld [vmem:[#allocation2 + $0xa0] sm:$0xff]
    %v126 = vld [vmem:[#allocation2 + $0xa8] sm:$0xff]
    %v127 = vld [vmem:[#allocation2 + $0xb0] sm:$0xff]
    %v128 = vld [vmem:[#allocation2 + $0xb8] sm:$0xff]
    %v129 = vld [vmem:[#allocation2 + $0xc0] sm:$0xff]
    %v130 = vld [vmem:[#allocation2 + $0xc8] sm:$0xff]
    %v131 = vld [vmem:[#allocation2 + $0xd0] sm:$0xff]
    %v132 = vld [vmem:[#allocation2 + $0xd8] sm:$0xff]
    %v133 = vld [vmem:[#allocation2 + $0xe0] sm:$0xff]
    %v134 = vld [vmem:[#allocation2 + $0xe8] sm:$0xff]
    %v135 = vld [vmem:[#allocation2 + $0xf0] sm:$0xff]
    %v136 = vld [vmem:[#allocation2 + $0xf8] sm:$0xff]
    %v137 = vld [vmem:[#allocation2 + $0x100] sm:$0xff]
    %v138 = vld [vmem:[#allocation2 + $0x108] sm:$0xff]
    %v139 = vld [vmem:[#allocation2 + $0x110] sm:$0xff]
    %v140 = vld [vmem:[#allocation2 + $0x118] sm:$0xff]
    %v141 = vld [vmem:[#allocation2 + $0x120] sm:$0xff]
    %v142 = vld [vmem:[#allocation2 + $0x128] sm:$0xff]
    %v143 = vld [vmem:[#allocation2 + $0x130] sm:$0xff]
    %v144 = vld [vmem:[#allocation2 + $0x138] sm:$0xff]
    %v145 = vld [vmem:[#allocation2 + $0x140] sm:$0xff]
    %v146 = vld [vmem:[#allocation2 + $0x148] sm:$0xff]
    %v147 = vld [vmem:[#allocation2 + $0x150] sm:$0xff]
    %v148 = vld [vmem:[#allocation2 + $0x158] sm:$0xff]
    %v149 = vld [vmem:[#allocation2 + $0x160] sm:$0xff]
    %v150 = vld [vmem:[#allocation2 + $0x168] sm:$0xff]
    %v151 = vld [vmem:[#allocation2 + $0x170] sm:$0xff]
    %v152 = vld [vmem:[#allocation2 + $0x178] sm:$0xff]
    %v153 = vld [vmem:[#allocation2 + $0x180] sm:$0xff]
    %v154 = vld [vmem:[#allocation2 + $0x188] sm:$0xff]
    %v155 = vld [vmem:[#allocation2 + $0x190] sm:$0xff]
    %v156 = vld [vmem:[#allocation2 + $0x198] sm:$0xff]
    %v157 = vld [vmem:[#allocation2 + $0x1a0] sm:$0xff]
    %v158 = vld [vmem:[#allocation2 + $0x1a8] sm:$0xff]
    %v159 = vld [vmem:[#allocation2 + $0x1b0] sm:$0xff]
    %v160 = vld [vmem:[#allocation2 + $0x1b8] sm:$0xff]
    %v161 = vld [vmem:[#allocation2 + $0x1c0] sm:$0xff]
    %v162 = vld [vmem:[#allocation2 + $0x1c8] sm:$0xff]
    %v163 = vld [vmem:[#allocation2 + $0x1d0] sm:$0xff]
    %v164 = vld [vmem:[#allocation2 + $0x1d8] sm:$0xff]
    %v165 = vld [vmem:[#allocation2 + $0x1e0] sm:$0xff]
    %v166 = vld [vmem:[#allocation2 + $0x1e8] sm:$0xff]
    %v167 = vld [vmem:[#allocation2 + $0x1f0] sm:$0xff]
    %v168 = vld [vmem:[#allocation2 + $0x1f8] sm:$0xff]
    %v169 = vld [vmem:[#allocation2 + $0x200] sm:$0xff]
    %v170 = vld [vmem:[#allocation2 + $0x208] sm:$0xff]
    %v171 = vld [vmem:[#allocation2 + $0x210] sm:$0xff]
    %v172 = vld [vmem:[#allocation2 + $0x218] sm:$0xff]
    %v173 = vld [vmem:[#allocation2 + $0x220] sm:$0xff]
    %v174 = vld [vmem:[#allocation2 + $0x228] sm:$0xff]
    %v175 = vld [vmem:[#allocation2 + $0x230] sm:$0xff]
    %v176 = vld [vmem:[#allocation2 + $0x238] sm:$0xff]
    %v177 = vld [vmem:[#allocation2 + $0x240] sm:$0xff]
    %v178 = vld [vmem:[#allocation2 + $0x248] sm:$0xff]
    %v179 = vld [vmem:[#allocation2 + $0x250] sm:$0xff]
    %v180 = vld [vmem:[#allocation2 + $0x258] sm:$0xff]
    %v181 = vld [vmem:[#allocation2 + $0x260] sm:$0xff]
    %v182 = vld [vmem:[#allocation2 + $0x268] sm:$0xff]
    %v183 = vld [vmem:[#allocation2 + $0x270] sm:$0xff]
    %v184 = vld [vmem:[#allocation2 + $0x278] sm:$0xff]
    %v185 = vld [vmem:[#allocation2 + $0x280] sm:$0xff]
    %v186 = vld [vmem:[#allocation2 + $0x288] sm:$0xff]
    %v187 = vld [vmem:[#allocation2 + $0x290] sm:$0xff]
    %v188 = vld [vmem:[#allocation2 + $0x298] sm:$0xff]
    %v189 = vld [vmem:[#allocation2 + $0x2a0] sm:$0xff]
    %v190 = vld [vmem:[#allocation2 + $0x2a8] sm:$0xff]
    %v191 = vld [vmem:[#allocation2 + $0x2b0] sm:$0xff]
    %v192 = vld [vmem:[#allocation2 + $0x2b8] sm:$0xff]
    %v193 = vld [vmem:[#allocation2 + $0x2c0] sm:$0xff]
    %v194 = vld [vmem:[#allocation2 + $0x2c8] sm:$0xff]
    %v195 = vld [vmem:[#allocation2 + $0x2d0] sm:$0xff]
    %v196 = vld [vmem:[#allocation2 + $0x2d8] sm:$0xff]
    %v197 = vld [vmem:[#allocation2 + $0x2e0] sm:$0xff]
    %v198 = vld [vmem:[#allocation2 + $0x2e8] sm:$0xff]
    %v199 = vld [vmem:[#allocation2 + $0x2f0] sm:$0xff]
    %v200 = vld [vmem:[#allocation2 + $0x2f8] sm:$0xff]
    %v201 = vld [vmem:[#allocation2 + $0x300] sm:$0xff]
    %v202 = vld [vmem:[#allocation2 + $0x308] sm:$0xff]
    %v203 = vld [vmem:[#allocation2 + $0x310] sm:$0xff]
    %v204 = vld [vmem:[#allocation2 + $0x318] sm:$0xff]
    %v205 = vld [vmem:[#allocation2 + $0x320] sm:$0xff]
    %v206 = vld [vmem:[#allocation2 + $0x328] sm:$0xff]
    %v207 = vld [vmem:[#allocation2 + $0x330] sm:$0xff]
    %v208 = vld [vmem:[#allocation2 + $0x338] sm:$0xff]
    %v209 = vld [vmem:[#allocation2 + $0x340] sm:$0xff]
    %v210 = vld [vmem:[#allocation2 + $0x348] sm:$0xff]
    %v211 = vld [vmem:[#allocation2 + $0x350] sm:$0xff]
    %v212 = vld [vmem:[#allocation2 + $0x358] sm:$0xff]
    %v213 = vld [vmem:[#allocation2 + $0x360] sm:$0xff]
    %v214 = vld [vmem:[#allocation2 + $0x368] sm:$0xff]
    %v215 = vld [vmem:[#allocation2 + $0x370] sm:$0xff]
    %v216 = vld [vmem:[#allocation2 + $0x378] sm:$0xff]
    %v217 = vld [vmem:[#allocation2 + $0x380] sm:$0xff]
    %v218 = vld [vmem:[#allocation2 + $0x388] sm:$0xff]
    %v219 = vld [vmem:[#allocation2 + $0x390] sm:$0xff]
    %v220 = vld [vmem:[#allocation2 + $0x398] sm:$0xff]
    %v221 = vld [vmem:[#allocation2 + $0x3a0] sm:$0xff]
    %v222 = vld [vmem:[#allocation2 + $0x3a8] sm:$0xff]
    %v223 = vld [vmem:[#allocation2 + $0x3b0] sm:$0xff]
    %v224 = vld [vmem:[#allocation2 + $0x3b8] sm:$0xff]
    %v225 = vld [vmem:[#allocation2 + $0x3c0] sm:$0xff]
    %v226 = vld [vmem:[#allocation2 + $0x3c8] sm:$0xff]
    %v227 = vld [vmem:[#allocation2 + $0x3d0] sm:$0xff]
    %v228 = vld [vmem:[#allocation2 + $0x3d8] sm:$0xff]
    %v229 = vld [vmem:[#allocation2 + $0x3e0] sm:$0xff]
    %v230 = vld [vmem:[#allocation2 + $0x3e8] sm:$0xff]
    %v231 = vld [vmem:[#allocation2 + $0x3f0] sm:$0xff]
    %v232 = vld [vmem:[#allocation2 + $0x3f8] sm:$0xff]
    %v233 = vld [vmem:[#allocation2 + $0x400] sm:$0xff]
    %v234 = vld [vmem:[#allocation2 + $0x408] sm:$0xff]
    %v235 = vld [vmem:[#allocation2 + $0x410] sm:$0xff]
    %v236 = vld [vmem:[#allocation2 + $0x418] sm:$0xff]
    %v237 = vld [vmem:[#allocation2 + $0x420] sm:$0xff]
    %v238 = vld [vmem:[#allocation2 + $0x428] sm:$0xff]
    %v239 = vld [vmem:[#allocation2 + $0x430] sm:$0xff]
    %v240 = vld [vmem:[#allocation2 + $0x438] sm:$0xff]
    %v241 = vld [vmem:[#allocation2 + $0x440] sm:$0xff]
    %v242 = vld [vmem:[#allocation2 + $0x448] sm:$0xff]
    %v243 = vld [vmem:[#allocation2 + $0x450] sm:$0xff]
    %v244 = vld [vmem:[#allocation2 + $0x458] sm:$0xff]
    %v245 = vld [vmem:[#allocation2 + $0x460] sm:$0xff]
    %v246 = vld [vmem:[#allocation2 + $0x468] sm:$0xff]
    %v247 = vld [vmem:[#allocation2 + $0x470] sm:$0xff]
    %v248 = vld [vmem:[#allocation2 + $0x478] sm:$0xff]
    %v249 = vld [vmem:[#allocation2 + $0x480] sm:$0xff]
    %v250 = vld [vmem:[#allocation2 + $0x488] sm:$0xff]
    %v251 = vld [vmem:[#allocation2 + $0x490] sm:$0xff]
    %v252 = vld [vmem:[#allocation2 + $0x498] sm:$0xff]
    %v253 = vld [vmem:[#allocation2 + $0x4a0] sm:$0xff]
    %v254 = vld [vmem:[#allocation2 + $0x4a8] sm:$0xff]
    %v255 = vld [vmem:[#allocation2 + $0x4b0] sm:$0xff]
    %v256 = vld [vmem:[#allocation2 + $0x4b8] sm:$0xff]
    %v257 = vld [vmem:[#allocation2 + $0x4c0] sm:$0xff]
    %v258 = vld [vmem:[#allocation2 + $0x4c8] sm:$0xff]
    %v259 = vld [vmem:[#allocation2 + $0x4d0] sm:$0xff]
    %v260 = vld [vmem:[#allocation2 + $0x4d8] sm:$0xff]
    %v261 = vld [vmem:[#allocation2 + $0x4e0] sm:$0xff]
    %v262 = vld [vmem:[#allocation2 + $0x4e8] sm:$0xff]
    %v263 = vld [vmem:[#allocation2 + $0x4f0] sm:$0xff]
    %v264 = vld [vmem:[#allocation2 + $0x4f8] sm:$0xff]
    %v265 = vld [vmem:[#allocation2 + $0x500] sm:$0xff]
    %v266 = vld [vmem:[#allocation2 + $0x508] sm:$0xff]
    %v267 = vld [vmem:[#allocation2 + $0x510] sm:$0xff]
    %v268 = vld [vmem:[#allocation2 + $0x518] sm:$0xff]
    %v269 = vld [vmem:[#allocation2 + $0x520] sm:$0xff]
    %v270 = vld [vmem:[#allocation2 + $0x528] sm:$0xff]
    %v271 = vld [vmem:[#allocation2 + $0x530] sm:$0xff]
    %v272 = vld [vmem:[#allocation2 + $0x538] sm:$0xff]
    %v273 = vld [vmem:[#allocation2 + $0x540] sm:$0xff]
    %v274 = vld [vmem:[#allocation2 + $0x548] sm:$0xff]
    %v275 = vld [vmem:[#allocation2 + $0x550] sm:$0xff]
    %v276 = vld [vmem:[#allocation2 + $0x558] sm:$0xff]
    %v277 = vld [vmem:[#allocation2 + $0x560] sm:$0xff]
    %v278 = vld [vmem:[#allocation2 + $0x568] sm:$0xff]
    %v279 = vld [vmem:[#allocation2 + $0x570] sm:$0xff]
    %v280 = vld [vmem:[#allocation2 + $0x578] sm:$0xff]
    %v281 = vld [vmem:[#allocation2 + $0x580] sm:$0xff]
    %v282 = vld [vmem:[#allocation2 + $0x588] sm:$0xff]
    %v283 = vld [vmem:[#allocation2 + $0x590] sm:$0xff]
    %v284 = vld [vmem:[#allocation2 + $0x598] sm:$0xff]
    %v285 = vld [vmem:[#allocation2 + $0x5a0] sm:$0xff]
    %v286 = vld [vmem:[#allocation2 + $0x5a8] sm:$0xff]
    %v287 = vld [vmem:[#allocation2 + $0x5b0] sm:$0xff]
    %v288 = vld [vmem:[#allocation2 + $0x5b8] sm:$0xff]
    %v289 = vld [vmem:[#allocation2 + $0x5c0] sm:$0xff]
    %v290 = vld [vmem:[#allocation2 + $0x5c8] sm:$0xff]
    %v291 = vld [vmem:[#allocation2 + $0x5d0] sm:$0xff]
    %v292 = vld [vmem:[#allocation2 + $0x5d8] sm:$0xff]
    %v293 = vld [vmem:[#allocation2 + $0x5e0] sm:$0xff]
    %v294 = vld [vmem:[#allocation2 + $0x5e8] sm:$0xff]
    %v295 = vld [vmem:[#allocation2 + $0x5f0] sm:$0xff]
    %v296 = vld [vmem:[#allocation2 + $0x5f8] sm:$0xff]
    %v297 = vld [vmem:[#allocation2 + $0x600] sm:$0xff]
    %v298 = vld [vmem:[#allocation2 + $0x608] sm:$0xff]
    %v299 = vld [vmem:[#allocation2 + $0x610] sm:$0xff]
    %v300 = vld [vmem:[#allocation2 + $0x618] sm:$0xff]
    %v301 = vld [vmem:[#allocation2 + $0x620] sm:$0xff]
    %v302 = vld [vmem:[#allocation2 + $0x628] sm:$0xff]
    %v303 = vld [vmem:[#allocation2 + $0x630] sm:$0xff]
    %v304 = vld [vmem:[#allocation2 + $0x638] sm:$0xff]
    %v305 = vld [vmem:[#allocation2 + $0x640] sm:$0xff]
    %v306 = vld [vmem:[#allocation2 + $0x648] sm:$0xff]
    %v307 = vld [vmem:[#allocation2 + $0x650] sm:$0xff]
    %v308 = vld [vmem:[#allocation2 + $0x658] sm:$0xff]
    %v309 = vld [vmem:[#allocation2 + $0x660] sm:$0xff]
    %v310 = vld [vmem:[#allocation2 + $0x668] sm:$0xff]
    %v311 = vld [vmem:[#allocation2 + $0x670] sm:$0xff]
    %v312 = vld [vmem:[#allocation2 + $0x678] sm:$0xff]
    %v313 = vld [vmem:[#allocation2 + $0x680] sm:$0xff]
    %v314 = vld [vmem:[#allocation2 + $0x688] sm:$0xff]
    %v315 = vld [vmem:[#allocation2 + $0x690] sm:$0xff]
    %v316 = vld [vmem:[#allocation2 + $0x698] sm:$0xff]
    %v317 = vld [vmem:[#allocation2 + $0x6a0] sm:$0xff]
    %v318 = vld [vmem:[#allocation2 + $0x6a8] sm:$0xff]
    %v319 = vld [vmem:[#allocation2 + $0x6b0] sm:$0xff]
    %v320 = vld [vmem:[#allocation2 + $0x6b8] sm:$0xff]
    %v321 = vld [vmem:[#allocation2 + $0x6c0] sm:$0xff]
    %v322 = vld [vmem:[#allocation2 + $0x6c8] sm:$0xff]
    %v323 = vld [vmem:[#allocation2 + $0x6d0] sm:$0xff]
    %v324 = vld [vmem:[#allocation2 + $0x6d8] sm:$0xff]
    %v325 = vld [vmem:[#allocation2 + $0x6e0] sm:$0xff]
    %v326 = vld [vmem:[#allocation2 + $0x6e8] sm:$0xff]
    %v327 = vld [vmem:[#allocation2 + $0x6f0] sm:$0xff]
    %v328 = vld [vmem:[#allocation2 + $0x6f8] sm:$0xff]
    %v329 = vld [vmem:[#allocation2 + $0x700] sm:$0xff]
    %v330 = vld [vmem:[#allocation2 + $0x708] sm:$0xff]
    %v331 = vld [vmem:[#allocation2 + $0x710] sm:$0xff]
    %v332 = vld [vmem:[#allocation2 + $0x718] sm:$0xff]
    %v333 = vld [vmem:[#allocation2 + $0x720] sm:$0xff]
    %v334 = vld [vmem:[#allocation2 + $0x728] sm:$0xff]
    %v335 = vld [vmem:[#allocation2 + $0x730] sm:$0xff]
    %v336 = vld [vmem:[#allocation2 + $0x738] sm:$0xff]
    %v337 = vld [vmem:[#allocation2 + $0x740] sm:$0xff]
    %v338 = vld [vmem:[#allocation2 + $0x748] sm:$0xff]
    %v339 = vld [vmem:[#allocation2 + $0x750] sm:$0xff]
    %v340 = vld [vmem:[#allocation2 + $0x758] sm:$0xff]
    %v341 = vld [vmem:[#allocation2 + $0x760] sm:$0xff]
    %v342 = vld [vmem:[#allocation2 + $0x768] sm:$0xff]
    %v343 = vld [vmem:[#allocation2 + $0x770] sm:$0xff]
    %v344 = vld [vmem:[#allocation2 + $0x778] sm:$0xff]
    %v345 = vld [vmem:[#allocation2 + $0x780] sm:$0xff]
    %v346 = vld [vmem:[#allocation2 + $0x788] sm:$0xff]
    %v347 = vld [vmem:[#allocation2 + $0x790] sm:$0xff]
    %v348 = vld [vmem:[#allocation2 + $0x798] sm:$0xff]
    %v349 = vld [vmem:[#allocation2 + $0x7a0] sm:$0xff]
    %v350 = vld [vmem:[#allocation2 + $0x7a8] sm:$0xff]
    %v351 = vld [vmem:[#allocation2 + $0x7b0] sm:$0xff]
    %v352 = vld [vmem:[#allocation2 + $0x7b8] sm:$0xff]
    %v353 = vld [vmem:[#allocation2 + $0x7c0] sm:$0xff]
    %v354 = vld [vmem:[#allocation2 + $0x7c8] sm:$0xff]
    %v355 = vld [vmem:[#allocation2 + $0x7d0] sm:$0xff]
    %v356 = vld [vmem:[#allocation2 + $0x7d8] sm:$0xff]
    %v357 = vld [vmem:[#allocation2 + $0x7e0] sm:$0xff]
    %v358 = vld [vmem:[#allocation2 + $0x7e8] sm:$0xff]
    %v359 = vld [vmem:[#allocation2 + $0x7f0] sm:$0xff]
    %v360 = vld [vmem:[#allocation2 + $0x7f8] sm:$0xff]
    %v363 = vunpack.c.l.s4 1983009808
    %v364 = vunpack.c.0.s8 %v363
    %v365 = vlaneseq
    %v366 = vshrl.u32 %v365, 7
    %v367 = vsub.s32 %v364, %v366
    %v368 = vrot.slane %v104, %v367
    %v369 = vcombine.high %v368, %v368
    %372 = vmatprep.subr.mxu0 %v106
    %373 = vmatpush1.msra.mxu0 %v105
    %374 = vmatprep.subr.mxu0 %v114
    %375 = vmatpush1.msra.mxu0 %v113
    %376 = vmatprep.subr.mxu0 %v122
    %377 = vmatpush1.msra.mxu0 %v121
    %378 = vmatprep.subr.mxu0 %v130
    %379 = vmatpush1.msra.mxu0 %v129
    %380 = vmatprep.subr.mxu0 %v138
    %381 = vmatpush1.msra.mxu0 %v137
    %382 = vmatprep.subr.mxu0 %v146
    %383 = vmatpush1.msra.mxu0 %v145
    %384 = vmatprep.subr.mxu0 %v154
    %385 = vmatpush1.msra.mxu0 %v153
    %386 = vmatprep.subr.mxu0 %v162
    %387 = vmatpush1.msra.mxu0 %v161
    %388 = vmatprep.subr.mxu0 %v170
    %389 = vmatpush1.msra.mxu0 %v169
    %390 = vmatprep.subr.mxu0 %v178
    %391 = vmatpush1.msra.mxu0 %v177
    %392 = vmatprep.subr.mxu0 %v186
    %393 = vmatpush1.msra.mxu0 %v185
    %394 = vmatprep.subr.mxu0 %v194
    %395 = vmatpush1.msra.mxu0 %v193
    %396 = vmatprep.subr.mxu0 %v202
    %397 = vmatpush1.msra.mxu0 %v201
    %398 = vmatprep.subr.mxu0 %v210
    %399 = vmatpush1.msra.mxu0 %v209
    %400 = vmatprep.subr.mxu0 %v218
    %401 = vmatpush1.msra.mxu0 %v217
    %402 = vmatprep.subr.mxu0 %v226
    %403 = vmatpush1.msra.mxu0 %v225
    %404 = vmatprep.subr.mxu0 %v234
    %405 = vmatpush1.msra.mxu0 %v233
    %406 = vmatprep.subr.mxu0 %v242
    %407 = vmatpush1.msra.mxu0 %v241
    %408 = vmatprep.subr.mxu0 %v250
    %409 = vmatpush1.msra.mxu0 %v249
    %410 = vmatprep.subr.mxu0 %v258
    %411 = vmatpush1.msra.mxu0 %v257
    %412 = vmatprep.subr.mxu0 %v266
    %413 = vmatpush1.msra.mxu0 %v265
    %414 = vmatprep.subr.mxu0 %v274
    %415 = vmatpush1.msra.mxu0 %v273
    %416 = vmatprep.subr.mxu0 %v282
    %417 = vmatpush1.msra.mxu0 %v281
    %418 = vmatprep.subr.mxu0 %v290
    %419 = vmatpush1.msra.mxu0 %v289
    %420 = vmatprep.subr.mxu0 %v298
    %421 = vmatpush1.msra.mxu0 %v297
    %422 = vmatprep.subr.mxu0 %v306
    %423 = vmatpush1.msra.mxu0 %v305
    %424 = vmatprep.subr.mxu0 %v314
    %425 = vmatpush1.msra.mxu0 %v313
    %426 = vmatprep.subr.mxu0 %v322
    %427 = vmatpush1.msra.mxu0 %v321
    %428 = vmatprep.subr.mxu0 %v330
    %429 = vmatpush1.msra.mxu0 %v329
    %430 = vmatprep.subr.mxu0 %v338
    %431 = vmatpush1.msra.mxu0 %v337
    %432 = vmatprep.subr.mxu0 %v346
    %433 = vmatpush1.msra.mxu0 %v345
    %434 = vmatprep.subr.mxu0 %v354
    %435 = vmatpush1.msra.mxu0 %v353
    %436 = vmatprep.mubr.f32.mxu0 %v369
    %437 = vmatmul.mubr.f32.gmra.mrb[0].mxu0 %v368
    %v438 = vpop.f32.mrb[0].mxu0
    %v439 = vadd.f32 0.0, %v438
    %v440 = vpop.f32.mrb[0].mxu0
    %v441 = vadd.f32 0.0, %v440
    %442 = vdwg.mxu0
    %443 = vmatprep.subr.mxu0 %v108
    %444 = vmatpush1.msra.mxu0 %v107
    %445 = vmatprep.subr.mxu0 %v116
    %446 = vmatpush1.msra.mxu0 %v115
    %447 = vmatprep.subr.mxu0 %v124
    %448 = vmatpush1.msra.mxu0 %v123
    %449 = vmatprep.subr.mxu0 %v132
    %450 = vmatpush1.msra.mxu0 %v131
    %451 = vmatprep.subr.mxu0 %v140
    %452 = vmatpush1.msra.mxu0 %v139
    %453 = vmatprep.subr.mxu0 %v148
    %454 = vmatpush1.msra.mxu0 %v147
    %455 = vmatprep.subr.mxu0 %v156
    %456 = vmatpush1.msra.mxu0 %v155
    %457 = vmatprep.subr.mxu0 %v164
    %458 = vmatpush1.msra.mxu0 %v163
    %459 = vmatprep.subr.mxu0 %v172
    %460 = vmatpush1.msra.mxu0 %v171
    %461 = vmatprep.subr.mxu0 %v180
    %462 = vmatpush1.msra.mxu0 %v179
    %463 = vmatprep.subr.mxu0 %v188
    %464 = vmatpush1.msra.mxu0 %v187
    %465 = vmatprep.subr.mxu0 %v196
    %466 = vmatpush1.msra.mxu0 %v195
    %467 = vmatprep.subr.mxu0 %v204
    %468 = vmatpush1.msra.mxu0 %v203
    %469 = vmatprep.subr.mxu0 %v212
    %470 = vmatpush1.msra.mxu0 %v211
    %471 = vmatprep.subr.mxu0 %v220
    %472 = vmatpush1.msra.mxu0 %v219
    %473 = vmatprep.subr.mxu0 %v228
    %474 = vmatpush1.msra.mxu0 %v227
    %475 = vmatprep.subr.mxu0 %v236
    %476 = vmatpush1.msra.mxu0 %v235
    %477 = vmatprep.subr.mxu0 %v244
    %478 = vmatpush1.msra.mxu0 %v243
    %479 = vmatprep.subr.mxu0 %v252
    %480 = vmatpush1.msra.mxu0 %v251
    %481 = vmatprep.subr.mxu0 %v260
    %482 = vmatpush1.msra.mxu0 %v259
    %483 = vmatprep.subr.mxu0 %v268
    %484 = vmatpush1.msra.mxu0 %v267
    %485 = vmatprep.subr.mxu0 %v276
    %486 = vmatpush1.msra.mxu0 %v275
    %487 = vmatprep.subr.mxu0 %v284
    %488 = vmatpush1.msra.mxu0 %v283
    %489 = vmatprep.subr.mxu0 %v292
    %490 = vmatpush1.msra.mxu0 %v291
    %491 = vmatprep.subr.mxu0 %v300
    %492 = vmatpush1.msra.mxu0 %v299
    %493 = vmatprep.subr.mxu0 %v308
    %494 = vmatpush1.msra.mxu0 %v307
    %495 = vmatprep.subr.mxu0 %v316
    %496 = vmatpush1.msra.mxu0 %v315
    %497 = vmatprep.subr.mxu0 %v324
    %498 = vmatpush1.msra.mxu0 %v323
    %499 = vmatprep.subr.mxu0 %v332
    %500 = vmatpush1.msra.mxu0 %v331
    %501 = vmatprep.subr.mxu0 %v340
    %502 = vmatpush1.msra.mxu0 %v339
    %503 = vmatprep.subr.mxu0 %v348
    %504 = vmatpush1.msra.mxu0 %v347
    %505 = vmatprep.subr.mxu0 %v356
    %506 = vmatpush1.msra.mxu0 %v355
    %507 = vmatprep.mubr.f32.mxu0 %v369
    %508 = vmatmul.mubr.f32.gmra.mrb[0].mxu0 %v368
    %v509 = vpop.f32.mrb[0].mxu0
    %v510 = vadd.f32 0.0, %v509
    %v511 = vpop.f32.mrb[0].mxu0
    %v512 = vadd.f32 0.0, %v511
    %513 = vdwg.mxu0
    %514 = vmatprep.subr.mxu0 %v110
    %515 = vmatpush1.msra.mxu0 %v109
    %516 = vmatprep.subr.mxu0 %v118
    %517 = vmatpush1.msra.mxu0 %v117
    %518 = vmatprep.subr.mxu0 %v126
    %519 = vmatpush1.msra.mxu0 %v125
    %520 = vmatprep.subr.mxu0 %v134
    %521 = vmatpush1.msra.mxu0 %v133
    %522 = vmatprep.subr.mxu0 %v142
    %523 = vmatpush1.msra.mxu0 %v141
    %524 = vmatprep.subr.mxu0 %v150
    %525 = vmatpush1.msra.mxu0 %v149
    %526 = vmatprep.subr.mxu0 %v158
    %527 = vmatpush1.msra.mxu0 %v157
    %528 = vmatprep.subr.mxu0 %v166
    %529 = vmatpush1.msra.mxu0 %v165
    %530 = vmatprep.subr.mxu0 %v174
    %531 = vmatpush1.msra.mxu0 %v173
    %532 = vmatprep.subr.mxu0 %v182
    %533 = vmatpush1.msra.mxu0 %v181
    %534 = vmatprep.subr.mxu0 %v190
    %535 = vmatpush1.msra.mxu0 %v189
    %536 = vmatprep.subr.mxu0 %v198
    %537 = vmatpush1.msra.mxu0 %v197
    %538 = vmatprep.subr.mxu0 %v206
    %539 = vmatpush1.msra.mxu0 %v205
    %540 = vmatprep.subr.mxu0 %v214
    %541 = vmatpush1.msra.mxu0 %v213
    %542 = vmatprep.subr.mxu0 %v222
    %543 = vmatpush1.msra.mxu0 %v221
    %544 = vmatprep.subr.mxu0 %v230
    %545 = vmatpush1.msra.mxu0 %v229
    %546 = vmatprep.subr.mxu0 %v238
    %547 = vmatpush1.msra.mxu0 %v237
    %548 = vmatprep.subr.mxu0 %v246
    %549 = vmatpush1.msra.mxu0 %v245
    %550 = vmatprep.subr.mxu0 %v254
    %551 = vmatpush1.msra.mxu0 %v253
    %552 = vmatprep.subr.mxu0 %v262
    %553 = vmatpush1.msra.mxu0 %v261
    %554 = vmatprep.subr.mxu0 %v270
    %555 = vmatpush1.msra.mxu0 %v269
    %556 = vmatprep.subr.mxu0 %v278
    %557 = vmatpush1.msra.mxu0 %v277
    %558 = vmatprep.subr.mxu0 %v286
    %559 = vmatpush1.msra.mxu0 %v285
    %560 = vmatprep.subr.mxu0 %v294
    %561 = vmatpush1.msra.mxu0 %v293
    %562 = vmatprep.subr.mxu0 %v302
    %563 = vmatpush1.msra.mxu0 %v301
    %564 = vmatprep.subr.mxu0 %v310
    %565 = vmatpush1.msra.mxu0 %v309
    %566 = vmatprep.subr.mxu0 %v318
    %567 = vmatpush1.msra.mxu0 %v317
    %568 = vmatprep.subr.mxu0 %v326
    %569 = vmatpush1.msra.mxu0 %v325
    %570 = vmatprep.subr.mxu0 %v334
    %571 = vmatpush1.msra.mxu0 %v333
    %572 = vmatprep.subr.mxu0 %v342
    %573 = vmatpush1.msra.mxu0 %v341
    %574 = vmatprep.subr.mxu0 %v350
    %575 = vmatpush1.msra.mxu0 %v349
    %576 = vmatprep.subr.mxu0 %v358
    %577 = vmatpush1.msra.mxu0 %v357
    %578 = vmatprep.mubr.f32.mxu0 %v369
    %579 = vmatmul.mubr.f32.gmra.mrb[0].mxu0 %v368
    %v580 = vpop.f32.mrb[0].mxu0
    %v581 = vadd.f32 0.0, %v580
    %v582 = vpop.f32.mrb[0].mxu0
    %v583 = vadd.f32 0.0, %v582
    %584 = vdwg.mxu0
    %585 = vmatprep.subr.mxu0 %v112
    %586 = vmatpush1.msra.mxu0 %v111
    %587 = vmatprep.subr.mxu0 %v120
    %588 = vmatpush1.msra.mxu0 %v119
    %589 = vmatprep.subr.mxu0 %v128
    %590 = vmatpush1.msra.mxu0 %v127
    %591 = vmatprep.subr.mxu0 %v136
    %592 = vmatpush1.msra.mxu0 %v135
    %593 = vmatprep.subr.mxu0 %v144
    %594 = vmatpush1.msra.mxu0 %v143
    %595 = vmatprep.subr.mxu0 %v152
    %596 = vmatpush1.msra.mxu0 %v151
    %597 = vmatprep.subr.mxu0 %v160
    %598 = vmatpush1.msra.mxu0 %v159
    %599 = vmatprep.subr.mxu0 %v168
    %600 = vmatpush1.msra.mxu0 %v167
    %601 = vmatprep.subr.mxu0 %v176
    %602 = vmatpush1.msra.mxu0 %v175
    %603 = vmatprep.subr.mxu0 %v184
    %604 = vmatpush1.msra.mxu0 %v183
    %605 = vmatprep.subr.mxu0 %v192
    %606 = vmatpush1.msra.mxu0 %v191
    %607 = vmatprep.subr.mxu0 %v200
    %608 = vmatpush1.msra.mxu0 %v199
    %609 = vmatprep.subr.mxu0 %v208
    %610 = vmatpush1.msra.mxu0 %v207
    %611 = vmatprep.subr.mxu0 %v216
    %612 = vmatpush1.msra.mxu0 %v215
    %613 = vmatprep.subr.mxu0 %v224
    %614 = vmatpush1.msra.mxu0 %v223
    %615 = vmatprep.subr.mxu0 %v232
    %616 = vmatpush1.msra.mxu0 %v231
    %617 = vmatprep.subr.mxu0 %v240
    %618 = vmatpush1.msra.mxu0 %v239
    %619 = vmatprep.subr.mxu0 %v248
    %620 = vmatpush1.msra.mxu0 %v247
    %621 = vmatprep.subr.mxu0 %v256
    %622 = vmatpush1.msra.mxu0 %v255
    %623 = vmatprep.subr.mxu0 %v264
    %624 = vmatpush1.msra.mxu0 %v263
    %625 = vmatprep.subr.mxu0 %v272
    %626 = vmatpush1.msra.mxu0 %v271
    %627 = vmatprep.subr.mxu0 %v280
    %628 = vmatpush1.msra.mxu0 %v279
    %629 = vmatprep.subr.mxu0 %v288
    %630 = vmatpush1.msra.mxu0 %v287
    %631 = vmatprep.subr.mxu0 %v296
    %632 = vmatpush1.msra.mxu0 %v295
    %633 = vmatprep.subr.mxu0 %v304
    %634 = vmatpush1.msra.mxu0 %v303
    %635 = vmatprep.subr.mxu0 %v312
    %636 = vmatpush1.msra.mxu0 %v311
    %637 = vmatprep.subr.mxu0 %v320
    %638 = vmatpush1.msra.mxu0 %v319
    %639 = vmatprep.subr.mxu0 %v328
    %640 = vmatpush1.msra.mxu0 %v327
    %641 = vmatprep.subr.mxu0 %v336
    %642 = vmatpush1.msra.mxu0 %v335
    %643 = vmatprep.subr.mxu0 %v344
    %644 = vmatpush1.msra.mxu0 %v343
    %645 = vmatprep.subr.mxu0 %v352
    %646 = vmatpush1.msra.mxu0 %v351
    %647 = vmatprep.subr.mxu0 %v360
    %648 = vmatpush1.msra.mxu0 %v359
    %649 = vmatprep.mubr.f32.mxu0 %v369
    %650 = vmatmul.mubr.f32.gmra.mrb[0].mxu0 %v368
    %v651 = vpop.f32.mrb[0].mxu0
    %v652 = vadd.f32 0.0, %v651
    %v653 = vpop.f32.mrb[0].mxu0
    %v654 = vadd.f32 0.0, %v653
    %655 = vdwg.mxu0
    %v657 = vrot.slane %v439, 6
    %658 = vrot.lane.b32.xlu0 %v657, 64
    %v659 = vpop.permute.xlu0 %658
    %v662 = vrot.slane %v441, 4
    %v664 = vrot.slane %v441, 2
    %665 = vrot.lane.b32.xlu0 %v664, 64
    %v666 = vpop.permute.xlu0 %665
    %v669 = vrot.slane %v510, 6
    %670 = vrot.lane.b32.xlu0 %v669, 64
    %v671 = vpop.permute.xlu0 %670
    %v674 = vrot.slane %v512, 4
    %v676 = vrot.slane %v512, 2
    %677 = vrot.lane.b32.xlu0 %v676, 64
    %v678 = vpop.permute.xlu0 %677
    %v681 = vrot.slane %v581, 6
    %682 = vrot.lane.b32.xlu0 %v681, 64
    %v683 = vpop.permute.xlu0 %682
    %v686 = vrot.slane %v583, 4
    %v688 = vrot.slane %v583, 2
    %689 = vrot.lane.b32.xlu0 %v688, 64
    %v690 = vpop.permute.xlu0 %689
    %v693 = vrot.slane %v652, 6
    %694 = vrot.lane.b32.xlu0 %v693, 64
    %v695 = vpop.permute.xlu0 %694
    %v698 = vrot.slane %v654, 4
    %v700 = vrot.slane %v654, 2
    %701 = vrot.lane.b32.xlu0 %v700, 64
    %v702 = vpop.permute.xlu0 %701
    %vm704 = vcmask 1041408
    %v705 = vsel %vm704, %v439, %v659
    %vm706 = vcmask 1043456
    %v707 = vsel %vm706, %v705, %v662
    %vm708 = vcmask 1045504
    %v709 = vsel %vm708, %v707, %v666
    %v710 = vsel %vm704, %v510, %v671
    %v711 = vsel %vm706, %v710, %v674
    %v712 = vsel %vm708, %v711, %v678
    %v713 = vsel %vm704, %v581, %v683
    %v714 = vsel %vm706, %v713, %v686
    %v715 = vsel %vm708, %v714, %v690
    %v716 = vsel %vm704, %v652, %v695
    %v717 = vsel %vm706, %v716, %v698
    %v718 = vsel %vm708, %v717, %v702
    %v719 = vld [vmem:[%s2] sm:$0xff]
    %v720 = vld [vmem:[%s2 + $0x8] sm:$0xff]
    %v721 = vld [vmem:[%s3] sm:$0xff]
    %v722 = vld [vmem:[%s3 + $0x8] sm:$0xff]
    %724 = vset.pattern.permute.xlu0 0
    %725 = vperm.xlu0 %724, %v721
    %v726 = vpop.permute.xlu0 %725
    %729 = vset.pattern.permute.xlu0 0
    %730 = vperm.xlu0 %729, %v722
    %v731 = vpop.permute.xlu0 %730
    %vm733 = vcmask 261120
    %v735 = vsel %vm733, %v719, 0
    %v738 = vsel %vm733, %v720, 0
    %740 = vmatprep.subr.mxu0 0.0
    %741 = vmatpush1.msra.mxu0 %v709
    %742 = vmatprep.subr.mxu0 0.0
    %743 = vmatpush1.msra.mxu0 %v712
    %744 = vmatprep.subr.mxu0 0.0
    %745 = vmatpush1.msra.mxu0 %v715
    %746 = vmatprep.subr.mxu0 0.0
    %747 = vmatpush1.msra.mxu0 %v718
    %748 = vmatprep.subr.mxu0 0.0
    %749 = vmatpush1.msra.mxu0 0.0
    %750 = vmatprep.subr.mxu0 0.0
    %751 = vmatpush1.msra.mxu0 0.0
    %752 = vmatprep.subr.mxu0 0.0
    %753 = vmatpush1.msra.mxu0 0.0
    %754 = vmatprep.subr.mxu0 0.0
    %755 = vmatpush1.msra.mxu0 0.0
    %756 = vmatprep.subr.mxu0 0.0
    %757 = vmatpush1.msra.mxu0 0.0
    %758 = vmatprep.subr.mxu0 0.0
    %759 = vmatpush1.msra.mxu0 0.0
    %760 = vmatprep.subr.mxu0 0.0
    %761 = vmatpush1.msra.mxu0 0.0
    %762 = vmatprep.subr.mxu0 0.0
    %763 = vmatpush1.msra.mxu0 0.0
    %764 = vmatprep.subr.mxu0 0.0
    %765 = vmatpush1.msra.mxu0 0.0
    %766 = vmatprep.subr.mxu0 0.0
    %767 = vmatpush1.msra.mxu0 0.0
    %768 = vmatprep.subr.mxu0 0.0
    %769 = vmatpush1.msra.mxu0 0.0
    %770 = vmatprep.subr.mxu0 0.0
    %771 = vmatpush1.msra.mxu0 0.0
    %772 = vmatprep.subr.mxu0 0.0
    %773 = vmatpush1.msra.mxu0 0.0
    %774 = vmatprep.subr.mxu0 0.0
    %775 = vmatpush1.msra.mxu0 0.0
    %776 = vmatprep.subr.mxu0 0.0
    %777 = vmatpush1.msra.mxu0 0.0
    %778 = vmatprep.subr.mxu0 0.0
    %779 = vmatpush1.msra.mxu0 0.0
    %780 = vmatprep.subr.mxu0 0.0
    %781 = vmatpush1.msra.mxu0 0.0
    %782 = vmatprep.subr.mxu0 0.0
    %783 = vmatpush1.msra.mxu0 0.0
    %784 = vmatprep.subr.mxu0 0.0
    %785 = vmatpush1.msra.mxu0 0.0
    %786 = vmatprep.subr.mxu0 0.0
    %787 = vmatpush1.msra.mxu0 0.0
    %788 = vmatprep.subr.mxu0 0.0
    %789 = vmatpush1.msra.mxu0 0.0
    %790 = vmatprep.subr.mxu0 0.0
    %791 = vmatpush1.msra.mxu0 0.0
    %792 = vmatprep.subr.mxu0 0.0
    %793 = vmatpush1.msra.mxu0 0.0
    %794 = vmatprep.subr.mxu0 0.0
    %795 = vmatpush1.msra.mxu0 0.0
    %796 = vmatprep.subr.mxu0 0.0
    %797 = vmatpush1.msra.mxu0 0.0
    %798 = vmatprep.subr.mxu0 0.0
    %799 = vmatpush1.msra.mxu0 0.0
    %800 = vmatprep.subr.mxu0 0.0
    %801 = vmatpush1.msra.mxu0 0.0
    %802 = vmatprep.subr.mxu0 0.0
    %803 = vmatpush1.msra.mxu0 0.0
    %804 = vmatprep.mubr.f32.mxu0 0.0
    %805 = vmatmul.mubr.f32.gmra.mrb[0].mxu0 %v735
    %v806 = vpop.f32.mrb[0].mxu0
    %v807 = vadd.f32 %v726, %v806
    %v808 = vpop.f32.mrb[0].mxu0
    %809 = vmatprep.mubr.f32.mxu0 0.0
    %810 = vmatmul.mubr.f32.gmra.mrb[0].mxu0 %v738
    %v811 = vpop.f32.mrb[0].mxu0
    %v812 = vadd.f32 %v731, %v811
    %v813 = vpop.f32.mrb[0].mxu0
    %814 = vdwg.mxu0
    %v815 = vmax.f32 %v807, 0.0
    %v816 = vmax.f32 %v812, 0.0
    %v817 = vld [vmem:[%s4] sm:$0xff]
    %v818 = vld [vmem:[%s4 + $0x8] sm:$0xff]
    %v819 = vld [vmem:[%s4 + $0x10] sm:$0xff]
    %v820 = vld [vmem:[%s4 + $0x18] sm:$0xff]
    %v821 = vld [vmem:[%s4 + $0x20] sm:$0xff]
    %v822 = vld [vmem:[%s4 + $0x28] sm:$0xff]
    %v823 = vld [vmem:[%s4 + $0x30] sm:$0xff]
    %v824 = vld [vmem:[%s4 + $0x38] sm:$0xff]
    %v825 = vld [vmem:[%s4 + $0x40] sm:$0xff]
    %v826 = vld [vmem:[%s4 + $0x48] sm:$0xff]
    %v827 = vld [vmem:[%s4 + $0x50] sm:$0xff]
    %v828 = vld [vmem:[%s4 + $0x58] sm:$0xff]
    %v829 = vld [vmem:[%s4 + $0x60] sm:$0xff]
    %v830 = vld [vmem:[%s4 + $0x68] sm:$0xff]
    %v831 = vld [vmem:[%s4 + $0x70] sm:$0xff]
    %v832 = vld [vmem:[%s4 + $0x78] sm:$0xff]
    %vm833 = vcmask 523264
    %v835 = vsel %vm833, %v815, 0
    %v838 = vsel %vm833, %v816, 0
    %840 = vmatprep.subr.mxu0 %v818
    %841 = vmatpush1.msra.mxu0 %v817
    %842 = vmatprep.subr.mxu0 %v820
    %843 = vmatpush1.msra.mxu0 %v819
    %844 = vmatprep.subr.mxu0 %v822
    %845 = vmatpush1.msra.mxu0 %v821
    %846 = vmatprep.subr.mxu0 %v824
    %847 = vmatpush1.msra.mxu0 %v823
    %848 = vmatprep.subr.mxu0 %v826
    %849 = vmatpush1.msra.mxu0 %v825
    %850 = vmatprep.subr.mxu0 %v828
    %851 = vmatpush1.msra.mxu0 %v827
    %852 = vmatprep.subr.mxu0 %v830
    %853 = vmatpush1.msra.mxu0 %v829
    %854 = vmatprep.subr.mxu0 %v832
    %855 = vmatpush1.msra.mxu0 %v831
    %856 = vmatprep.subr.mxu0 0.0
    %857 = vmatpush1.msra.mxu0 0.0
    %858 = vmatprep.subr.mxu0 0.0
    %859 = vmatpush1.msra.mxu0 0.0
    %860 = vmatprep.subr.mxu0 0.0
    %861 = vmatpush1.msra.mxu0 0.0
    %862 = vmatprep.subr.mxu0 0.0
    %863 = vmatpush1.msra.mxu0 0.0
    %864 = vmatprep.subr.mxu0 0.0
    %865 = vmatpush1.msra.mxu0 0.0
    %866 = vmatprep.subr.mxu0 0.0
    %867 = vmatpush1.msra.mxu0 0.0
    %868 = vmatprep.subr.mxu0 0.0
    %869 = vmatpush1.msra.mxu0 0.0
    %870 = vmatprep.subr.mxu0 0.0
    %871 = vmatpush1.msra.mxu0 0.0
    %872 = vmatprep.subr.mxu0 0.0
    %873 = vmatpush1.msra.mxu0 0.0
    %874 = vmatprep.subr.mxu0 0.0
    %875 = vmatpush1.msra.mxu0 0.0
    %876 = vmatprep.subr.mxu0 0.0
    %877 = vmatpush1.msra.mxu0 0.0
    %878 = vmatprep.subr.mxu0 0.0
    %879 = vmatpush1.msra.mxu0 0.0
    %880 = vmatprep.subr.mxu0 0.0
    %881 = vmatpush1.msra.mxu0 0.0
    %882 = vmatprep.subr.mxu0 0.0
    %883 = vmatpush1.msra.mxu0 0.0
    %884 = vmatprep.subr.mxu0 0.0
    %885 = vmatpush1.msra.mxu0 0.0
    %886 = vmatprep.subr.mxu0 0.0
    %887 = vmatpush1.msra.mxu0 0.0
    %888 = vmatprep.subr.mxu0 0.0
    %889 = vmatpush1.msra.mxu0 0.0
    %890 = vmatprep.subr.mxu0 0.0
    %891 = vmatpush1.msra.mxu0 0.0
    %892 = vmatprep.subr.mxu0 0.0
    %893 = vmatpush1.msra.mxu0 0.0
    %894 = vmatprep.subr.mxu0 0.0
    %895 = vmatpush1.msra.mxu0 0.0
    %896 = vmatprep.subr.mxu0 0.0
    %897 = vmatpush1.msra.mxu0 0.0
    %898 = vmatprep.subr.mxu0 0.0
    %899 = vmatpush1.msra.mxu0 0.0
    %900 = vmatprep.subr.mxu0 0.0
    %901 = vmatpush1.msra.mxu0 0.0
    %902 = vmatprep.subr.mxu0 0.0
    %903 = vmatpush1.msra.mxu0 0.0
    %904 = vmatprep.mubr.f32.mxu0 0.0
    %905 = vmatmul.mubr.f32.gmra.mrb[0].mxu0 %v835
    %v906 = vpop.f32.mrb[0].mxu0
    %v907 = vadd.f32 0.0, %v906
    %v908 = vpop.f32.mrb[0].mxu0
    %v909 = vadd.f32 0.0, %v908
    %910 = vmatprep.mubr.f32.mxu0 0.0
    %911 = vmatmul.mubr.f32.gmra.mrb[0].mxu0 %v838
    %v912 = vpop.f32.mrb[0].mxu0
    %v913 = vadd.f32 0.0, %v912
    %v914 = vpop.f32.mrb[0].mxu0
    %v915 = vadd.f32 0.0, %v914
    %916 = vdwg.mxu0
    %919 = vrot.lane.b32.xlu0 %v907, 112
    %v920 = vpop.permute.xlu0 %919
    %921 = vrot.lane.b32.xlu0 %v913, 112
    %v922 = vpop.permute.xlu0 %921
    %925 = vrot.lane.b32.xlu0 %v907, 96
    %v926 = vpop.permute.xlu0 %925
    %927 = vrot.lane.b32.xlu0 %v913, 96
    %v928 = vpop.permute.xlu0 %927
    %931 = vrot.lane.b32.xlu0 %v907, 80
    %v932 = vpop.permute.xlu0 %931
    %933 = vrot.lane.b32.xlu0 %v913, 80
    %v934 = vpop.permute.xlu0 %933
    %937 = vrot.lane.b32.xlu0 %v907, 64
    %v938 = vpop.permute.xlu0 %937
    %939 = vrot.lane.b32.xlu0 %v913, 64
    %v940 = vpop.permute.xlu0 %939
    %943 = vrot.lane.b32.xlu0 %v907, 48
    %v944 = vpop.permute.xlu0 %943
    %945 = vrot.lane.b32.xlu0 %v913, 48
    %v946 = vpop.permute.xlu0 %945
    %949 = vrot.lane.b32.xlu0 %v907, 32
    %v950 = vpop.permute.xlu0 %949
    %951 = vrot.lane.b32.xlu0 %v913, 32
    %v952 = vpop.permute.xlu0 %951
    %955 = vrot.lane.b32.xlu0 %v907, 16
    %v956 = vpop.permute.xlu0 %955
    %957 = vrot.lane.b32.xlu0 %v913, 16
    %v958 = vpop.permute.xlu0 %957
    %963 = vrot.lane.b32.xlu0 %v909, 112
    %v964 = vpop.permute.xlu0 %963
    %965 = vrot.lane.b32.xlu0 %v915, 112
    %v966 = vpop.permute.xlu0 %965
    %969 = vrot.lane.b32.xlu0 %v909, 96
    %v970 = vpop.permute.xlu0 %969
    %971 = vrot.lane.b32.xlu0 %v915, 96
    %v972 = vpop.permute.xlu0 %971
    %975 = vrot.lane.b32.xlu0 %v909, 80
    %v976 = vpop.permute.xlu0 %975
    %977 = vrot.lane.b32.xlu0 %v915, 80
    %v978 = vpop.permute.xlu0 %977
    %981 = vrot.lane.b32.xlu0 %v909, 64
    %v982 = vpop.permute.xlu0 %981
    %983 = vrot.lane.b32.xlu0 %v915, 64
    %v984 = vpop.permute.xlu0 %983
    %987 = vrot.lane.b32.xlu0 %v909, 48
    %v988 = vpop.permute.xlu0 %987
    %989 = vrot.lane.b32.xlu0 %v915, 48
    %v990 = vpop.permute.xlu0 %989
    %993 = vrot.lane.b32.xlu0 %v909, 32
    %v994 = vpop.permute.xlu0 %993
    %995 = vrot.lane.b32.xlu0 %v915, 32
    %v996 = vpop.permute.xlu0 %995
    %999 = vrot.lane.b32.xlu0 %v909, 16
    %v1000 = vpop.permute.xlu0 %999
    %1001 = vrot.lane.b32.xlu0 %v915, 16
    %v1002 = vpop.permute.xlu0 %1001
    %v1005 = vld [vmem:[%s5] sm:$0xff]
    %v1006 = vld [vmem:[%s5 + $0x8] sm:$0xff]
    %v1007 = vld [vmem:[%s5 + $0x10] sm:$0xff]
    %v1008 = vld [vmem:[%s5 + $0x18] sm:$0xff]
    %v1009 = vld [vmem:[%s5 + $0x20] sm:$0xff]
    %v1010 = vld [vmem:[%s5 + $0x28] sm:$0xff]
    %v1011 = vld [vmem:[%s5 + $0x30] sm:$0xff]
    %v1012 = vld [vmem:[%s5 + $0x38] sm:$0xff]
    %v1013 = vld [vmem:[%s6] sm:$0xff]
    %v1014 = vld [vmem:[%s6 + $0x8] sm:$0xff]
    %v1015 = vld [vmem:[%s6 + $0x10] sm:$0xff]
    %v1016 = vld [vmem:[%s6 + $0x18] sm:$0xff]
    %1018 = vset.pattern.permute.xlu0 0
    %1019 = vperm.xlu0 %1018, %v1013
    %v1020 = vpop.permute.xlu0 %1019
    %1023 = vset.pattern.permute.xlu0 0
    %1024 = vperm.xlu0 %1023, %v1014
    %v1025 = vpop.permute.xlu0 %1024
    %1028 = vset.pattern.permute.xlu0 0
    %1029 = vperm.xlu0 %1028, %v1015
    %v1030 = vpop.permute.xlu0 %1029
    %1033 = vset.pattern.permute.xlu0 0
    %1034 = vperm.xlu0 %1033, %v1016
    %v1035 = vpop.permute.xlu0 %1034
    %1037 = vmatprep.subr.mxu0 0.0
    %1038 = vmatpush1.msra.mxu0 %v907
    %1039 = vmatprep.subr.mxu0 0.0
    %1040 = vmatpush1.msra.mxu0 %v913
    %1041 = vmatprep.subr.mxu0 0.0
    %1042 = vmatpush1.msra.mxu0 %v920
    %1043 = vmatprep.subr.mxu0 0.0
    %1044 = vmatpush1.msra.mxu0 %v922
    %1045 = vmatprep.subr.mxu0 0.0
    %1046 = vmatpush1.msra.mxu0 %v926
    %1047 = vmatprep.subr.mxu0 0.0
    %1048 = vmatpush1.msra.mxu0 %v928
    %1049 = vmatprep.subr.mxu0 0.0
    %1050 = vmatpush1.msra.mxu0 %v932
    %1051 = vmatprep.subr.mxu0 0.0
    %1052 = vmatpush1.msra.mxu0 %v934
    %1053 = vmatprep.subr.mxu0 0.0
    %1054 = vmatpush1.msra.mxu0 %v938
    %1055 = vmatprep.subr.mxu0 0.0
    %1056 = vmatpush1.msra.mxu0 %v940
    %1057 = vmatprep.subr.mxu0 0.0
    %1058 = vmatpush1.msra.mxu0 %v944
    %1059 = vmatprep.subr.mxu0 0.0
    %1060 = vmatpush1.msra.mxu0 %v946
    %1061 = vmatprep.subr.mxu0 0.0
    %1062 = vmatpush1.msra.mxu0 %v950
    %1063 = vmatprep.subr.mxu0 0.0
    %1064 = vmatpush1.msra.mxu0 %v952
    %1065 = vmatprep.subr.mxu0 0.0
    %1066 = vmatpush1.msra.mxu0 %v956
    %1067 = vmatprep.subr.mxu0 0.0
    %1068 = vmatpush1.msra.mxu0 %v958
    %1069 = vmatprep.subr.mxu0 0.0
    %1070 = vmatpush1.msra.mxu0 %v909
    %1071 = vmatprep.subr.mxu0 0.0
    %1072 = vmatpush1.msra.mxu0 %v915
    %1073 = vmatprep.subr.mxu0 0.0
    %1074 = vmatpush1.msra.mxu0 %v964
    %1075 = vmatprep.subr.mxu0 0.0
    %1076 = vmatpush1.msra.mxu0 %v966
    %1077 = vmatprep.subr.mxu0 0.0
    %1078 = vmatpush1.msra.mxu0 %v970
    %1079 = vmatprep.subr.mxu0 0.0
    %1080 = vmatpush1.msra.mxu0 %v972
    %1081 = vmatprep.subr.mxu0 0.0
    %1082 = vmatpush1.msra.mxu0 %v976
    %1083 = vmatprep.subr.mxu0 0.0
    %1084 = vmatpush1.msra.mxu0 %v978
    %1085 = vmatprep.subr.mxu0 0.0
    %1086 = vmatpush1.msra.mxu0 %v982
    %1087 = vmatprep.subr.mxu0 0.0
    %1088 = vmatpush1.msra.mxu0 %v984
    %1089 = vmatprep.subr.mxu0 0.0
    %1090 = vmatpush1.msra.mxu0 %v988
    %1091 = vmatprep.subr.mxu0 0.0
    %1092 = vmatpush1.msra.mxu0 %v990
    %1093 = vmatprep.subr.mxu0 0.0
    %1094 = vmatpush1.msra.mxu0 %v994
    %1095 = vmatprep.subr.mxu0 0.0
    %1096 = vmatpush1.msra.mxu0 %v996
    %1097 = vmatprep.subr.mxu0 0.0
    %1098 = vmatpush1.msra.mxu0 %v1000
    %1099 = vmatprep.subr.mxu0 0.0
    %1100 = vmatpush1.msra.mxu0 %v1002
    %1101 = vmatprep.mubr.f32.mxu0 %v1006
    %1102 = vmatmul.mubr.f32.gmra.mrb[0].mxu0 %v1005
    %v1103 = vpop.f32.mrb[0].mxu0
    %v1104 = vadd.f32 %v1020, %v1103
    %v1105 = vpop.f32.mrb[0].mxu0
    %1106 = vmatprep.mubr.f32.mxu0 %v1008
    %1107 = vmatmul.mubr.f32.gmra.mrb[0].mxu0 %v1007
    %v1108 = vpop.f32.mrb[0].mxu0
    %v1109 = vadd.f32 %v1025, %v1108
    %v1110 = vpop.f32.mrb[0].mxu0
    %1111 = vmatprep.mubr.f32.mxu0 %v1010
    %1112 = vmatmul.mubr.f32.gmra.mrb[0].mxu0 %v1009
    %v1113 = vpop.f32.mrb[0].mxu0
    %v1114 = vadd.f32 %v1030, %v1113
    %v1115 = vpop.f32.mrb[0].mxu0
    %1116 = vmatprep.mubr.f32.mxu0 %v1012
    %1117 = vmatmul.mubr.f32.gmra.mrb[0].mxu0 %v1011
    %v1118 = vpop.f32.mrb[0].mxu0
    %v1119 = vadd.f32 %v1035, %v1118
    %v1120 = vpop.f32.mrb[0].mxu0
    %1121 = vdwg.mxu0
    %v1122 = vmax.f32 %v1104, 0.0
    %v1123 = vmax.f32 %v1109, 0.0
    %v1124 = vmax.f32 %v1114, 0.0
    %v1125 = vmax.f32 %v1119, 0.0
    %v1127 = vrot.slane %v1122, 1
    %1128 = vrot.lane.b32.xlu0 %v1127, 16
    %v1129 = vpop.permute.xlu0 %1128
    %v1131 = vrot.slane %v1122, 2
    %1132 = vrot.lane.b32.xlu0 %v1131, 32
    %v1133 = vpop.permute.xlu0 %1132
    %v1135 = vrot.slane %v1122, 3
    %1136 = vrot.lane.b32.xlu0 %v1135, 48
    %v1137 = vpop.permute.xlu0 %1136
    %v1139 = vrot.slane %v1122, 4
    %1140 = vrot.lane.b32.xlu0 %v1139, 64
    %v1141 = vpop.permute.xlu0 %1140
    %v1143 = vrot.slane %v1122, 5
    %1144 = vrot.lane.b32.xlu0 %v1143, 80
    %v1145 = vpop.permute.xlu0 %1144
    %v1147 = vrot.slane %v1122, 6
    %1148 = vrot.lane.b32.xlu0 %v1147, 96
    %v1149 = vpop.permute.xlu0 %1148
    %v1151 = vrot.slane %v1122, 7
    %1152 = vrot.lane.b32.xlu0 %v1151, 112
    %v1153 = vpop.permute.xlu0 %1152
    %v1156 = vrot.slane %v1123, 1
    %1157 = vrot.lane.b32.xlu0 %v1156, 16
    %v1158 = vpop.permute.xlu0 %1157
    %v1160 = vrot.slane %v1123, 2
    %1161 = vrot.lane.b32.xlu0 %v1160, 32
    %v1162 = vpop.permute.xlu0 %1161
    %v1164 = vrot.slane %v1123, 3
    %1165 = vrot.lane.b32.xlu0 %v1164, 48
    %v1166 = vpop.permute.xlu0 %1165
    %v1168 = vrot.slane %v1123, 4
    %1169 = vrot.lane.b32.xlu0 %v1168, 64
    %v1170 = vpop.permute.xlu0 %1169
    %v1172 = vrot.slane %v1123, 5
    %1173 = vrot.lane.b32.xlu0 %v1172, 80
    %v1174 = vpop.permute.xlu0 %1173
    %v1176 = vrot.slane %v1123, 6
    %1177 = vrot.lane.b32.xlu0 %v1176, 96
    %v1178 = vpop.permute.xlu0 %1177
    %v1180 = vrot.slane %v1123, 7
    %1181 = vrot.lane.b32.xlu0 %v1180, 112
    %v1182 = vpop.permute.xlu0 %1181
    %vm1184 = vcmask 130048
    %v1185 = vsel %vm1184, %v1122, %v1129
    %v1186 = vsel %vm733, %v1185, %v1133
    %vm1187 = vcmask 392192
    %v1188 = vsel %vm1187, %v1186, %v1137
    %v1189 = vsel %vm833, %v1188, %v1141
    %vm1190 = vcmask 654336
    %v1191 = vsel %vm1190, %v1189, %v1145
    %vm1192 = vcmask 785408
    %v1193 = vsel %vm1192, %v1191, %v1149
    %vm1194 = vcmask 916480
    %v1195 = vsel %vm1194, %v1193, %v1153
    %v1196 = vsel %vm1184, %v1123, %v1158
    %v1197 = vsel %vm733, %v1196, %v1162
    %v1198 = vsel %vm1187, %v1197, %v1166
    %v1199 = vsel %vm833, %v1198, %v1170
    %v1200 = vsel %vm1190, %v1199, %v1174
    %v1201 = vsel %vm1192, %v1200, %v1178
    %v1202 = vsel %vm1194, %v1201, %v1182
    %v1204 = vrot.slane %v1124, 1
    %1205 = vrot.lane.b32.xlu0 %v1204, 16
    %v1206 = vpop.permute.xlu0 %1205
    %v1208 = vrot.slane %v1124, 2
    %1209 = vrot.lane.b32.xlu0 %v1208, 32
    %v1210 = vpop.permute.xlu0 %1209
    %v1212 = vrot.slane %v1124, 3
    %1213 = vrot.lane.b32.xlu0 %v1212, 48
    %v1214 = vpop.permute.xlu0 %1213
    %v1216 = vrot.slane %v1124, 4
    %1217 = vrot.lane.b32.xlu0 %v1216, 64
    %v1218 = vpop.permute.xlu0 %1217
    %v1220 = vrot.slane %v1124, 5
    %1221 = vrot.lane.b32.xlu0 %v1220, 80
    %v1222 = vpop.permute.xlu0 %1221
    %v1224 = vrot.slane %v1124, 6
    %1225 = vrot.lane.b32.xlu0 %v1224, 96
    %v1226 = vpop.permute.xlu0 %1225
    %v1228 = vrot.slane %v1124, 7
    %1229 = vrot.lane.b32.xlu0 %v1228, 112
    %v1230 = vpop.permute.xlu0 %1229
    %v1233 = vrot.slane %v1125, 1
    %1234 = vrot.lane.b32.xlu0 %v1233, 16
    %v1235 = vpop.permute.xlu0 %1234
    %v1237 = vrot.slane %v1125, 2
    %1238 = vrot.lane.b32.xlu0 %v1237, 32
    %v1239 = vpop.permute.xlu0 %1238
    %v1241 = vrot.slane %v1125, 3
    %1242 = vrot.lane.b32.xlu0 %v1241, 48
    %v1243 = vpop.permute.xlu0 %1242
    %v1245 = vrot.slane %v1125, 4
    %1246 = vrot.lane.b32.xlu0 %v1245, 64
    %v1247 = vpop.permute.xlu0 %1246
    %v1249 = vrot.slane %v1125, 5
    %1250 = vrot.lane.b32.xlu0 %v1249, 80
    %v1251 = vpop.permute.xlu0 %1250
    %v1253 = vrot.slane %v1125, 6
    %1254 = vrot.lane.b32.xlu0 %v1253, 96
    %v1255 = vpop.permute.xlu0 %1254
    %v1257 = vrot.slane %v1125, 7
    %1258 = vrot.lane.b32.xlu0 %v1257, 112
    %v1259 = vpop.permute.xlu0 %1258
    %v1261 = vsel %vm1184, %v1124, %v1206
    %v1262 = vsel %vm733, %v1261, %v1210
    %v1263 = vsel %vm1187, %v1262, %v1214
    %v1264 = vsel %vm833, %v1263, %v1218
    %v1265 = vsel %vm1190, %v1264, %v1222
    %v1266 = vsel %vm1192, %v1265, %v1226
    %v1267 = vsel %vm1194, %v1266, %v1230
    %v1268 = vsel %vm1184, %v1125, %v1235
    %v1269 = vsel %vm733, %v1268, %v1239
    %v1270 = vsel %vm1187, %v1269, %v1243
    %v1271 = vsel %vm833, %v1270, %v1247
    %v1272 = vsel %vm1190, %v1271, %v1251
    %v1273 = vsel %vm1192, %v1272, %v1255
    %v1274 = vsel %vm1194, %v1273, %v1259
    %v1277 = vrot.slane %v1267, 7
    %v1278 = vrot.slane %v1274, 7
    %vm1281 = vcmask 1040384
    %v1282 = vsel %vm1281, %v1195, %v1277
    %v1283 = vsel %vm1281, %v1202, %v1278
    %v1284 = vld [vmem:[%s7] sm:$0xff]
    %v1285 = vld [vmem:[%s7 + $0x8] sm:$0xff]
    %v1286 = vld [vmem:[%s7 + $0x10] sm:$0xff]
    %v1287 = vld [vmem:[%s7 + $0x18] sm:$0xff]
    %v1288 = vld [vmem:[%s7 + $0x20] sm:$0xff]
    %v1289 = vld [vmem:[%s7 + $0x28] sm:$0xff]
    %v1290 = vld [vmem:[%s7 + $0x30] sm:$0xff]
    %v1291 = vld [vmem:[%s7 + $0x38] sm:$0xff]
    %v1292 = vld [vmem:[%s7 + $0x40] sm:$0xff]
    %v1293 = vld [vmem:[%s7 + $0x48] sm:$0xff]
    %v1294 = vld [vmem:[%s7 + $0x50] sm:$0xff]
    %v1295 = vld [vmem:[%s7 + $0x58] sm:$0xff]
    %v1296 = vld [vmem:[%s7 + $0x60] sm:$0xff]
    %v1297 = vld [vmem:[%s7 + $0x68] sm:$0xff]
    %v1298 = vld [vmem:[%s7 + $0x70] sm:$0xff]
    %v1299 = vld [vmem:[%s7 + $0x78] sm:$0xff]
    %v1300 = vld [vmem:[%s7 + $0x80] sm:$0xff]
    %v1301 = vld [vmem:[%s7 + $0x88] sm:$0xff]
    %v1302 = vld [vmem:[%s7 + $0x90] sm:$0xff]
    %v1303 = vld [vmem:[%s7 + $0x98] sm:$0xff]
    %v1304 = vld [vmem:[%s7 + $0xa0] sm:$0xff]
    %v1305 = vld [vmem:[%s7 + $0xa8] sm:$0xff]
    %v1306 = vld [vmem:[%s7 + $0xb0] sm:$0xff]
    %v1307 = vld [vmem:[%s7 + $0xb8] sm:$0xff]
    %v1308 = vld [vmem:[%s7 + $0xc0] sm:$0xff]
    %v1309 = vld [vmem:[%s7 + $0xc8] sm:$0xff]
    %v1310 = vld [vmem:[%s7 + $0xd0] sm:$0xff]
    %v1311 = vld [vmem:[%s7 + $0xd8] sm:$0xff]
    %v1312 = vld [vmem:[%s7 + $0xe0] sm:$0xff]
    %v1313 = vld [vmem:[%s7 + $0xe8] sm:$0xff]
    %v1314 = vld [vmem:[%s7 + $0xf0] sm:$0xff]
    %v1315 = vld [vmem:[%s7 + $0xf8] sm:$0xff]
    %v1316 = vld [vmem:[%s8] sm:$0x1]
    %v1318 = vlaneseq
    %v1319 = vshrl.u32 %v1318, 7
    %v1320 = vsub.s32 0, %v1319
    %v1321 = vrot.slane %v1316, %v1320
    %1323 = vmatprep.subr.mxu0 0.0
    %1324 = vmatpush1.msra.mxu0 %v1284
    %1325 = vmatprep.subr.mxu0 0.0
    %1326 = vmatpush1.msra.mxu0 %v1285
    %1327 = vmatprep.subr.mxu0 0.0
    %1328 = vmatpush1.msra.mxu0 %v1286
    %1329 = vmatprep.subr.mxu0 0.0
    %1330 = vmatpush1.msra.mxu0 %v1287
    %1331 = vmatprep.subr.mxu0 0.0
    %1332 = vmatpush1.msra.mxu0 %v1288
    %1333 = vmatprep.subr.mxu0 0.0
    %1334 = vmatpush1.msra.mxu0 %v1289
    %1335 = vmatprep.subr.mxu0 0.0
    %1336 = vmatpush1.msra.mxu0 %v1290
    %1337 = vmatprep.subr.mxu0 0.0
    %1338 = vmatpush1.msra.mxu0 %v1291
    %1339 = vmatprep.subr.mxu0 0.0
    %1340 = vmatpush1.msra.mxu0 %v1292
    %1341 = vmatprep.subr.mxu0 0.0
    %1342 = vmatpush1.msra.mxu0 %v1293
    %1343 = vmatprep.subr.mxu0 0.0
    %1344 = vmatpush1.msra.mxu0 %v1294
    %1345 = vmatprep.subr.mxu0 0.0
    %1346 = vmatpush1.msra.mxu0 %v1295
    %1347 = vmatprep.subr.mxu0 0.0
    %1348 = vmatpush1.msra.mxu0 %v1296
    %1349 = vmatprep.subr.mxu0 0.0
    %1350 = vmatpush1.msra.mxu0 %v1297
    %1351 = vmatprep.subr.mxu0 0.0
    %1352 = vmatpush1.msra.mxu0 %v1298
    %1353 = vmatprep.subr.mxu0 0.0
    %1354 = vmatpush1.msra.mxu0 %v1299
    %1355 = vmatprep.subr.mxu0 0.0
    %1356 = vmatpush1.msra.mxu0 %v1300
    %1357 = vmatprep.subr.mxu0 0.0
    %1358 = vmatpush1.msra.mxu0 %v1301
    %1359 = vmatprep.subr.mxu0 0.0
    %1360 = vmatpush1.msra.mxu0 %v1302
    %1361 = vmatprep.subr.mxu0 0.0
    %1362 = vmatpush1.msra.mxu0 %v1303
    %1363 = vmatprep.subr.mxu0 0.0
    %1364 = vmatpush1.msra.mxu0 %v1304
    %1365 = vmatprep.subr.mxu0 0.0
    %1366 = vmatpush1.msra.mxu0 %v1305
    %1367 = vmatprep.subr.mxu0 0.0
    %1368 = vmatpush1.msra.mxu0 %v1306
    %1369 = vmatprep.subr.mxu0 0.0
    %1370 = vmatpush1.msra.mxu0 %v1307
    %1371 = vmatprep.subr.mxu0 0.0
    %1372 = vmatpush1.msra.mxu0 %v1308
    %1373 = vmatprep.subr.mxu0 0.0
    %1374 = vmatpush1.msra.mxu0 %v1309
    %1375 = vmatprep.subr.mxu0 0.0
    %1376 = vmatpush1.msra.mxu0 %v1310
    %1377 = vmatprep.subr.mxu0 0.0
    %1378 = vmatpush1.msra.mxu0 %v1311
    %1379 = vmatprep.subr.mxu0 0.0
    %1380 = vmatpush1.msra.mxu0 %v1312
    %1381 = vmatprep.subr.mxu0 0.0
    %1382 = vmatpush1.msra.mxu0 %v1313
    %1383 = vmatprep.subr.mxu0 0.0
    %1384 = vmatpush1.msra.mxu0 %v1314
    %1385 = vmatprep.subr.mxu0 0.0
    %1386 = vmatpush1.msra.mxu0 %v1315
    %1387 = vmatprep.mubr.f32.mxu0 %v1283
    %1388 = vmatmul.mubr.f32.gmra.mrb[0].mxu0 %v1282
    %v1389 = vpop.f32.mrb[0].mxu0
    %v1390 = vadd.f32 %v1321, %v1389
    %v1391 = vpop.f32.mrb[0].mxu0
    %1392 = vdwg.mxu0
    %v1393 = vmax.f32 %v1390, 0.0
    %v1394 = vld [vmem:[%s9] sm:$0xff]
    %v1395 = vld [vmem:[%s9 + $0x8] sm:$0xff]
    %v1396 = vld [vmem:[%s9 + $0x10] sm:$0xff]
    %v1397 = vld [vmem:[%s9 + $0x18] sm:$0xff]
    %v1398 = vld [vmem:[%s9 + $0x20] sm:$0xff]
    %v1399 = vld [vmem:[%s9 + $0x28] sm:$0xff]
    %v1400 = vld [vmem:[%s9 + $0x30] sm:$0xff]
    %v1401 = vld [vmem:[%s9 + $0x38] sm:$0xff]
    %v1402 = vld [vmem:[%s10] sm:$0x1]
    %v1404 = vlaneseq
    %v1405 = vshrl.u32 %v1404, 7
    %v1406 = vsub.s32 0, %v1405
    %v1407 = vrot.slane %v1402, %v1406
    %v1410 = vsel %vm833, %v1393, 0
    %1412 = vmatprep.subr.mxu0 0.0
    %1413 = vmatpush1.msra.mxu0 %v1394
    %1414 = vmatprep.subr.mxu0 0.0
    %1415 = vmatpush1.msra.mxu0 %v1395
    %1416 = vmatprep.subr.mxu0 0.0
    %1417 = vmatpush1.msra.mxu0 %v1396
    %1418 = vmatprep.subr.mxu0 0.0
    %1419 = vmatpush1.msra.mxu0 %v1397
    %1420 = vmatprep.subr.mxu0 0.0
    %1421 = vmatpush1.msra.mxu0 %v1398
    %1422 = vmatprep.subr.mxu0 0.0
    %1423 = vmatpush1.msra.mxu0 %v1399
    %1424 = vmatprep.subr.mxu0 0.0
    %1425 = vmatpush1.msra.mxu0 %v1400
    %1426 = vmatprep.subr.mxu0 0.0
    %1427 = vmatpush1.msra.mxu0 %v1401
    %1428 = vmatprep.subr.mxu0 0.0
    %1429 = vmatpush1.msra.mxu0 0.0
    %1430 = vmatprep.subr.mxu0 0.0
    %1431 = vmatpush1.msra.mxu0 0.0
    %1432 = vmatprep.subr.mxu0 0.0
    %1433 = vmatpush1.msra.mxu0 0.0
    %1434 = vmatprep.subr.mxu0 0.0
    %1435 = vmatpush1.msra.mxu0 0.0
    %1436 = vmatprep.subr.mxu0 0.0
    %1437 = vmatpush1.msra.mxu0 0.0
    %1438 = vmatprep.subr.mxu0 0.0
    %1439 = vmatpush1.msra.mxu0 0.0
    %1440 = vmatprep.subr.mxu0 0.0
    %1441 = vmatpush1.msra.mxu0 0.0
    %1442 = vmatprep.subr.mxu0 0.0
    %1443 = vmatpush1.msra.mxu0 0.0
    %1444 = vmatprep.subr.mxu0 0.0
    %1445 = vmatpush1.msra.mxu0 0.0
    %1446 = vmatprep.subr.mxu0 0.0
    %1447 = vmatpush1.msra.mxu0 0.0
    %1448 = vmatprep.subr.mxu0 0.0
    %1449 = vmatpush1.msra.mxu0 0.0
    %1450 = vmatprep.subr.mxu0 0.0
    %1451 = vmatpush1.msra.mxu0 0.0
    %1452 = vmatprep.subr.mxu0 0.0
    %1453 = vmatpush1.msra.mxu0 0.0
    %1454 = vmatprep.subr.mxu0 0.0
    %1455 = vmatpush1.msra.mxu0 0.0
    %1456 = vmatprep.subr.mxu0 0.0
    %1457 = vmatpush1.msra.mxu0 0.0
    %1458 = vmatprep.subr.mxu0 0.0
    %1459 = vmatpush1.msra.mxu0 0.0
    %1460 = vmatprep.subr.mxu0 0.0
    %1461 = vmatpush1.msra.mxu0 0.0
    %1462 = vmatprep.subr.mxu0 0.0
    %1463 = vmatpush1.msra.mxu0 0.0
    %1464 = vmatprep.subr.mxu0 0.0
    %1465 = vmatpush1.msra.mxu0 0.0
    %1466 = vmatprep.subr.mxu0 0.0
    %1467 = vmatpush1.msra.mxu0 0.0
    %1468 = vmatprep.subr.mxu0 0.0
    %1469 = vmatpush1.msra.mxu0 0.0
    %1470 = vmatprep.subr.mxu0 0.0
    %1471 = vmatpush1.msra.mxu0 0.0
    %1472 = vmatprep.subr.mxu0 0.0
    %1473 = vmatpush1.msra.mxu0 0.0
    %1474 = vmatprep.subr.mxu0 0.0
    %1475 = vmatpush1.msra.mxu0 0.0
    %1476 = vmatprep.mubr.f32.mxu0 0.0
    %1477 = vmatmul.mubr.f32.gmra.mrb[0].mxu0 %v1410
    %v1478 = vpop.f32.mrb[0].mxu0
    %v1479 = vadd.f32 %v1407, %v1478
    %v1480 = vpop.f32.mrb[0].mxu0
    %1481 = vdwg.mxu0
    %v1482 = vmax.f32 %v1479, 0.0
    %v1483 = vld [vmem:[%s11] sm:$0xff]
    %v1484 = vld [vmem:[%s11 + $0x8] sm:$0xff]
    %v1485 = vld [vmem:[%s11 + $0x10] sm:$0xff]
    %v1486 = vld [vmem:[%s11 + $0x18] sm:$0xff]
    %v1488 = vsel %vm733, %v1482, 0
    %1490 = vmatprep.subr.mxu0 0.0
    %1491 = vmatpush1.msra.mxu0 %v1483
    %1492 = vmatprep.subr.mxu0 0.0
    %1493 = vmatpush1.msra.mxu0 %v1484
    %1494 = vmatprep.subr.mxu0 0.0
    %1495 = vmatpush1.msra.mxu0 %v1485
    %1496 = vmatprep.subr.mxu0 0.0
    %1497 = vmatpush1.msra.mxu0 %v1486
    %1498 = vmatprep.subr.mxu0 0.0
    %1499 = vmatpush1.msra.mxu0 0.0
    %1500 = vmatprep.subr.mxu0 0.0
    %1501 = vmatpush1.msra.mxu0 0.0
    %1502 = vmatprep.subr.mxu0 0.0
    %1503 = vmatpush1.msra.mxu0 0.0
    %1504 = vmatprep.subr.mxu0 0.0
    %1505 = vmatpush1.msra.mxu0 0.0
    %1506 = vmatprep.subr.mxu0 0.0
    %1507 = vmatpush1.msra.mxu0 0.0
    %1508 = vmatprep.subr.mxu0 0.0
    %1509 = vmatpush1.msra.mxu0 0.0
    %1510 = vmatprep.subr.mxu0 0.0
    %1511 = vmatpush1.msra.mxu0 0.0
    %1512 = vmatprep.subr.mxu0 0.0
    %1513 = vmatpush1.msra.mxu0 0.0
    %1514 = vmatprep.subr.mxu0 0.0
    %1515 = vmatpush1.msra.mxu0 0.0
    %1516 = vmatprep.subr.mxu0 0.0
    %1517 = vmatpush1.msra.mxu0 0.0
    %1518 = vmatprep.subr.mxu0 0.0
    %1519 = vmatpush1.msra.mxu0 0.0
    %1520 = vmatprep.subr.mxu0 0.0
    %1521 = vmatpush1.msra.mxu0 0.0
    %1522 = vmatprep.subr.mxu0 0.0
    %1523 = vmatpush1.msra.mxu0 0.0
    %1524 = vmatprep.subr.mxu0 0.0
    %1525 = vmatpush1.msra.mxu0 0.0
    %1526 = vmatprep.subr.mxu0 0.0
    %1527 = vmatpush1.msra.mxu0 0.0
    %1528 = vmatprep.subr.mxu0 0.0
    %1529 = vmatpush1.msra.mxu0 0.0
    %1530 = vmatprep.subr.mxu0 0.0
    %1531 = vmatpush1.msra.mxu0 0.0
    %1532 = vmatprep.subr.mxu0 0.0
    %1533 = vmatpush1.msra.mxu0 0.0
    %1534 = vmatprep.subr.mxu0 0.0
    %1535 = vmatpush1.msra.mxu0 0.0
    %1536 = vmatprep.subr.mxu0 0.0
    %1537 = vmatpush1.msra.mxu0 0.0
    %1538 = vmatprep.subr.mxu0 0.0
    %1539 = vmatpush1.msra.mxu0 0.0
    %1540 = vmatprep.subr.mxu0 0.0
    %1541 = vmatpush1.msra.mxu0 0.0
    %1542 = vmatprep.subr.mxu0 0.0
    %1543 = vmatpush1.msra.mxu0 0.0
    %1544 = vmatprep.subr.mxu0 0.0
    %1545 = vmatpush1.msra.mxu0 0.0
    %1546 = vmatprep.subr.mxu0 0.0
    %1547 = vmatpush1.msra.mxu0 0.0
    %1548 = vmatprep.subr.mxu0 0.0
    %1549 = vmatpush1.msra.mxu0 0.0
    %1550 = vmatprep.subr.mxu0 0.0
    %1551 = vmatpush1.msra.mxu0 0.0
    %1552 = vmatprep.subr.mxu0 0.0
    %1553 = vmatpush1.msra.mxu0 0.0
    %1554 = vmatprep.mubr.f32.mxu0 0.0
    %1555 = vmatmul.mubr.f32.gmra.mrb[0].mxu0 %v1488
    %v1556 = vpop.f32.mrb[0].mxu0
    %v1557 = vadd.f32 0.0, %v1556
    %v1558 = vpop.f32.mrb[0].mxu0
    %1559 = vdwg.mxu0
    %vm1560 = vcmask 123904
    %1561 = vst.msk [vmem:[#allocation7] sm:$0x3] %vm1560, %v1557
    %1563 = vrot.lane.b32.xlu0 %v1557, 112
    %v1564 = vpop.permute.xlu0 %1563
    %1566 = vst.msk [vmem:[#allocation8] sm:$0x3] %vm1560, %v1564
    %v1567 = vld [vmem:[%s12] sm:$0xff]
    %v1568 = vld [vmem:[%s12 + $0x8] sm:$0xff]
    %v1569 = vld [vmem:[%s13] sm:$0x1]
    %v1571 = vlaneseq
    %v1572 = vshrl.u32 %v1571, 7
    %v1573 = vsub.s32 0, %v1572
    %v1574 = vrot.slane %v1569, %v1573
    %v1576 = vsel %vm1184, %v1557, 0
    %1578 = vmatprep.subr.mxu0 0.0
    %1579 = vmatpush1.msra.mxu0 %v1567
    %1580 = vmatprep.subr.mxu0 0.0
    %1581 = vmatpush1.msra.mxu0 %v1568
    %1582 = vmatprep.subr.mxu0 0.0
    %1583 = vmatpush1.msra.mxu0 0.0
    %1584 = vmatprep.subr.mxu0 0.0
    %1585 = vmatpush1.msra.mxu0 0.0
    %1586 = vmatprep.subr.mxu0 0.0
    %1587 = vmatpush1.msra.mxu0 0.0
    %1588 = vmatprep.subr.mxu0 0.0
    %1589 = vmatpush1.msra.mxu0 0.0
    %1590 = vmatprep.subr.mxu0 0.0
    %1591 = vmatpush1.msra.mxu0 0.0
    %1592 = vmatprep.subr.mxu0 0.0
    %1593 = vmatpush1.msra.mxu0 0.0
    %1594 = vmatprep.subr.mxu0 0.0
    %1595 = vmatpush1.msra.mxu0 0.0
    %1596 = vmatprep.subr.mxu0 0.0
    %1597 = vmatpush1.msra.mxu0 0.0
    %1598 = vmatprep.subr.mxu0 0.0
    %1599 = vmatpush1.msra.mxu0 0.0
    %1600 = vmatprep.subr.mxu0 0.0
    %1601 = vmatpush1.msra.mxu0 0.0
    %1602 = vmatprep.subr.mxu0 0.0
    %1603 = vmatpush1.msra.mxu0 0.0
    %1604 = vmatprep.subr.mxu0 0.0
    %1605 = vmatpush1.msra.mxu0 0.0
    %1606 = vmatprep.subr.mxu0 0.0
    %1607 = vmatpush1.msra.mxu0 0.0
    %1608 = vmatprep.subr.mxu0 0.0
    %1609 = vmatpush1.msra.mxu0 0.0
    %1610 = vmatprep.subr.mxu0 0.0
    %1611 = vmatpush1.msra.mxu0 0.0
    %1612 = vmatprep.subr.mxu0 0.0
    %1613 = vmatpush1.msra.mxu0 0.0
    %1614 = vmatprep.subr.mxu0 0.0
    %1615 = vmatpush1.msra.mxu0 0.0
    %1616 = vmatprep.subr.mxu0 0.0
    %1617 = vmatpush1.msra.mxu0 0.0
    %1618 = vmatprep.subr.mxu0 0.0
    %1619 = vmatpush1.msra.mxu0 0.0
    %1620 = vmatprep.subr.mxu0 0.0
    %1621 = vmatpush1.msra.mxu0 0.0
    %1622 = vmatprep.subr.mxu0 0.0
    %1623 = vmatpush1.msra.mxu0 0.0
    %1624 = vmatprep.subr.mxu0 0.0
    %1625 = vmatpush1.msra.mxu0 0.0
    %1626 = vmatprep.subr.mxu0 0.0
    %1627 = vmatpush1.msra.mxu0 0.0
    %1628 = vmatprep.subr.mxu0 0.0
    %1629 = vmatpush1.msra.mxu0 0.0
    %1630 = vmatprep.subr.mxu0 0.0
    %1631 = vmatpush1.msra.mxu0 0.0
    %1632 = vmatprep.subr.mxu0 0.0
    %1633 = vmatpush1.msra.mxu0 0.0
    %1634 = vmatprep.subr.mxu0 0.0
    %1635 = vmatpush1.msra.mxu0 0.0
    %1636 = vmatprep.subr.mxu0 0.0
    %1637 = vmatpush1.msra.mxu0 0.0
    %1638 = vmatprep.subr.mxu0 0.0
    %1639 = vmatpush1.msra.mxu0 0.0
    %1640 = vmatprep.subr.mxu0 0.0
    %1641 = vmatpush1.msra.mxu0 0.0
    %1642 = vmatprep.mubr.f32.mxu0 0.0
    %1643 = vmatmul.mubr.f32.gmra.mrb[0].mxu0 %v1576
    %v1644 = vpop.f32.mrb[0].mxu0
    %v1645 = vadd.f32 %v1574, %v1644
    %v1646 = vpop.f32.mrb[0].mxu0
    %1647 = vdwg.mxu0
    %v1648 = vmax.f32 %v1645, 0.0
    %v1649 = vld [vmem:[%s14] sm:$0xff]
    %v1650 = vld [vmem:[%s14 + $0x8] sm:$0xff]
    %v1651 = vld [vmem:[%s14 + $0x10] sm:$0xff]
    %v1652 = vld [vmem:[%s14 + $0x18] sm:$0xff]
    %v1653 = vld [vmem:[%s14 + $0x20] sm:$0xff]
    %v1654 = vld [vmem:[%s14 + $0x28] sm:$0xff]
    %v1655 = vld [vmem:[%s14 + $0x30] sm:$0xff]
    %v1656 = vld [vmem:[%s14 + $0x38] sm:$0xff]
    %v1657 = vld [vmem:[%s14 + $0x40] sm:$0xff]
    %v1658 = vld [vmem:[%s14 + $0x48] sm:$0xff]
    %v1659 = vld [vmem:[%s14 + $0x50] sm:$0xff]
    %v1660 = vld [vmem:[%s14 + $0x58] sm:$0xff]
    %v1661 = vld [vmem:[%s14 + $0x60] sm:$0xff]
    %v1662 = vld [vmem:[%s14 + $0x68] sm:$0xff]
    %v1663 = vld [vmem:[%s14 + $0x70] sm:$0xff]
    %v1664 = vld [vmem:[%s14 + $0x78] sm:$0xff]
    %v1665 = vld [vmem:[%s15] sm:$0x3]
    %v1667 = vlaneseq
    %v1668 = vshrl.u32 %v1667, 7
    %v1669 = vsub.s32 0, %v1668
    %v1670 = vrot.slane %v1665, %v1669
    %v1671 = vlaneseq
    %v1672 = vshrl.u32 %v1671, 7
    %v1673 = vsub.s32 1, %v1672
    %v1674 = vrot.slane %v1665, %v1673
    %v1678 = vsel %vm833, %v1648, 0
    %1680 = vmatprep.subr.mxu0 %v1650
    %1681 = vmatpush1.msra.mxu0 %v1649
    %1682 = vmatprep.subr.mxu0 %v1652
    %1683 = vmatpush1.msra.mxu0 %v1651
    %1684 = vmatprep.subr.mxu0 %v1654
    %1685 = vmatpush1.msra.mxu0 %v1653
    %1686 = vmatprep.subr.mxu0 %v1656
    %1687 = vmatpush1.msra.mxu0 %v1655
    %1688 = vmatprep.subr.mxu0 %v1658
    %1689 = vmatpush1.msra.mxu0 %v1657
    %1690 = vmatprep.subr.mxu0 %v1660
    %1691 = vmatpush1.msra.mxu0 %v1659
    %1692 = vmatprep.subr.mxu0 %v1662
    %1693 = vmatpush1.msra.mxu0 %v1661
    %1694 = vmatprep.subr.mxu0 %v1664
    %1695 = vmatpush1.msra.mxu0 %v1663
    %1696 = vmatprep.subr.mxu0 0.0
    %1697 = vmatpush1.msra.mxu0 0.0
    %1698 = vmatprep.subr.mxu0 0.0
    %1699 = vmatpush1.msra.mxu0 0.0
    %1700 = vmatprep.subr.mxu0 0.0
    %1701 = vmatpush1.msra.mxu0 0.0
    %1702 = vmatprep.subr.mxu0 0.0
    %1703 = vmatpush1.msra.mxu0 0.0
    %1704 = vmatprep.subr.mxu0 0.0
    %1705 = vmatpush1.msra.mxu0 0.0
    %1706 = vmatprep.subr.mxu0 0.0
    %1707 = vmatpush1.msra.mxu0 0.0
    %1708 = vmatprep.subr.mxu0 0.0
    %1709 = vmatpush1.msra.mxu0 0.0
    %1710 = vmatprep.subr.mxu0 0.0
    %1711 = vmatpush1.msra.mxu0 0.0
    %1712 = vmatprep.subr.mxu0 0.0
    %1713 = vmatpush1.msra.mxu0 0.0
    %1714 = vmatprep.subr.mxu0 0.0
    %1715 = vmatpush1.msra.mxu0 0.0
    %1716 = vmatprep.subr.mxu0 0.0
    %1717 = vmatpush1.msra.mxu0 0.0
    %1718 = vmatprep.subr.mxu0 0.0
    %1719 = vmatpush1.msra.mxu0 0.0
    %1720 = vmatprep.subr.mxu0 0.0
    %1721 = vmatpush1.msra.mxu0 0.0
    %1722 = vmatprep.subr.mxu0 0.0
    %1723 = vmatpush1.msra.mxu0 0.0
    %1724 = vmatprep.subr.mxu0 0.0
    %1725 = vmatpush1.msra.mxu0 0.0
    %1726 = vmatprep.subr.mxu0 0.0
    %1727 = vmatpush1.msra.mxu0 0.0
    %1728 = vmatprep.subr.mxu0 0.0
    %1729 = vmatpush1.msra.mxu0 0.0
    %1730 = vmatprep.subr.mxu0 0.0
    %1731 = vmatpush1.msra.mxu0 0.0
    %1732 = vmatprep.subr.mxu0 0.0
    %1733 = vmatpush1.msra.mxu0 0.0
    %1734 = vmatprep.subr.mxu0 0.0
    %1735 = vmatpush1.msra.mxu0 0.0
    %1736 = vmatprep.subr.mxu0 0.0
    %1737 = vmatpush1.msra.mxu0 0.0
    %1738 = vmatprep.subr.mxu0 0.0
    %1739 = vmatpush1.msra.mxu0 0.0
    %1740 = vmatprep.subr.mxu0 0.0
    %1741 = vmatpush1.msra.mxu0 0.0
    %1742 = vmatprep.subr.mxu0 0.0
    %1743 = vmatpush1.msra.mxu0 0.0
    %1744 = vmatprep.mubr.f32.mxu0 0.0
    %1745 = vmatmul.mubr.f32.gmra.mrb[0].mxu0 %v1678
    %v1746 = vpop.f32.mrb[0].mxu0
    %v1747 = vadd.f32 %v1670, %v1746
    %v1748 = vpop.f32.mrb[0].mxu0
    %v1749 = vadd.f32 %v1674, %v1748
    %1750 = vdwg.mxu0
    %v1751 = vmax.f32 %v1747, 0.0
    %v1752 = vmax.f32 %v1749, 0.0
    %v1754 = vrot.slane %v1751, 7
    %1755 = vrot.lane.b32.xlu0 %v1754, 112
    %v1756 = vpop.permute.xlu0 %1755
    %v1758 = vrot.slane %v1751, 6
    %1759 = vrot.lane.b32.xlu0 %v1758, 96
    %v1760 = vpop.permute.xlu0 %1759
    %v1762 = vrot.slane %v1751, 5
    %1763 = vrot.lane.b32.xlu0 %v1762, 80
    %v1764 = vpop.permute.xlu0 %1763
    %v1766 = vrot.slane %v1751, 4
    %1767 = vrot.lane.b32.xlu0 %v1766, 64
    %v1768 = vpop.permute.xlu0 %1767
    %v1770 = vrot.slane %v1751, 3
    %1771 = vrot.lane.b32.xlu0 %v1770, 48
    %v1772 = vpop.permute.xlu0 %1771
    %v1774 = vrot.slane %v1751, 2
    %1775 = vrot.lane.b32.xlu0 %v1774, 32
    %v1776 = vpop.permute.xlu0 %1775
    %v1778 = vrot.slane %v1751, 1
    %1779 = vrot.lane.b32.xlu0 %v1778, 16
    %v1780 = vpop.permute.xlu0 %1779
    %v1783 = vrot.slane %v1752, 7
    %1784 = vrot.lane.b32.xlu0 %v1783, 112
    %v1785 = vpop.permute.xlu0 %1784
    %v1787 = vrot.slane %v1752, 6
    %1788 = vrot.lane.b32.xlu0 %v1787, 96
    %v1789 = vpop.permute.xlu0 %1788
    %v1791 = vrot.slane %v1752, 5
    %1792 = vrot.lane.b32.xlu0 %v1791, 80
    %v1793 = vpop.permute.xlu0 %1792
    %v1795 = vrot.slane %v1752, 4
    %1796 = vrot.lane.b32.xlu0 %v1795, 64
    %v1797 = vpop.permute.xlu0 %1796
    %v1799 = vrot.slane %v1752, 3
    %1800 = vrot.lane.b32.xlu0 %v1799, 48
    %v1801 = vpop.permute.xlu0 %1800
    %v1803 = vrot.slane %v1752, 2
    %1804 = vrot.lane.b32.xlu0 %v1803, 32
    %v1805 = vpop.permute.xlu0 %1804
    %v1807 = vrot.slane %v1752, 1
    %1808 = vrot.lane.b32.xlu0 %v1807, 16
    %v1809 = vpop.permute.xlu0 %1808
    %v1811 = vsel %vm1281, %v1751, %v1756
    %v1812 = vsel %vm704, %v1811, %v1760
    %vm1813 = vcmask 1042432
    %v1814 = vsel %vm1813, %v1812, %v1764
    %v1815 = vsel %vm706, %v1814, %v1768
    %vm1816 = vcmask 1044480
    %v1817 = vsel %vm1816, %v1815, %v1772
    %v1818 = vsel %vm708, %v1817, %v1776
    %vm1819 = vcmask 1046528
    %v1820 = vsel %vm1819, %v1818, %v1780
    %v1821 = vsel %vm1281, %v1752, %v1785
    %v1822 = vsel %vm704, %v1821, %v1789
    %v1823 = vsel %vm1813, %v1822, %v1793
    %v1824 = vsel %vm706, %v1823, %v1797
    %v1825 = vsel %vm1816, %v1824, %v1801
    %v1826 = vsel %vm708, %v1825, %v1805
    %v1827 = vsel %vm1819, %v1826, %v1809
    %1829 = vrot.lane.b32.xlu0 %v1751, 112
    %v1830 = vpop.permute.xlu0 %1829
    %1832 = vrot.lane.b32.xlu0 %v1754, 96
    %v1833 = vpop.permute.xlu0 %1832
    %1835 = vrot.lane.b32.xlu0 %v1758, 80
    %v1836 = vpop.permute.xlu0 %1835
    %1838 = vrot.lane.b32.xlu0 %v1762, 64
    %v1839 = vpop.permute.xlu0 %1838
    %1841 = vrot.lane.b32.xlu0 %v1766, 48
    %v1842 = vpop.permute.xlu0 %1841
    %1844 = vrot.lane.b32.xlu0 %v1770, 32
    %v1845 = vpop.permute.xlu0 %1844
    %1847 = vrot.lane.b32.xlu0 %v1774, 16
    %v1848 = vpop.permute.xlu0 %1847
    %1851 = vrot.lane.b32.xlu0 %v1752, 112
    %v1852 = vpop.permute.xlu0 %1851
    %1854 = vrot.lane.b32.xlu0 %v1783, 96
    %v1855 = vpop.permute.xlu0 %1854
    %1857 = vrot.lane.b32.xlu0 %v1787, 80
    %v1858 = vpop.permute.xlu0 %1857
    %1860 = vrot.lane.b32.xlu0 %v1791, 64
    %v1861 = vpop.permute.xlu0 %1860
    %1863 = vrot.lane.b32.xlu0 %v1795, 48
    %v1864 = vpop.permute.xlu0 %1863
    %1866 = vrot.lane.b32.xlu0 %v1799, 32
    %v1867 = vpop.permute.xlu0 %1866
    %1869 = vrot.lane.b32.xlu0 %v1803, 16
    %v1870 = vpop.permute.xlu0 %1869
    %v1872 = vsel %vm1281, %v1778, %v1830
    %v1873 = vsel %vm704, %v1872, %v1833
    %v1874 = vsel %vm1813, %v1873, %v1836
    %v1875 = vsel %vm706, %v1874, %v1839
    %v1876 = vsel %vm1816, %v1875, %v1842
    %v1877 = vsel %vm708, %v1876, %v1845
    %v1878 = vsel %vm1819, %v1877, %v1848
    %v1879 = vsel %vm1281, %v1807, %v1852
    %v1880 = vsel %vm704, %v1879, %v1855
    %v1881 = vsel %vm1813, %v1880, %v1858
    %v1882 = vsel %vm706, %v1881, %v1861
    %v1883 = vsel %vm1816, %v1882, %v1864
    %v1884 = vsel %vm708, %v1883, %v1867
    %v1885 = vsel %vm1819, %v1884, %v1870
    %v1886 = vld [vmem:[%s17] sm:$0xff]
    %v1887 = vld [vmem:[%s17 + $0x8] sm:$0xff]
    %v1888 = vld [vmem:[%s17 + $0x10] sm:$0xff]
    %v1889 = vld [vmem:[%s17 + $0x18] sm:$0xff]
    %v1890 = vld [vmem:[%s17 + $0x20] sm:$0xff]
    %v1891 = vld [vmem:[%s17 + $0x28] sm:$0xff]
    %v1892 = vld [vmem:[%s17 + $0x30] sm:$0xff]
    %v1893 = vld [vmem:[%s17 + $0x38] sm:$0xff]
    %v1894 = vld [vmem:[%s17 + $0x40] sm:$0xff]
    %v1895 = vld [vmem:[%s17 + $0x48] sm:$0xff]
    %v1896 = vld [vmem:[%s17 + $0x50] sm:$0xff]
    %v1897 = vld [vmem:[%s17 + $0x58] sm:$0xff]
    %v1898 = vld [vmem:[%s17 + $0x60] sm:$0xff]
    %v1899 = vld [vmem:[%s17 + $0x68] sm:$0xff]
    %v1900 = vld [vmem:[%s17 + $0x70] sm:$0xff]
    %v1901 = vld [vmem:[%s17 + $0x78] sm:$0xff]
    %v1902 = vld [vmem:[%s17 + $0x80] sm:$0xff]
    %v1903 = vld [vmem:[%s17 + $0x88] sm:$0xff]
    %v1904 = vld [vmem:[%s17 + $0x90] sm:$0xff]
    %v1905 = vld [vmem:[%s17 + $0x98] sm:$0xff]
    %v1906 = vld [vmem:[%s17 + $0xa0] sm:$0xff]
    %v1907 = vld [vmem:[%s17 + $0xa8] sm:$0xff]
    %v1908 = vld [vmem:[%s17 + $0xb0] sm:$0xff]
    %v1909 = vld [vmem:[%s17 + $0xb8] sm:$0xff]
    %v1910 = vld [vmem:[%s17 + $0xc0] sm:$0xff]
    %v1911 = vld [vmem:[%s17 + $0xc8] sm:$0xff]
    %v1912 = vld [vmem:[%s17 + $0xd0] sm:$0xff]
    %v1913 = vld [vmem:[%s17 + $0xd8] sm:$0xff]
    %v1914 = vld [vmem:[%s17 + $0xe0] sm:$0xff]
    %v1915 = vld [vmem:[%s17 + $0xe8] sm:$0xff]
    %v1916 = vld [vmem:[%s17 + $0xf0] sm:$0xff]
    %v1917 = vld [vmem:[%s17 + $0xf8] sm:$0xff]
    %v1919 = vsel %vm733, %v1886, 0
    %v1922 = vsel %vm733, %v1887, 0
    %v1925 = vsel %vm733, %v1888, 0
    %v1928 = vsel %vm733, %v1889, 0
    %v1931 = vsel %vm733, %v1890, 0
    %v1934 = vsel %vm733, %v1891, 0
    %v1937 = vsel %vm733, %v1892, 0
    %v1940 = vsel %vm733, %v1893, 0
    %v1943 = vsel %vm733, %v1894, 0
    %v1946 = vsel %vm733, %v1895, 0
    %v1949 = vsel %vm733, %v1896, 0
    %v1952 = vsel %vm733, %v1897, 0
    %v1955 = vsel %vm733, %v1898, 0
    %v1958 = vsel %vm733, %v1899, 0
    %v1961 = vsel %vm733, %v1900, 0
    %v1964 = vsel %vm733, %v1901, 0
    %v1967 = vsel %vm733, %v1902, 0
    %v1970 = vsel %vm733, %v1903, 0
    %v1973 = vsel %vm733, %v1904, 0
    %v1976 = vsel %vm733, %v1905, 0
    %v1979 = vsel %vm733, %v1906, 0
    %v1982 = vsel %vm733, %v1907, 0
    %v1985 = vsel %vm733, %v1908, 0
    %v1988 = vsel %vm733, %v1909, 0
    %v1991 = vsel %vm733, %v1910, 0
    %v1994 = vsel %vm733, %v1911, 0
    %v1997 = vsel %vm733, %v1912, 0
    %v2000 = vsel %vm733, %v1913, 0
    %v2003 = vsel %vm733, %v1914, 0
    %v2006 = vsel %vm733, %v1915, 0
    %v2009 = vsel %vm733, %v1916, 0
    %v2012 = vsel %vm733, %v1917, 0
    %2014 = vmatprep.subr.mxu0 0.0
    %2015 = vmatpush1.msra.mxu0 %v1820
    %2016 = vmatprep.subr.mxu0 0.0
    %2017 = vmatpush1.msra.mxu0 %v1827
    %2018 = vmatprep.subr.mxu0 0.0
    %2019 = vmatpush1.msra.mxu0 %v1878
    %2020 = vmatprep.subr.mxu0 0.0
    %2021 = vmatpush1.msra.mxu0 %v1885
    %2022 = vmatprep.subr.mxu0 0.0
    %2023 = vmatpush1.msra.mxu0 0.0
    %2024 = vmatprep.subr.mxu0 0.0
    %2025 = vmatpush1.msra.mxu0 0.0
    %2026 = vmatprep.subr.mxu0 0.0
    %2027 = vmatpush1.msra.mxu0 0.0
    %2028 = vmatprep.subr.mxu0 0.0
    %2029 = vmatpush1.msra.mxu0 0.0
    %2030 = vmatprep.subr.mxu0 0.0
    %2031 = vmatpush1.msra.mxu0 0.0
    %2032 = vmatprep.subr.mxu0 0.0
    %2033 = vmatpush1.msra.mxu0 0.0
    %2034 = vmatprep.subr.mxu0 0.0
    %2035 = vmatpush1.msra.mxu0 0.0
    %2036 = vmatprep.subr.mxu0 0.0
    %2037 = vmatpush1.msra.mxu0 0.0
    %2038 = vmatprep.subr.mxu0 0.0
    %2039 = vmatpush1.msra.mxu0 0.0
    %2040 = vmatprep.subr.mxu0 0.0
    %2041 = vmatpush1.msra.mxu0 0.0
    %2042 = vmatprep.subr.mxu0 0.0
    %2043 = vmatpush1.msra.mxu0 0.0
    %2044 = vmatprep.subr.mxu0 0.0
    %2045 = vmatpush1.msra.mxu0 0.0
    %2046 = vmatprep.subr.mxu0 0.0
    %2047 = vmatpush1.msra.mxu0 0.0
    %2048 = vmatprep.subr.mxu0 0.0
    %2049 = vmatpush1.msra.mxu0 0.0
    %2050 = vmatprep.subr.mxu0 0.0
    %2051 = vmatpush1.msra.mxu0 0.0
    %2052 = vmatprep.subr.mxu0 0.0
    %2053 = vmatpush1.msra.mxu0 0.0
    %2054 = vmatprep.subr.mxu0 0.0
    %2055 = vmatpush1.msra.mxu0 0.0
    %2056 = vmatprep.subr.mxu0 0.0
    %2057 = vmatpush1.msra.mxu0 0.0
    %2058 = vmatprep.subr.mxu0 0.0
    %2059 = vmatpush1.msra.mxu0 0.0
    %2060 = vmatprep.subr.mxu0 0.0
    %2061 = vmatpush1.msra.mxu0 0.0
    %2062 = vmatprep.subr.mxu0 0.0
    %2063 = vmatpush1.msra.mxu0 0.0
    %2064 = vmatprep.subr.mxu0 0.0
    %2065 = vmatpush1.msra.mxu0 0.0
    %2066 = vmatprep.subr.mxu0 0.0
    %2067 = vmatpush1.msra.mxu0 0.0
    %2068 = vmatprep.subr.mxu0 0.0
    %2069 = vmatpush1.msra.mxu0 0.0
    %2070 = vmatprep.subr.mxu0 0.0
    %2071 = vmatpush1.msra.mxu0 0.0
    %2072 = vmatprep.subr.mxu0 0.0
    %2073 = vmatpush1.msra.mxu0 0.0
    %2074 = vmatprep.subr.mxu0 0.0
    %2075 = vmatpush1.msra.mxu0 0.0
    %2076 = vmatprep.subr.mxu0 0.0
    %2077 = vmatpush1.msra.mxu0 0.0
    %2078 = vmatprep.mubr.f32.mxu0 0.0
    %2079 = vmatmul.mubr.f32.gmra.mrb[0].mxu0 %v1919
    %v2080 = vpop.f32.mrb[0].mxu0
    %v2081 = vadd.f32 0.0, %v2080
    %v2082 = vpop.f32.mrb[0].mxu0
    %2083 = vmatprep.mubr.f32.mxu0 0.0
    %2084 = vmatmul.mubr.f32.gmra.mrb[0].mxu0 %v1922
    %v2085 = vpop.f32.mrb[0].mxu0
    %v2086 = vadd.f32 0.0, %v2085
    %v2087 = vpop.f32.mrb[0].mxu0
    %2088 = vmatprep.mubr.f32.mxu0 0.0
    %2089 = vmatmul.mubr.f32.gmra.mrb[0].mxu0 %v1925
    %v2090 = vpop.f32.mrb[0].mxu0
    %v2091 = vadd.f32 0.0, %v2090
    %v2092 = vpop.f32.mrb[0].mxu0
    %2093 = vmatprep.mubr.f32.mxu0 0.0
    %2094 = vmatmul.mubr.f32.gmra.mrb[0].mxu0 %v1928
    %v2095 = vpop.f32.mrb[0].mxu0
    %v2096 = vadd.f32 0.0, %v2095
    %v2097 = vpop.f32.mrb[0].mxu0
    %2098 = vmatprep.mubr.f32.mxu0 0.0
    %2099 = vmatmul.mubr.f32.gmra.mrb[0].mxu0 %v1931
    %v2100 = vpop.f32.mrb[0].mxu0
    %v2101 = vadd.f32 0.0, %v2100
    %v2102 = vpop.f32.mrb[0].mxu0
    %2103 = vmatprep.mubr.f32.mxu0 0.0
    %2104 = vmatmul.mubr.f32.gmra.mrb[0].mxu0 %v1934
    %v2105 = vpop.f32.mrb[0].mxu0
    %v2106 = vadd.f32 0.0, %v2105
    %v2107 = vpop.f32.mrb[0].mxu0
    %2108 = vmatprep.mubr.f32.mxu0 0.0
    %2109 = vmatmul.mubr.f32.gmra.mrb[0].mxu0 %v1937
    %v2110 = vpop.f32.mrb[0].mxu0
    %v2111 = vadd.f32 0.0, %v2110
    %v2112 = vpop.f32.mrb[0].mxu0
    %2113 = vmatprep.mubr.f32.mxu0 0.0
    %2114 = vmatmul.mubr.f32.gmra.mrb[0].mxu0 %v1940
    %v2115 = vpop.f32.mrb[0].mxu0
    %v2116 = vadd.f32 0.0, %v2115
    %v2117 = vpop.f32.mrb[0].mxu0
    %2118 = vmatprep.mubr.f32.mxu0 0.0
    %2119 = vmatmul.mubr.f32.gmra.mrb[0].mxu0 %v1943
    %v2120 = vpop.f32.mrb[0].mxu0
    %v2121 = vadd.f32 0.0, %v2120
    %v2122 = vpop.f32.mrb[0].mxu0
    %2123 = vmatprep.mubr.f32.mxu0 0.0
    %2124 = vmatmul.mubr.f32.gmra.mrb[0].mxu0 %v1946
    %v2125 = vpop.f32.mrb[0].mxu0
    %v2126 = vadd.f32 0.0, %v2125
    %v2127 = vpop.f32.mrb[0].mxu0
    %2128 = vmatprep.mubr.f32.mxu0 0.0
    %2129 = vmatmul.mubr.f32.gmra.mrb[0].mxu0 %v1949
    %v2130 = vpop.f32.mrb[0].mxu0
    %v2131 = vadd.f32 0.0, %v2130
    %v2132 = vpop.f32.mrb[0].mxu0
    %2133 = vmatprep.mubr.f32.mxu0 0.0
    %2134 = vmatmul.mubr.f32.gmra.mrb[0].mxu0 %v1952
    %v2135 = vpop.f32.mrb[0].mxu0
    %v2136 = vadd.f32 0.0, %v2135
    %v2137 = vpop.f32.mrb[0].mxu0
    %2138 = vmatprep.mubr.f32.mxu0 0.0
    %2139 = vmatmul.mubr.f32.gmra.mrb[0].mxu0 %v1955
    %v2140 = vpop.f32.mrb[0].mxu0
    %v2141 = vadd.f32 0.0, %v2140
    %v2142 = vpop.f32.mrb[0].mxu0
    %2143 = vmatprep.mubr.f32.mxu0 0.0
    %2144 = vmatmul.mubr.f32.gmra.mrb[0].mxu0 %v1958
    %v2145 = vpop.f32.mrb[0].mxu0
    %v2146 = vadd.f32 0.0, %v2145
    %v2147 = vpop.f32.mrb[0].mxu0
    %2148 = vmatprep.mubr.f32.mxu0 0.0
    %2149 = vmatmul.mubr.f32.gmra.mrb[0].mxu0 %v1961
    %v2150 = vpop.f32.mrb[0].mxu0
    %v2151 = vadd.f32 0.0, %v2150
    %v2152 = vpop.f32.mrb[0].mxu0
    %2153 = vmatprep.mubr.f32.mxu0 0.0
    %2154 = vmatmul.mubr.f32.gmra.mrb[0].mxu0 %v1964
    %v2155 = vpop.f32.mrb[0].mxu0
    %v2156 = vadd.f32 0.0, %v2155
    %v2157 = vpop.f32.mrb[0].mxu0
    %2158 = vmatprep.mubr.f32.mxu0 0.0
    %2159 = vmatmul.mubr.f32.gmra.mrb[0].mxu0 %v1967
    %v2160 = vpop.f32.mrb[0].mxu0
    %v2161 = vadd.f32 0.0, %v2160
    %v2162 = vpop.f32.mrb[0].mxu0
    %2163 = vmatprep.mubr.f32.mxu0 0.0
    %2164 = vmatmul.mubr.f32.gmra.mrb[0].mxu0 %v1970
    %v2165 = vpop.f32.mrb[0].mxu0
    %v2166 = vadd.f32 0.0, %v2165
    %v2167 = vpop.f32.mrb[0].mxu0
    %2168 = vmatprep.mubr.f32.mxu0 0.0
    %2169 = vmatmul.mubr.f32.gmra.mrb[0].mxu0 %v1973
    %v2170 = vpop.f32.mrb[0].mxu0
    %v2171 = vadd.f32 0.0, %v2170
    %v2172 = vpop.f32.mrb[0].mxu0
    %2173 = vmatprep.mubr.f32.mxu0 0.0
    %2174 = vmatmul.mubr.f32.gmra.mrb[0].mxu0 %v1976
    %v2175 = vpop.f32.mrb[0].mxu0
    %v2176 = vadd.f32 0.0, %v2175
    %v2177 = vpop.f32.mrb[0].mxu0
    %2178 = vmatprep.mubr.f32.mxu0 0.0
    %2179 = vmatmul.mubr.f32.gmra.mrb[0].mxu0 %v1979
    %v2180 = vpop.f32.mrb[0].mxu0
    %v2181 = vadd.f32 0.0, %v2180
    %v2182 = vpop.f32.mrb[0].mxu0
    %2183 = vmatprep.mubr.f32.mxu0 0.0
    %2184 = vmatmul.mubr.f32.gmra.mrb[0].mxu0 %v1982
    %v2185 = vpop.f32.mrb[0].mxu0
    %v2186 = vadd.f32 0.0, %v2185
    %v2187 = vpop.f32.mrb[0].mxu0
    %2188 = vmatprep.mubr.f32.mxu0 0.0
    %2189 = vmatmul.mubr.f32.gmra.mrb[0].mxu0 %v1985
    %v2190 = vpop.f32.mrb[0].mxu0
    %v2191 = vadd.f32 0.0, %v2190
    %v2192 = vpop.f32.mrb[0].mxu0
    %2193 = vmatprep.mubr.f32.mxu0 0.0
    %2194 = vmatmul.mubr.f32.gmra.mrb[0].mxu0 %v1988
    %v2195 = vpop.f32.mrb[0].mxu0
    %v2196 = vadd.f32 0.0, %v2195
    %v2197 = vpop.f32.mrb[0].mxu0
    %2198 = vmatprep.mubr.f32.mxu0 0.0
    %2199 = vmatmul.mubr.f32.gmra.mrb[0].mxu0 %v1991
    %v2200 = vpop.f32.mrb[0].mxu0
    %v2201 = vadd.f32 0.0, %v2200
    %v2202 = vpop.f32.mrb[0].mxu0
    %2203 = vmatprep.mubr.f32.mxu0 0.0
    %2204 = vmatmul.mubr.f32.gmra.mrb[0].mxu0 %v1994
    %v2205 = vpop.f32.mrb[0].mxu0
    %v2206 = vadd.f32 0.0, %v2205
    %v2207 = vpop.f32.mrb[0].mxu0
    %2208 = vmatprep.mubr.f32.mxu0 0.0
    %2209 = vmatmul.mubr.f32.gmra.mrb[0].mxu0 %v1997
    %v2210 = vpop.f32.mrb[0].mxu0
    %v2211 = vadd.f32 0.0, %v2210
    %v2212 = vpop.f32.mrb[0].mxu0
    %2213 = vmatprep.mubr.f32.mxu0 0.0
    %2214 = vmatmul.mubr.f32.gmra.mrb[0].mxu0 %v2000
    %v2215 = vpop.f32.mrb[0].mxu0
    %v2216 = vadd.f32 0.0, %v2215
    %v2217 = vpop.f32.mrb[0].mxu0
    %2218 = vmatprep.mubr.f32.mxu0 0.0
    %2219 = vmatmul.mubr.f32.gmra.mrb[0].mxu0 %v2003
    %v2220 = vpop.f32.mrb[0].mxu0
    %v2221 = vadd.f32 0.0, %v2220
    %v2222 = vpop.f32.mrb[0].mxu0
    %2223 = vmatprep.mubr.f32.mxu0 0.0
    %2224 = vmatmul.mubr.f32.gmra.mrb[0].mxu0 %v2006
    %v2225 = vpop.f32.mrb[0].mxu0
    %v2226 = vadd.f32 0.0, %v2225
    %v2227 = vpop.f32.mrb[0].mxu0
    %2228 = vmatprep.mubr.f32.mxu0 0.0
    %2229 = vmatmul.mubr.f32.gmra.mrb[0].mxu0 %v2009
    %v2230 = vpop.f32.mrb[0].mxu0
    %v2231 = vadd.f32 0.0, %v2230
    %v2232 = vpop.f32.mrb[0].mxu0
    %2233 = vmatprep.mubr.f32.mxu0 0.0
    %2234 = vmatmul.mubr.f32.gmra.mrb[0].mxu0 %v2012
    %v2235 = vpop.f32.mrb[0].mxu0
    %v2236 = vadd.f32 0.0, %v2235
    %v2237 = vpop.f32.mrb[0].mxu0
    %2238 = vdwg.mxu0
    %2241 = vrot.lane.b32.xlu0 %v2091, 16
    %v2242 = vpop.permute.xlu0 %2241
    %2243 = vrot.lane.b32.xlu0 %v2096, 16
    %v2244 = vpop.permute.xlu0 %2243
    %2249 = vrot.lane.b32.xlu0 %v2101, 32
    %v2250 = vpop.permute.xlu0 %2249
    %2251 = vrot.lane.b32.xlu0 %v2106, 32
    %v2252 = vpop.permute.xlu0 %2251
    %2257 = vrot.lane.b32.xlu0 %v2111, 48
    %v2258 = vpop.permute.xlu0 %2257
    %2259 = vrot.lane.b32.xlu0 %v2116, 48
    %v2260 = vpop.permute.xlu0 %2259
    %2265 = vrot.lane.b32.xlu0 %v2121, 64
    %v2266 = vpop.permute.xlu0 %2265
    %2267 = vrot.lane.b32.xlu0 %v2126, 64
    %v2268 = vpop.permute.xlu0 %2267
    %2273 = vrot.lane.b32.xlu0 %v2131, 80
    %v2274 = vpop.permute.xlu0 %2273
    %2275 = vrot.lane.b32.xlu0 %v2136, 80
    %v2276 = vpop.permute.xlu0 %2275
    %2281 = vrot.lane.b32.xlu0 %v2141, 96
    %v2282 = vpop.permute.xlu0 %2281
    %2283 = vrot.lane.b32.xlu0 %v2146, 96
    %v2284 = vpop.permute.xlu0 %2283
    %2289 = vrot.lane.b32.xlu0 %v2151, 112
    %v2290 = vpop.permute.xlu0 %2289
    %2291 = vrot.lane.b32.xlu0 %v2156, 112
    %v2292 = vpop.permute.xlu0 %2291
    %2297 = vrot.lane.b32.xlu0 %v2171, 16
    %v2298 = vpop.permute.xlu0 %2297
    %2299 = vrot.lane.b32.xlu0 %v2176, 16
    %v2300 = vpop.permute.xlu0 %2299
    %2305 = vrot.lane.b32.xlu0 %v2181, 32
    %v2306 = vpop.permute.xlu0 %2305
    %2307 = vrot.lane.b32.xlu0 %v2186, 32
    %v2308 = vpop.permute.xlu0 %2307
    %2313 = vrot.lane.b32.xlu0 %v2191, 48
    %v2314 = vpop.permute.xlu0 %2313
    %2315 = vrot.lane.b32.xlu0 %v2196, 48
    %v2316 = vpop.permute.xlu0 %2315
    %2321 = vrot.lane.b32.xlu0 %v2201, 64
    %v2322 = vpop.permute.xlu0 %2321
    %2323 = vrot.lane.b32.xlu0 %v2206, 64
    %v2324 = vpop.permute.xlu0 %2323
    %2329 = vrot.lane.b32.xlu0 %v2211, 80
    %v2330 = vpop.permute.xlu0 %2329
    %2331 = vrot.lane.b32.xlu0 %v2216, 80
    %v2332 = vpop.permute.xlu0 %2331
    %2337 = vrot.lane.b32.xlu0 %v2221, 96
    %v2338 = vpop.permute.xlu0 %2337
    %2339 = vrot.lane.b32.xlu0 %v2226, 96
    %v2340 = vpop.permute.xlu0 %2339
    %2345 = vrot.lane.b32.xlu0 %v2231, 112
    %v2346 = vpop.permute.xlu0 %2345
    %2347 = vrot.lane.b32.xlu0 %v2236, 112
    %v2348 = vpop.permute.xlu0 %2347
    %v2351 = vsel %vm1184, %v2081, %v2242
    %v2352 = vsel %vm1184, %v2086, %v2244
    %v2353 = vsel %vm733, %v2351, %v2250
    %v2354 = vsel %vm733, %v2352, %v2252
    %v2355 = vsel %vm1187, %v2353, %v2258
    %v2356 = vsel %vm1187, %v2354, %v2260
    %v2357 = vsel %vm833, %v2355, %v2266
    %v2358 = vsel %vm833, %v2356, %v2268
    %v2359 = vsel %vm1190, %v2357, %v2274
    %v2360 = vsel %vm1190, %v2358, %v2276
    %v2361 = vsel %vm1192, %v2359, %v2282
    %v2362 = vsel %vm1192, %v2360, %v2284
    %v2363 = vsel %vm1194, %v2361, %v2290
    %v2364 = vsel %vm1194, %v2362, %v2292
    %v2365 = vsel %vm1184, %v2161, %v2298
    %v2366 = vsel %vm1184, %v2166, %v2300
    %v2367 = vsel %vm733, %v2365, %v2306
    %v2368 = vsel %vm733, %v2366, %v2308
    %v2369 = vsel %vm1187, %v2367, %v2314
    %v2370 = vsel %vm1187, %v2368, %v2316
    %v2371 = vsel %vm833, %v2369, %v2322
    %v2372 = vsel %vm833, %v2370, %v2324
    %v2373 = vsel %vm1190, %v2371, %v2330
    %v2374 = vsel %vm1190, %v2372, %v2332
    %v2375 = vsel %vm1192, %v2373, %v2338
    %v2376 = vsel %vm1192, %v2374, %v2340
    %v2377 = vsel %vm1194, %v2375, %v2346
    %v2378 = vsel %vm1194, %v2376, %v2348
    %v2379 = vld [vmem:[%s16] sm:$0xff]
    %v2380 = vld [vmem:[%s16 + $0x8] sm:$0xff]
    %v2381 = vld [vmem:[%s16 + $0x10] sm:$0xff]
    %v2382 = vld [vmem:[%s16 + $0x18] sm:$0xff]
    %v2383 = vld [vmem:[%s16 + $0x20] sm:$0xff]
    %v2384 = vld [vmem:[%s16 + $0x28] sm:$0xff]
    %v2385 = vld [vmem:[%s16 + $0x30] sm:$0xff]
    %v2386 = vld [vmem:[%s16 + $0x38] sm:$0xff]
    %v2387 = vld [vmem:[%s16 + $0x40] sm:$0xff]
    %v2388 = vld [vmem:[%s16 + $0x48] sm:$0xff]
    %v2389 = vld [vmem:[%s16 + $0x50] sm:$0xff]
    %v2390 = vld [vmem:[%s16 + $0x58] sm:$0xff]
    %v2391 = vld [vmem:[%s16 + $0x60] sm:$0xff]
    %v2392 = vld [vmem:[%s16 + $0x68] sm:$0xff]
    %v2393 = vld [vmem:[%s16 + $0x70] sm:$0xff]
    %v2394 = vld [vmem:[%s16 + $0x78] sm:$0xff]
    %v2395 = vld [vmem:[%s16 + $0x80] sm:$0xff]
    %v2396 = vld [vmem:[%s16 + $0x88] sm:$0xff]
    %v2397 = vld [vmem:[%s16 + $0x90] sm:$0xff]
    %v2398 = vld [vmem:[%s16 + $0x98] sm:$0xff]
    %v2399 = vld [vmem:[%s16 + $0xa0] sm:$0xff]
    %v2400 = vld [vmem:[%s16 + $0xa8] sm:$0xff]
    %v2401 = vld [vmem:[%s16 + $0xb0] sm:$0xff]
    %v2402 = vld [vmem:[%s16 + $0xb8] sm:$0xff]
    %v2403 = vld [vmem:[%s16 + $0xc0] sm:$0xff]
    %v2404 = vld [vmem:[%s16 + $0xc8] sm:$0xff]
    %v2405 = vld [vmem:[%s16 + $0xd0] sm:$0xff]
    %v2406 = vld [vmem:[%s16 + $0xd8] sm:$0xff]
    %v2407 = vld [vmem:[%s16 + $0xe0] sm:$0xff]
    %v2408 = vld [vmem:[%s16 + $0xe8] sm:$0xff]
    %v2409 = vld [vmem:[%s16 + $0xf0] sm:$0xff]
    %v2410 = vld [vmem:[%s16 + $0xf8] sm:$0xff]
    %v2411 = vld [vmem:[%s18] sm:$0xff]
    %v2412 = vld [vmem:[%s18 + $0x8] sm:$0xff]
    %2414 = vset.pattern.permute.xlu0 0
    %2415 = vperm.xlu0 %2414, %v2411
    %v2416 = vpop.permute.xlu0 %2415
    %2419 = vset.pattern.permute.xlu0 0
    %2420 = vperm.xlu0 %2419, %v2412
    %v2421 = vpop.permute.xlu0 %2420
    %2423 = vmatprep.subr.mxu0 0.0
    %2424 = vmatpush1.msra.mxu0 %v2379
    %2425 = vmatprep.subr.mxu0 0.0
    %2426 = vmatpush1.msra.mxu0 %v2380
    %2427 = vmatprep.subr.mxu0 0.0
    %2428 = vmatpush1.msra.mxu0 %v2381
    %2429 = vmatprep.subr.mxu0 0.0
    %2430 = vmatpush1.msra.mxu0 %v2382
    %2431 = vmatprep.subr.mxu0 0.0
    %2432 = vmatpush1.msra.mxu0 %v2383
    %2433 = vmatprep.subr.mxu0 0.0
    %2434 = vmatpush1.msra.mxu0 %v2384
    %2435 = vmatprep.subr.mxu0 0.0
    %2436 = vmatpush1.msra.mxu0 %v2385
    %2437 = vmatprep.subr.mxu0 0.0
    %2438 = vmatpush1.msra.mxu0 %v2386
    %2439 = vmatprep.subr.mxu0 0.0
    %2440 = vmatpush1.msra.mxu0 %v2387
    %2441 = vmatprep.subr.mxu0 0.0
    %2442 = vmatpush1.msra.mxu0 %v2388
    %2443 = vmatprep.subr.mxu0 0.0
    %2444 = vmatpush1.msra.mxu0 %v2389
    %2445 = vmatprep.subr.mxu0 0.0
    %2446 = vmatpush1.msra.mxu0 %v2390
    %2447 = vmatprep.subr.mxu0 0.0
    %2448 = vmatpush1.msra.mxu0 %v2391
    %2449 = vmatprep.subr.mxu0 0.0
    %2450 = vmatpush1.msra.mxu0 %v2392
    %2451 = vmatprep.subr.mxu0 0.0
    %2452 = vmatpush1.msra.mxu0 %v2393
    %2453 = vmatprep.subr.mxu0 0.0
    %2454 = vmatpush1.msra.mxu0 %v2394
    %2455 = vmatprep.subr.mxu0 0.0
    %2456 = vmatpush1.msra.mxu0 %v2395
    %2457 = vmatprep.subr.mxu0 0.0
    %2458 = vmatpush1.msra.mxu0 %v2396
    %2459 = vmatprep.subr.mxu0 0.0
    %2460 = vmatpush1.msra.mxu0 %v2397
    %2461 = vmatprep.subr.mxu0 0.0
    %2462 = vmatpush1.msra.mxu0 %v2398
    %2463 = vmatprep.subr.mxu0 0.0
    %2464 = vmatpush1.msra.mxu0 %v2399
    %2465 = vmatprep.subr.mxu0 0.0
    %2466 = vmatpush1.msra.mxu0 %v2400
    %2467 = vmatprep.subr.mxu0 0.0
    %2468 = vmatpush1.msra.mxu0 %v2401
    %2469 = vmatprep.subr.mxu0 0.0
    %2470 = vmatpush1.msra.mxu0 %v2402
    %2471 = vmatprep.subr.mxu0 0.0
    %2472 = vmatpush1.msra.mxu0 %v2403
    %2473 = vmatprep.subr.mxu0 0.0
    %2474 = vmatpush1.msra.mxu0 %v2404
    %2475 = vmatprep.subr.mxu0 0.0
    %2476 = vmatpush1.msra.mxu0 %v2405
    %2477 = vmatprep.subr.mxu0 0.0
    %2478 = vmatpush1.msra.mxu0 %v2406
    %2479 = vmatprep.subr.mxu0 0.0
    %2480 = vmatpush1.msra.mxu0 %v2407
    %2481 = vmatprep.subr.mxu0 0.0
    %2482 = vmatpush1.msra.mxu0 %v2408
    %2483 = vmatprep.subr.mxu0 0.0
    %2484 = vmatpush1.msra.mxu0 %v2409
    %2485 = vmatprep.subr.mxu0 0.0
    %2486 = vmatpush1.msra.mxu0 %v2410
    %2487 = vmatprep.mubr.f32.mxu0 %v2377
    %2488 = vmatmul.mubr.f32.gmra.mrb[0].mxu0 %v2363
    %v2489 = vpop.f32.mrb[0].mxu0
    %v2490 = vadd.f32 %v2416, %v2489
    %v2491 = vpop.f32.mrb[0].mxu0
    %2492 = vmatprep.mubr.f32.mxu0 %v2378
    %2493 = vmatmul.mubr.f32.gmra.mrb[0].mxu0 %v2364
    %v2494 = vpop.f32.mrb[0].mxu0
    %v2495 = vadd.f32 %v2421, %v2494
    %v2496 = vpop.f32.mrb[0].mxu0
    %2497 = vdwg.mxu0
    %v2498 = vmax.f32 %v2490, 0.0
    %v2499 = vmax.f32 %v2495, 0.0
    %v2500 = vld [vmem:[%s20] sm:$0xff]
    %v2501 = vld [vmem:[%s20 + $0x8] sm:$0xff]
    %v2502 = vld [vmem:[%s20 + $0x10] sm:$0xff]
    %v2503 = vld [vmem:[%s20 + $0x18] sm:$0xff]
    %v2505 = vsel %vm1184, %v2500, 0
    %v2508 = vsel %vm1184, %v2501, 0
    %v2511 = vsel %vm1184, %v2502, 0
    %v2514 = vsel %vm1184, %v2503, 0
    %2516 = vmatprep.subr.mxu0 0.0
    %2517 = vmatpush1.msra.mxu0 %v2498
    %2518 = vmatprep.subr.mxu0 0.0
    %2519 = vmatpush1.msra.mxu0 %v2499
    %2520 = vmatprep.subr.mxu0 0.0
    %2521 = vmatpush1.msra.mxu0 0.0
    %2522 = vmatprep.subr.mxu0 0.0
    %2523 = vmatpush1.msra.mxu0 0.0
    %2524 = vmatprep.subr.mxu0 0.0
    %2525 = vmatpush1.msra.mxu0 0.0
    %2526 = vmatprep.subr.mxu0 0.0
    %2527 = vmatpush1.msra.mxu0 0.0
    %2528 = vmatprep.subr.mxu0 0.0
    %2529 = vmatpush1.msra.mxu0 0.0
    %2530 = vmatprep.subr.mxu0 0.0
    %2531 = vmatpush1.msra.mxu0 0.0
    %2532 = vmatprep.subr.mxu0 0.0
    %2533 = vmatpush1.msra.mxu0 0.0
    %2534 = vmatprep.subr.mxu0 0.0
    %2535 = vmatpush1.msra.mxu0 0.0
    %2536 = vmatprep.subr.mxu0 0.0
    %2537 = vmatpush1.msra.mxu0 0.0
    %2538 = vmatprep.subr.mxu0 0.0
    %2539 = vmatpush1.msra.mxu0 0.0
    %2540 = vmatprep.subr.mxu0 0.0
    %2541 = vmatpush1.msra.mxu0 0.0
    %2542 = vmatprep.subr.mxu0 0.0
    %2543 = vmatpush1.msra.mxu0 0.0
    %2544 = vmatprep.subr.mxu0 0.0
    %2545 = vmatpush1.msra.mxu0 0.0
    %2546 = vmatprep.subr.mxu0 0.0
    %2547 = vmatpush1.msra.mxu0 0.0
    %2548 = vmatprep.subr.mxu0 0.0
    %2549 = vmatpush1.msra.mxu0 0.0
    %2550 = vmatprep.subr.mxu0 0.0
    %2551 = vmatpush1.msra.mxu0 0.0
    %2552 = vmatprep.subr.mxu0 0.0
    %2553 = vmatpush1.msra.mxu0 0.0
    %2554 = vmatprep.subr.mxu0 0.0
    %2555 = vmatpush1.msra.mxu0 0.0
    %2556 = vmatprep.subr.mxu0 0.0
    %2557 = vmatpush1.msra.mxu0 0.0
    %2558 = vmatprep.subr.mxu0 0.0
    %2559 = vmatpush1.msra.mxu0 0.0
    %2560 = vmatprep.subr.mxu0 0.0
    %2561 = vmatpush1.msra.mxu0 0.0
    %2562 = vmatprep.subr.mxu0 0.0
    %2563 = vmatpush1.msra.mxu0 0.0
    %2564 = vmatprep.subr.mxu0 0.0
    %2565 = vmatpush1.msra.mxu0 0.0
    %2566 = vmatprep.subr.mxu0 0.0
    %2567 = vmatpush1.msra.mxu0 0.0
    %2568 = vmatprep.subr.mxu0 0.0
    %2569 = vmatpush1.msra.mxu0 0.0
    %2570 = vmatprep.subr.mxu0 0.0
    %2571 = vmatpush1.msra.mxu0 0.0
    %2572 = vmatprep.subr.mxu0 0.0
    %2573 = vmatpush1.msra.mxu0 0.0
    %2574 = vmatprep.subr.mxu0 0.0
    %2575 = vmatpush1.msra.mxu0 0.0
    %2576 = vmatprep.subr.mxu0 0.0
    %2577 = vmatpush1.msra.mxu0 0.0
    %2578 = vmatprep.subr.mxu0 0.0
    %2579 = vmatpush1.msra.mxu0 0.0
    %2580 = vmatprep.mubr.f32.mxu0 0.0
    %2581 = vmatmul.mubr.f32.gmra.mrb[0].mxu0 %v2505
    %v2582 = vpop.f32.mrb[0].mxu0
    %v2583 = vadd.f32 0.0, %v2582
    %v2584 = vpop.f32.mrb[0].mxu0
    %2585 = vmatprep.mubr.f32.mxu0 0.0
    %2586 = vmatmul.mubr.f32.gmra.mrb[0].mxu0 %v2508
    %v2587 = vpop.f32.mrb[0].mxu0
    %v2588 = vadd.f32 0.0, %v2587
    %v2589 = vpop.f32.mrb[0].mxu0
    %2590 = vmatprep.mubr.f32.mxu0 0.0
    %2591 = vmatmul.mubr.f32.gmra.mrb[0].mxu0 %v2511
    %v2592 = vpop.f32.mrb[0].mxu0
    %v2593 = vadd.f32 0.0, %v2592
    %v2594 = vpop.f32.mrb[0].mxu0
    %2595 = vmatprep.mubr.f32.mxu0 0.0
    %2596 = vmatmul.mubr.f32.gmra.mrb[0].mxu0 %v2514
    %v2597 = vpop.f32.mrb[0].mxu0
    %v2598 = vadd.f32 0.0, %v2597
    %v2599 = vpop.f32.mrb[0].mxu0
    %2600 = vdwg.mxu0
    %v2602 = vrot.slane %v2583, 2
    %2603 = vrot.lane.b32.xlu0 %v2602, 64
    %v2604 = vpop.permute.xlu0 %2603
    %v2606 = vrot.slane %v2583, 4
    %v2608 = vrot.slane %v2583, 6
    %2609 = vrot.lane.b32.xlu0 %v2608, 64
    %v2610 = vpop.permute.xlu0 %2609
    %v2613 = vrot.slane %v2588, 2
    %2614 = vrot.lane.b32.xlu0 %v2613, 64
    %v2615 = vpop.permute.xlu0 %2614
    %v2617 = vrot.slane %v2588, 4
    %v2619 = vrot.slane %v2588, 6
    %2620 = vrot.lane.b32.xlu0 %v2619, 64
    %v2621 = vpop.permute.xlu0 %2620
    %v2624 = vrot.slane %v2593, 2
    %2625 = vrot.lane.b32.xlu0 %v2624, 64
    %v2626 = vpop.permute.xlu0 %2625
    %v2628 = vrot.slane %v2593, 4
    %v2630 = vrot.slane %v2593, 6
    %2631 = vrot.lane.b32.xlu0 %v2630, 64
    %v2632 = vpop.permute.xlu0 %2631
    %v2635 = vrot.slane %v2598, 2
    %2636 = vrot.lane.b32.xlu0 %v2635, 64
    %v2637 = vpop.permute.xlu0 %2636
    %v2639 = vrot.slane %v2598, 4
    %v2641 = vrot.slane %v2598, 6
    %2642 = vrot.lane.b32.xlu0 %v2641, 64
    %v2643 = vpop.permute.xlu0 %2642
    %v2645 = vsel %vm833, %v2583, %v2604
    %v2646 = vsel %vm833, %v2606, %v2610
    %v2647 = vsel %vm833, %v2588, %v2615
    %v2648 = vsel %vm833, %v2617, %v2621
    %v2649 = vsel %vm833, %v2593, %v2626
    %v2650 = vsel %vm833, %v2628, %v2632
    %v2651 = vsel %vm833, %v2598, %v2637
    %v2652 = vsel %vm833, %v2639, %v2643
    %v2653 = vld [vmem:[#allocation5] sm:$0xff]
    %v2654 = vld [vmem:[#allocation5 + $0x8] sm:$0xff]
    %v2655 = vld [vmem:[#allocation5 + $0x10] sm:$0xff]
    %v2656 = vld [vmem:[#allocation5 + $0x18] sm:$0xff]
    %v2657 = vld [vmem:[#allocation5 + $0x20] sm:$0xff]
    %v2658 = vld [vmem:[#allocation5 + $0x28] sm:$0xff]
    %v2659 = vld [vmem:[#allocation5 + $0x30] sm:$0xff]
    %v2660 = vld [vmem:[#allocation5 + $0x38] sm:$0xff]
    %v2661 = vld [vmem:[#allocation5 + $0x40] sm:$0xff]
    %v2662 = vld [vmem:[#allocation5 + $0x48] sm:$0xff]
    %v2663 = vld [vmem:[#allocation5 + $0x50] sm:$0xff]
    %v2664 = vld [vmem:[#allocation5 + $0x58] sm:$0xff]
    %v2665 = vld [vmem:[#allocation5 + $0x60] sm:$0xff]
    %v2666 = vld [vmem:[#allocation5 + $0x68] sm:$0xff]
    %v2667 = vld [vmem:[#allocation5 + $0x70] sm:$0xff]
    %v2668 = vld [vmem:[#allocation5 + $0x78] sm:$0xff]
    %v2669 = vld [vmem:[#allocation5 + $0x80] sm:$0xff]
    %v2670 = vld [vmem:[#allocation5 + $0x88] sm:$0xff]
    %v2671 = vld [vmem:[#allocation5 + $0x90] sm:$0xff]
    %v2672 = vld [vmem:[#allocation5 + $0x98] sm:$0xff]
    %v2673 = vld [vmem:[#allocation5 + $0xa0] sm:$0xff]
    %v2674 = vld [vmem:[#allocation5 + $0xa8] sm:$0xff]
    %v2675 = vld [vmem:[#allocation5 + $0xb0] sm:$0xff]
    %v2676 = vld [vmem:[#allocation5 + $0xb8] sm:$0xff]
    %v2677 = vld [vmem:[#allocation5 + $0xc0] sm:$0xff]
    %v2678 = vld [vmem:[#allocation5 + $0xc8] sm:$0xff]
    %v2679 = vld [vmem:[#allocation5 + $0xd0] sm:$0xff]
    %v2680 = vld [vmem:[#allocation5 + $0xd8] sm:$0xff]
    %v2681 = vld [vmem:[#allocation5 + $0xe0] sm:$0xff]
    %v2682 = vld [vmem:[#allocation5 + $0xe8] sm:$0xff]
    %v2683 = vld [vmem:[#allocation5 + $0xf0] sm:$0xff]
    %v2684 = vld [vmem:[#allocation5 + $0xf8] sm:$0xff]
    %v2685 = vld [vmem:[#allocation5 + $0x100] sm:$0xff]
    %v2686 = vld [vmem:[#allocation5 + $0x108] sm:$0xff]
    %v2687 = vld [vmem:[#allocation5 + $0x110] sm:$0xff]
    %v2688 = vld [vmem:[#allocation5 + $0x118] sm:$0xff]
    %v2689 = vld [vmem:[#allocation5 + $0x120] sm:$0xff]
    %v2690 = vld [vmem:[#allocation5 + $0x128] sm:$0xff]
    %v2691 = vld [vmem:[#allocation5 + $0x130] sm:$0xff]
    %v2692 = vld [vmem:[#allocation5 + $0x138] sm:$0xff]
    %v2693 = vld [vmem:[#allocation5 + $0x140] sm:$0xff]
    %v2694 = vld [vmem:[#allocation5 + $0x148] sm:$0xff]
    %v2695 = vld [vmem:[#allocation5 + $0x150] sm:$0xff]
    %v2696 = vld [vmem:[#allocation5 + $0x158] sm:$0xff]
    %v2697 = vld [vmem:[#allocation5 + $0x160] sm:$0xff]
    %v2698 = vld [vmem:[#allocation5 + $0x168] sm:$0xff]
    %v2699 = vld [vmem:[#allocation5 + $0x170] sm:$0xff]
    %v2700 = vld [vmem:[#allocation5 + $0x178] sm:$0xff]
    %v2701 = vld [vmem:[#allocation5 + $0x180] sm:$0xff]
    %v2702 = vld [vmem:[#allocation5 + $0x188] sm:$0xff]
    %v2703 = vld [vmem:[#allocation5 + $0x190] sm:$0xff]
    %v2704 = vld [vmem:[#allocation5 + $0x198] sm:$0xff]
    %v2705 = vld [vmem:[#allocation5 + $0x1a0] sm:$0xff]
    %v2706 = vld [vmem:[#allocation5 + $0x1a8] sm:$0xff]
    %v2707 = vld [vmem:[#allocation5 + $0x1b0] sm:$0xff]
    %v2708 = vld [vmem:[#allocation5 + $0x1b8] sm:$0xff]
    %v2709 = vld [vmem:[#allocation5 + $0x1c0] sm:$0xff]
    %v2710 = vld [vmem:[#allocation5 + $0x1c8] sm:$0xff]
    %v2711 = vld [vmem:[#allocation5 + $0x1d0] sm:$0xff]
    %v2712 = vld [vmem:[#allocation5 + $0x1d8] sm:$0xff]
    %v2713 = vld [vmem:[#allocation5 + $0x1e0] sm:$0xff]
    %v2714 = vld [vmem:[#allocation5 + $0x1e8] sm:$0xff]
    %v2715 = vld [vmem:[#allocation5 + $0x1f0] sm:$0xff]
    %v2716 = vld [vmem:[#allocation5 + $0x1f8] sm:$0xff]
    %v2717 = vld [vmem:[#allocation5 + $0x200] sm:$0xff]
    %v2718 = vld [vmem:[#allocation5 + $0x208] sm:$0xff]
    %v2719 = vld [vmem:[#allocation5 + $0x210] sm:$0xff]
    %v2720 = vld [vmem:[#allocation5 + $0x218] sm:$0xff]
    %v2721 = vld [vmem:[#allocation5 + $0x220] sm:$0xff]
    %v2722 = vld [vmem:[#allocation5 + $0x228] sm:$0xff]
    %v2723 = vld [vmem:[#allocation5 + $0x230] sm:$0xff]
    %v2724 = vld [vmem:[#allocation5 + $0x238] sm:$0xff]
    %v2725 = vld [vmem:[#allocation5 + $0x240] sm:$0xff]
    %v2726 = vld [vmem:[#allocation5 + $0x248] sm:$0xff]
    %v2727 = vld [vmem:[#allocation5 + $0x250] sm:$0xff]
    %v2728 = vld [vmem:[#allocation5 + $0x258] sm:$0xff]
    %v2729 = vld [vmem:[#allocation5 + $0x260] sm:$0xff]
    %v2730 = vld [vmem:[#allocation5 + $0x268] sm:$0xff]
    %v2731 = vld [vmem:[#allocation5 + $0x270] sm:$0xff]
    %v2732 = vld [vmem:[#allocation5 + $0x278] sm:$0xff]
    %v2733 = vld [vmem:[#allocation5 + $0x280] sm:$0xff]
    %v2734 = vld [vmem:[#allocation5 + $0x288] sm:$0xff]
    %v2735 = vld [vmem:[#allocation5 + $0x290] sm:$0xff]
    %v2736 = vld [vmem:[#allocation5 + $0x298] sm:$0xff]
    %v2737 = vld [vmem:[#allocation5 + $0x2a0] sm:$0xff]
    %v2738 = vld [vmem:[#allocation5 + $0x2a8] sm:$0xff]
    %v2739 = vld [vmem:[#allocation5 + $0x2b0] sm:$0xff]
    %v2740 = vld [vmem:[#allocation5 + $0x2b8] sm:$0xff]
    %v2741 = vld [vmem:[#allocation5 + $0x2c0] sm:$0xff]
    %v2742 = vld [vmem:[#allocation5 + $0x2c8] sm:$0xff]
    %v2743 = vld [vmem:[#allocation5 + $0x2d0] sm:$0xff]
    %v2744 = vld [vmem:[#allocation5 + $0x2d8] sm:$0xff]
    %v2745 = vld [vmem:[#allocation5 + $0x2e0] sm:$0xff]
    %v2746 = vld [vmem:[#allocation5 + $0x2e8] sm:$0xff]
    %v2747 = vld [vmem:[#allocation5 + $0x2f0] sm:$0xff]
    %v2748 = vld [vmem:[#allocation5 + $0x2f8] sm:$0xff]
    %v2749 = vld [vmem:[#allocation5 + $0x300] sm:$0xff]
    %v2750 = vld [vmem:[#allocation5 + $0x308] sm:$0xff]
    %v2751 = vld [vmem:[#allocation5 + $0x310] sm:$0xff]
    %v2752 = vld [vmem:[#allocation5 + $0x318] sm:$0xff]
    %v2753 = vld [vmem:[#allocation5 + $0x320] sm:$0xff]
    %v2754 = vld [vmem:[#allocation5 + $0x328] sm:$0xff]
    %v2755 = vld [vmem:[#allocation5 + $0x330] sm:$0xff]
    %v2756 = vld [vmem:[#allocation5 + $0x338] sm:$0xff]
    %v2757 = vld [vmem:[#allocation5 + $0x340] sm:$0xff]
    %v2758 = vld [vmem:[#allocation5 + $0x348] sm:$0xff]
    %v2759 = vld [vmem:[#allocation5 + $0x350] sm:$0xff]
    %v2760 = vld [vmem:[#allocation5 + $0x358] sm:$0xff]
    %v2761 = vld [vmem:[#allocation5 + $0x360] sm:$0xff]
    %v2762 = vld [vmem:[#allocation5 + $0x368] sm:$0xff]
    %v2763 = vld [vmem:[#allocation5 + $0x370] sm:$0xff]
    %v2764 = vld [vmem:[#allocation5 + $0x378] sm:$0xff]
    %v2765 = vld [vmem:[#allocation5 + $0x380] sm:$0xff]
    %v2766 = vld [vmem:[#allocation5 + $0x388] sm:$0xff]
    %v2767 = vld [vmem:[#allocation5 + $0x390] sm:$0xff]
    %v2768 = vld [vmem:[#allocation5 + $0x398] sm:$0xff]
    %v2769 = vld [vmem:[#allocation5 + $0x3a0] sm:$0xff]
    %v2770 = vld [vmem:[#allocation5 + $0x3a8] sm:$0xff]
    %v2771 = vld [vmem:[#allocation5 + $0x3b0] sm:$0xff]
    %v2772 = vld [vmem:[#allocation5 + $0x3b8] sm:$0xff]
    %v2773 = vld [vmem:[#allocation5 + $0x3c0] sm:$0xff]
    %v2774 = vld [vmem:[#allocation5 + $0x3c8] sm:$0xff]
    %v2775 = vld [vmem:[#allocation5 + $0x3d0] sm:$0xff]
    %v2776 = vld [vmem:[#allocation5 + $0x3d8] sm:$0xff]
    %v2777 = vld [vmem:[#allocation5 + $0x3e0] sm:$0xff]
    %v2778 = vld [vmem:[#allocation5 + $0x3e8] sm:$0xff]
    %v2779 = vld [vmem:[#allocation5 + $0x3f0] sm:$0xff]
    %v2780 = vld [vmem:[#allocation5 + $0x3f8] sm:$0xff]
    %v2781 = vld [vmem:[#allocation5 + $0x400] sm:$0xff]
    %v2782 = vld [vmem:[#allocation5 + $0x408] sm:$0xff]
    %v2783 = vld [vmem:[#allocation5 + $0x410] sm:$0xff]
    %v2784 = vld [vmem:[#allocation5 + $0x418] sm:$0xff]
    %v2785 = vld [vmem:[#allocation5 + $0x420] sm:$0xff]
    %v2786 = vld [vmem:[#allocation5 + $0x428] sm:$0xff]
    %v2787 = vld [vmem:[#allocation5 + $0x430] sm:$0xff]
    %v2788 = vld [vmem:[#allocation5 + $0x438] sm:$0xff]
    %v2789 = vld [vmem:[#allocation5 + $0x440] sm:$0xff]
    %v2790 = vld [vmem:[#allocation5 + $0x448] sm:$0xff]
    %v2791 = vld [vmem:[#allocation5 + $0x450] sm:$0xff]
    %v2792 = vld [vmem:[#allocation5 + $0x458] sm:$0xff]
    %v2793 = vld [vmem:[#allocation5 + $0x460] sm:$0xff]
    %v2794 = vld [vmem:[#allocation5 + $0x468] sm:$0xff]
    %v2795 = vld [vmem:[#allocation5 + $0x470] sm:$0xff]
    %v2796 = vld [vmem:[#allocation5 + $0x478] sm:$0xff]
    %v2797 = vld [vmem:[#allocation5 + $0x480] sm:$0xff]
    %v2798 = vld [vmem:[#allocation5 + $0x488] sm:$0xff]
    %v2799 = vld [vmem:[#allocation5 + $0x490] sm:$0xff]
    %v2800 = vld [vmem:[#allocation5 + $0x498] sm:$0xff]
    %v2801 = vld [vmem:[#allocation5 + $0x4a0] sm:$0xff]
    %v2802 = vld [vmem:[#allocation5 + $0x4a8] sm:$0xff]
    %v2803 = vld [vmem:[#allocation5 + $0x4b0] sm:$0xff]
    %v2804 = vld [vmem:[#allocation5 + $0x4b8] sm:$0xff]
    %v2805 = vld [vmem:[#allocation5 + $0x4c0] sm:$0xff]
    %v2806 = vld [vmem:[#allocation5 + $0x4c8] sm:$0xff]
    %v2807 = vld [vmem:[#allocation5 + $0x4d0] sm:$0xff]
    %v2808 = vld [vmem:[#allocation5 + $0x4d8] sm:$0xff]
    %v2809 = vld [vmem:[#allocation5 + $0x4e0] sm:$0xff]
    %v2810 = vld [vmem:[#allocation5 + $0x4e8] sm:$0xff]
    %v2811 = vld [vmem:[#allocation5 + $0x4f0] sm:$0xff]
    %v2812 = vld [vmem:[#allocation5 + $0x4f8] sm:$0xff]
    %v2813 = vld [vmem:[#allocation5 + $0x500] sm:$0xff]
    %v2814 = vld [vmem:[#allocation5 + $0x508] sm:$0xff]
    %v2815 = vld [vmem:[#allocation5 + $0x510] sm:$0xff]
    %v2816 = vld [vmem:[#allocation5 + $0x518] sm:$0xff]
    %v2817 = vld [vmem:[#allocation5 + $0x520] sm:$0xff]
    %v2818 = vld [vmem:[#allocation5 + $0x528] sm:$0xff]
    %v2819 = vld [vmem:[#allocation5 + $0x530] sm:$0xff]
    %v2820 = vld [vmem:[#allocation5 + $0x538] sm:$0xff]
    %v2821 = vld [vmem:[#allocation5 + $0x540] sm:$0xff]
    %v2822 = vld [vmem:[#allocation5 + $0x548] sm:$0xff]
    %v2823 = vld [vmem:[#allocation5 + $0x550] sm:$0xff]
    %v2824 = vld [vmem:[#allocation5 + $0x558] sm:$0xff]
    %v2825 = vld [vmem:[#allocation5 + $0x560] sm:$0xff]
    %v2826 = vld [vmem:[#allocation5 + $0x568] sm:$0xff]
    %v2827 = vld [vmem:[#allocation5 + $0x570] sm:$0xff]
    %v2828 = vld [vmem:[#allocation5 + $0x578] sm:$0xff]
    %v2829 = vld [vmem:[#allocation5 + $0x580] sm:$0xff]
    %v2830 = vld [vmem:[#allocation5 + $0x588] sm:$0xff]
    %v2831 = vld [vmem:[#allocation5 + $0x590] sm:$0xff]
    %v2832 = vld [vmem:[#allocation5 + $0x598] sm:$0xff]
    %v2833 = vld [vmem:[#allocation5 + $0x5a0] sm:$0xff]
    %v2834 = vld [vmem:[#allocation5 + $0x5a8] sm:$0xff]
    %v2835 = vld [vmem:[#allocation5 + $0x5b0] sm:$0xff]
    %v2836 = vld [vmem:[#allocation5 + $0x5b8] sm:$0xff]
    %v2837 = vld [vmem:[#allocation5 + $0x5c0] sm:$0xff]
    %v2838 = vld [vmem:[#allocation5 + $0x5c8] sm:$0xff]
    %v2839 = vld [vmem:[#allocation5 + $0x5d0] sm:$0xff]
    %v2840 = vld [vmem:[#allocation5 + $0x5d8] sm:$0xff]
    %v2841 = vld [vmem:[#allocation5 + $0x5e0] sm:$0xff]
    %v2842 = vld [vmem:[#allocation5 + $0x5e8] sm:$0xff]
    %v2843 = vld [vmem:[#allocation5 + $0x5f0] sm:$0xff]
    %v2844 = vld [vmem:[#allocation5 + $0x5f8] sm:$0xff]
    %v2845 = vld [vmem:[#allocation5 + $0x600] sm:$0xff]
    %v2846 = vld [vmem:[#allocation5 + $0x608] sm:$0xff]
    %v2847 = vld [vmem:[#allocation5 + $0x610] sm:$0xff]
    %v2848 = vld [vmem:[#allocation5 + $0x618] sm:$0xff]
    %v2849 = vld [vmem:[#allocation5 + $0x620] sm:$0xff]
    %v2850 = vld [vmem:[#allocation5 + $0x628] sm:$0xff]
    %v2851 = vld [vmem:[#allocation5 + $0x630] sm:$0xff]
    %v2852 = vld [vmem:[#allocation5 + $0x638] sm:$0xff]
    %v2853 = vld [vmem:[#allocation5 + $0x640] sm:$0xff]
    %v2854 = vld [vmem:[#allocation5 + $0x648] sm:$0xff]
    %v2855 = vld [vmem:[#allocation5 + $0x650] sm:$0xff]
    %v2856 = vld [vmem:[#allocation5 + $0x658] sm:$0xff]
    %v2857 = vld [vmem:[#allocation5 + $0x660] sm:$0xff]
    %v2858 = vld [vmem:[#allocation5 + $0x668] sm:$0xff]
    %v2859 = vld [vmem:[#allocation5 + $0x670] sm:$0xff]
    %v2860 = vld [vmem:[#allocation5 + $0x678] sm:$0xff]
    %v2861 = vld [vmem:[#allocation5 + $0x680] sm:$0xff]
    %v2862 = vld [vmem:[#allocation5 + $0x688] sm:$0xff]
    %v2863 = vld [vmem:[#allocation5 + $0x690] sm:$0xff]
    %v2864 = vld [vmem:[#allocation5 + $0x698] sm:$0xff]
    %v2865 = vld [vmem:[#allocation5 + $0x6a0] sm:$0xff]
    %v2866 = vld [vmem:[#allocation5 + $0x6a8] sm:$0xff]
    %v2867 = vld [vmem:[#allocation5 + $0x6b0] sm:$0xff]
    %v2868 = vld [vmem:[#allocation5 + $0x6b8] sm:$0xff]
    %v2869 = vld [vmem:[#allocation5 + $0x6c0] sm:$0xff]
    %v2870 = vld [vmem:[#allocation5 + $0x6c8] sm:$0xff]
    %v2871 = vld [vmem:[#allocation5 + $0x6d0] sm:$0xff]
    %v2872 = vld [vmem:[#allocation5 + $0x6d8] sm:$0xff]
    %v2873 = vld [vmem:[#allocation5 + $0x6e0] sm:$0xff]
    %v2874 = vld [vmem:[#allocation5 + $0x6e8] sm:$0xff]
    %v2875 = vld [vmem:[#allocation5 + $0x6f0] sm:$0xff]
    %v2876 = vld [vmem:[#allocation5 + $0x6f8] sm:$0xff]
    %v2877 = vld [vmem:[#allocation5 + $0x700] sm:$0xff]
    %v2878 = vld [vmem:[#allocation5 + $0x708] sm:$0xff]
    %v2879 = vld [vmem:[#allocation5 + $0x710] sm:$0xff]
    %v2880 = vld [vmem:[#allocation5 + $0x718] sm:$0xff]
    %v2881 = vld [vmem:[#allocation5 + $0x720] sm:$0xff]
    %v2882 = vld [vmem:[#allocation5 + $0x728] sm:$0xff]
    %v2883 = vld [vmem:[#allocation5 + $0x730] sm:$0xff]
    %v2884 = vld [vmem:[#allocation5 + $0x738] sm:$0xff]
    %v2885 = vld [vmem:[#allocation5 + $0x740] sm:$0xff]
    %v2886 = vld [vmem:[#allocation5 + $0x748] sm:$0xff]
    %v2887 = vld [vmem:[#allocation5 + $0x750] sm:$0xff]
    %v2888 = vld [vmem:[#allocation5 + $0x758] sm:$0xff]
    %v2889 = vld [vmem:[#allocation5 + $0x760] sm:$0xff]
    %v2890 = vld [vmem:[#allocation5 + $0x768] sm:$0xff]
    %v2891 = vld [vmem:[#allocation5 + $0x770] sm:$0xff]
    %v2892 = vld [vmem:[#allocation5 + $0x778] sm:$0xff]
    %v2893 = vld [vmem:[#allocation5 + $0x780] sm:$0xff]
    %v2894 = vld [vmem:[#allocation5 + $0x788] sm:$0xff]
    %v2895 = vld [vmem:[#allocation5 + $0x790] sm:$0xff]
    %v2896 = vld [vmem:[#allocation5 + $0x798] sm:$0xff]
    %v2897 = vld [vmem:[#allocation5 + $0x7a0] sm:$0xff]
    %v2898 = vld [vmem:[#allocation5 + $0x7a8] sm:$0xff]
    %v2899 = vld [vmem:[#allocation5 + $0x7b0] sm:$0xff]
    %v2900 = vld [vmem:[#allocation5 + $0x7b8] sm:$0xff]
    %v2901 = vld [vmem:[#allocation5 + $0x7c0] sm:$0xff]
    %v2902 = vld [vmem:[#allocation5 + $0x7c8] sm:$0xff]
    %v2903 = vld [vmem:[#allocation5 + $0x7d0] sm:$0xff]
    %v2904 = vld [vmem:[#allocation5 + $0x7d8] sm:$0xff]
    %v2905 = vld [vmem:[#allocation5 + $0x7e0] sm:$0xff]
    %v2906 = vld [vmem:[#allocation5 + $0x7e8] sm:$0xff]
    %v2907 = vld [vmem:[#allocation5 + $0x7f0] sm:$0xff]
    %v2908 = vld [vmem:[#allocation5 + $0x7f8] sm:$0xff]
    %v2909 = vld [vmem:[%s21] sm:$0x3]
    %2911 = vset.pattern.permute.xlu0 0
    %2912 = vperm.xlu0 %2911, %v2909
    %v2913 = vpop.permute.xlu0 %2912
    %2915 = vmatprep.subr.mxu0 %v2654
    %2916 = vmatpush1.msra.mxu0 %v2653
    %2917 = vmatprep.subr.mxu0 %v2656
    %2918 = vmatpush1.msra.mxu0 %v2655
    %2919 = vmatprep.subr.mxu0 %v2658
    %2920 = vmatpush1.msra.mxu0 %v2657
    %2921 = vmatprep.subr.mxu0 %v2660
    %2922 = vmatpush1.msra.mxu0 %v2659
    %2923 = vmatprep.subr.mxu0 %v2662
    %2924 = vmatpush1.msra.mxu0 %v2661
    %2925 = vmatprep.subr.mxu0 %v2664
    %2926 = vmatpush1.msra.mxu0 %v2663
    %2927 = vmatprep.subr.mxu0 %v2666
    %2928 = vmatpush1.msra.mxu0 %v2665
    %2929 = vmatprep.subr.mxu0 %v2668
    %2930 = vmatpush1.msra.mxu0 %v2667
    %2931 = vmatprep.subr.mxu0 %v2670
    %2932 = vmatpush1.msra.mxu0 %v2669
    %2933 = vmatprep.subr.mxu0 %v2672
    %2934 = vmatpush1.msra.mxu0 %v2671
    %2935 = vmatprep.subr.mxu0 %v2674
    %2936 = vmatpush1.msra.mxu0 %v2673
    %2937 = vmatprep.subr.mxu0 %v2676
    %2938 = vmatpush1.msra.mxu0 %v2675
    %2939 = vmatprep.subr.mxu0 %v2678
    %2940 = vmatpush1.msra.mxu0 %v2677
    %2941 = vmatprep.subr.mxu0 %v2680
    %2942 = vmatpush1.msra.mxu0 %v2679
    %2943 = vmatprep.subr.mxu0 %v2682
    %2944 = vmatpush1.msra.mxu0 %v2681
    %2945 = vmatprep.subr.mxu0 %v2684
    %2946 = vmatpush1.msra.mxu0 %v2683
    %2947 = vmatprep.subr.mxu0 %v2686
    %2948 = vmatpush1.msra.mxu0 %v2685
    %2949 = vmatprep.subr.mxu0 %v2688
    %2950 = vmatpush1.msra.mxu0 %v2687
    %2951 = vmatprep.subr.mxu0 %v2690
    %2952 = vmatpush1.msra.mxu0 %v2689
    %2953 = vmatprep.subr.mxu0 %v2692
    %2954 = vmatpush1.msra.mxu0 %v2691
    %2955 = vmatprep.subr.mxu0 %v2694
    %2956 = vmatpush1.msra.mxu0 %v2693
    %2957 = vmatprep.subr.mxu0 %v2696
    %2958 = vmatpush1.msra.mxu0 %v2695
    %2959 = vmatprep.subr.mxu0 %v2698
    %2960 = vmatpush1.msra.mxu0 %v2697
    %2961 = vmatprep.subr.mxu0 %v2700
    %2962 = vmatpush1.msra.mxu0 %v2699
    %2963 = vmatprep.subr.mxu0 %v2702
    %2964 = vmatpush1.msra.mxu0 %v2701
    %2965 = vmatprep.subr.mxu0 %v2704
    %2966 = vmatpush1.msra.mxu0 %v2703
    %2967 = vmatprep.subr.mxu0 %v2706
    %2968 = vmatpush1.msra.mxu0 %v2705
    %2969 = vmatprep.subr.mxu0 %v2708
    %2970 = vmatpush1.msra.mxu0 %v2707
    %2971 = vmatprep.subr.mxu0 %v2710
    %2972 = vmatpush1.msra.mxu0 %v2709
    %2973 = vmatprep.subr.mxu0 %v2712
    %2974 = vmatpush1.msra.mxu0 %v2711
    %2975 = vmatprep.subr.mxu0 %v2714
    %2976 = vmatpush1.msra.mxu0 %v2713
    %2977 = vmatprep.subr.mxu0 %v2716
    %2978 = vmatpush1.msra.mxu0 %v2715
    %2979 = vmatprep.mubr.f32.mxu0 %v2646
    %2980 = vmatmul.mubr.f32.gmra.mrb[0].mxu0 %v2645
    %v2981 = vpop.f32.mrb[0].mxu0
    %v2982 = vadd.f32 %v2913, %v2981
    %v2983 = vpop.f32.mrb[0].mxu0
    %v2984 = vadd.f32 %v2913, %v2983
    %2985 = vdwg.mxu0
    %2986 = vmatprep.subr.mxu0 %v2718
    %2987 = vmatpush1.msra.mxu0 %v2717
    %2988 = vmatprep.subr.mxu0 %v2720
    %2989 = vmatpush1.msra.mxu0 %v2719
    %2990 = vmatprep.subr.mxu0 %v2722
    %2991 = vmatpush1.msra.mxu0 %v2721
    %2992 = vmatprep.subr.mxu0 %v2724
    %2993 = vmatpush1.msra.mxu0 %v2723
    %2994 = vmatprep.subr.mxu0 %v2726
    %2995 = vmatpush1.msra.mxu0 %v2725
    %2996 = vmatprep.subr.mxu0 %v2728
    %2997 = vmatpush1.msra.mxu0 %v2727
    %2998 = vmatprep.subr.mxu0 %v2730
    %2999 = vmatpush1.msra.mxu0 %v2729
    %3000 = vmatprep.subr.mxu0 %v2732
    %3001 = vmatpush1.msra.mxu0 %v2731
    %3002 = vmatprep.subr.mxu0 %v2734
    %3003 = vmatpush1.msra.mxu0 %v2733
    %3004 = vmatprep.subr.mxu0 %v2736
    %3005 = vmatpush1.msra.mxu0 %v2735
    %3006 = vmatprep.subr.mxu0 %v2738
    %3007 = vmatpush1.msra.mxu0 %v2737
    %3008 = vmatprep.subr.mxu0 %v2740
    %3009 = vmatpush1.msra.mxu0 %v2739
    %3010 = vmatprep.subr.mxu0 %v2742
    %3011 = vmatpush1.msra.mxu0 %v2741
    %3012 = vmatprep.subr.mxu0 %v2744
    %3013 = vmatpush1.msra.mxu0 %v2743
    %3014 = vmatprep.subr.mxu0 %v2746
    %3015 = vmatpush1.msra.mxu0 %v2745
    %3016 = vmatprep.subr.mxu0 %v2748
    %3017 = vmatpush1.msra.mxu0 %v2747
    %3018 = vmatprep.subr.mxu0 %v2750
    %3019 = vmatpush1.msra.mxu0 %v2749
    %3020 = vmatprep.subr.mxu0 %v2752
    %3021 = vmatpush1.msra.mxu0 %v2751
    %3022 = vmatprep.subr.mxu0 %v2754
    %3023 = vmatpush1.msra.mxu0 %v2753
    %3024 = vmatprep.subr.mxu0 %v2756
    %3025 = vmatpush1.msra.mxu0 %v2755
    %3026 = vmatprep.subr.mxu0 %v2758
    %3027 = vmatpush1.msra.mxu0 %v2757
    %3028 = vmatprep.subr.mxu0 %v2760
    %3029 = vmatpush1.msra.mxu0 %v2759
    %3030 = vmatprep.subr.mxu0 %v2762
    %3031 = vmatpush1.msra.mxu0 %v2761
    %3032 = vmatprep.subr.mxu0 %v2764
    %3033 = vmatpush1.msra.mxu0 %v2763
    %3034 = vmatprep.subr.mxu0 %v2766
    %3035 = vmatpush1.msra.mxu0 %v2765
    %3036 = vmatprep.subr.mxu0 %v2768
    %3037 = vmatpush1.msra.mxu0 %v2767
    %3038 = vmatprep.subr.mxu0 %v2770
    %3039 = vmatpush1.msra.mxu0 %v2769
    %3040 = vmatprep.subr.mxu0 %v2772
    %3041 = vmatpush1.msra.mxu0 %v2771
    %3042 = vmatprep.subr.mxu0 %v2774
    %3043 = vmatpush1.msra.mxu0 %v2773
    %3044 = vmatprep.subr.mxu0 %v2776
    %3045 = vmatpush1.msra.mxu0 %v2775
    %3046 = vmatprep.subr.mxu0 %v2778
    %3047 = vmatpush1.msra.mxu0 %v2777
    %3048 = vmatprep.subr.mxu0 %v2780
    %3049 = vmatpush1.msra.mxu0 %v2779
    %3050 = vmatprep.mubr.f32.mxu0 %v2648
    %3051 = vmatmul.mubr.f32.gmra.mrb[0].mxu0 %v2647
    %v3052 = vpop.f32.mrb[0].mxu0
    %v3053 = vadd.f32 %v2982, %v3052
    %v3054 = vpop.f32.mrb[0].mxu0
    %v3055 = vadd.f32 %v2984, %v3054
    %3056 = vdwg.mxu0
    %3057 = vmatprep.subr.mxu0 %v2782
    %3058 = vmatpush1.msra.mxu0 %v2781
    %3059 = vmatprep.subr.mxu0 %v2784
    %3060 = vmatpush1.msra.mxu0 %v2783
    %3061 = vmatprep.subr.mxu0 %v2786
    %3062 = vmatpush1.msra.mxu0 %v2785
    %3063 = vmatprep.subr.mxu0 %v2788
    %3064 = vmatpush1.msra.mxu0 %v2787
    %3065 = vmatprep.subr.mxu0 %v2790
    %3066 = vmatpush1.msra.mxu0 %v2789
    %3067 = vmatprep.subr.mxu0 %v2792
    %3068 = vmatpush1.msra.mxu0 %v2791
    %3069 = vmatprep.subr.mxu0 %v2794
    %3070 = vmatpush1.msra.mxu0 %v2793
    %3071 = vmatprep.subr.mxu0 %v2796
    %3072 = vmatpush1.msra.mxu0 %v2795
    %3073 = vmatprep.subr.mxu0 %v2798
    %3074 = vmatpush1.msra.mxu0 %v2797
    %3075 = vmatprep.subr.mxu0 %v2800
    %3076 = vmatpush1.msra.mxu0 %v2799
    %3077 = vmatprep.subr.mxu0 %v2802
    %3078 = vmatpush1.msra.mxu0 %v2801
    %3079 = vmatprep.subr.mxu0 %v2804
    %3080 = vmatpush1.msra.mxu0 %v2803
    %3081 = vmatprep.subr.mxu0 %v2806
    %3082 = vmatpush1.msra.mxu0 %v2805
    %3083 = vmatprep.subr.mxu0 %v2808
    %3084 = vmatpush1.msra.mxu0 %v2807
    %3085 = vmatprep.subr.mxu0 %v2810
    %3086 = vmatpush1.msra.mxu0 %v2809
    %3087 = vmatprep.subr.mxu0 %v2812
    %3088 = vmatpush1.msra.mxu0 %v2811
    %3089 = vmatprep.subr.mxu0 %v2814
    %3090 = vmatpush1.msra.mxu0 %v2813
    %3091 = vmatprep.subr.mxu0 %v2816
    %3092 = vmatpush1.msra.mxu0 %v2815
    %3093 = vmatprep.subr.mxu0 %v2818
    %3094 = vmatpush1.msra.mxu0 %v2817
    %3095 = vmatprep.subr.mxu0 %v2820
    %3096 = vmatpush1.msra.mxu0 %v2819
    %3097 = vmatprep.subr.mxu0 %v2822
    %3098 = vmatpush1.msra.mxu0 %v2821
    %3099 = vmatprep.subr.mxu0 %v2824
    %3100 = vmatpush1.msra.mxu0 %v2823
    %3101 = vmatprep.subr.mxu0 %v2826
    %3102 = vmatpush1.msra.mxu0 %v2825
    %3103 = vmatprep.subr.mxu0 %v2828
    %3104 = vmatpush1.msra.mxu0 %v2827
    %3105 = vmatprep.subr.mxu0 %v2830
    %3106 = vmatpush1.msra.mxu0 %v2829
    %3107 = vmatprep.subr.mxu0 %v2832
    %3108 = vmatpush1.msra.mxu0 %v2831
    %3109 = vmatprep.subr.mxu0 %v2834
    %3110 = vmatpush1.msra.mxu0 %v2833
    %3111 = vmatprep.subr.mxu0 %v2836
    %3112 = vmatpush1.msra.mxu0 %v2835
    %3113 = vmatprep.subr.mxu0 %v2838
    %3114 = vmatpush1.msra.mxu0 %v2837
    %3115 = vmatprep.subr.mxu0 %v2840
    %3116 = vmatpush1.msra.mxu0 %v2839
    %3117 = vmatprep.subr.mxu0 %v2842
    %3118 = vmatpush1.msra.mxu0 %v2841
    %3119 = vmatprep.subr.mxu0 %v2844
    %3120 = vmatpush1.msra.mxu0 %v2843
    %3121 = vmatprep.mubr.f32.mxu0 %v2650
    %3122 = vmatmul.mubr.f32.gmra.mrb[0].mxu0 %v2649
    %v3123 = vpop.f32.mrb[0].mxu0
    %v3124 = vadd.f32 %v3053, %v3123
    %v3125 = vpop.f32.mrb[0].mxu0
    %v3126 = vadd.f32 %v3055, %v3125
    %3127 = vdwg.mxu0
    %3128 = vmatprep.subr.mxu0 %v2846
    %3129 = vmatpush1.msra.mxu0 %v2845
    %3130 = vmatprep.subr.mxu0 %v2848
    %3131 = vmatpush1.msra.mxu0 %v2847
    %3132 = vmatprep.subr.mxu0 %v2850
    %3133 = vmatpush1.msra.mxu0 %v2849
    %3134 = vmatprep.subr.mxu0 %v2852
    %3135 = vmatpush1.msra.mxu0 %v2851
    %3136 = vmatprep.subr.mxu0 %v2854
    %3137 = vmatpush1.msra.mxu0 %v2853
    %3138 = vmatprep.subr.mxu0 %v2856
    %3139 = vmatpush1.msra.mxu0 %v2855
    %3140 = vmatprep.subr.mxu0 %v2858
    %3141 = vmatpush1.msra.mxu0 %v2857
    %3142 = vmatprep.subr.mxu0 %v2860
    %3143 = vmatpush1.msra.mxu0 %v2859
    %3144 = vmatprep.subr.mxu0 %v2862
    %3145 = vmatpush1.msra.mxu0 %v2861
    %3146 = vmatprep.subr.mxu0 %v2864
    %3147 = vmatpush1.msra.mxu0 %v2863
    %3148 = vmatprep.subr.mxu0 %v2866
    %3149 = vmatpush1.msra.mxu0 %v2865
    %3150 = vmatprep.subr.mxu0 %v2868
    %3151 = vmatpush1.msra.mxu0 %v2867
    %3152 = vmatprep.subr.mxu0 %v2870
    %3153 = vmatpush1.msra.mxu0 %v2869
    %3154 = vmatprep.subr.mxu0 %v2872
    %3155 = vmatpush1.msra.mxu0 %v2871
    %3156 = vmatprep.subr.mxu0 %v2874
    %3157 = vmatpush1.msra.mxu0 %v2873
    %3158 = vmatprep.subr.mxu0 %v2876
    %3159 = vmatpush1.msra.mxu0 %v2875
    %3160 = vmatprep.subr.mxu0 %v2878
    %3161 = vmatpush1.msra.mxu0 %v2877
    %3162 = vmatprep.subr.mxu0 %v2880
    %3163 = vmatpush1.msra.mxu0 %v2879
    %3164 = vmatprep.subr.mxu0 %v2882
    %3165 = vmatpush1.msra.mxu0 %v2881
    %3166 = vmatprep.subr.mxu0 %v2884
    %3167 = vmatpush1.msra.mxu0 %v2883
    %3168 = vmatprep.subr.mxu0 %v2886
    %3169 = vmatpush1.msra.mxu0 %v2885
    %3170 = vmatprep.subr.mxu0 %v2888
    %3171 = vmatpush1.msra.mxu0 %v2887
    %3172 = vmatprep.subr.mxu0 %v2890
    %3173 = vmatpush1.msra.mxu0 %v2889
    %3174 = vmatprep.subr.mxu0 %v2892
    %3175 = vmatpush1.msra.mxu0 %v2891
    %3176 = vmatprep.subr.mxu0 %v2894
    %3177 = vmatpush1.msra.mxu0 %v2893
    %3178 = vmatprep.subr.mxu0 %v2896
    %3179 = vmatpush1.msra.mxu0 %v2895
    %3180 = vmatprep.subr.mxu0 %v2898
    %3181 = vmatpush1.msra.mxu0 %v2897
    %3182 = vmatprep.subr.mxu0 %v2900
    %3183 = vmatpush1.msra.mxu0 %v2899
    %3184 = vmatprep.subr.mxu0 %v2902
    %3185 = vmatpush1.msra.mxu0 %v2901
    %3186 = vmatprep.subr.mxu0 %v2904
    %3187 = vmatpush1.msra.mxu0 %v2903
    %3188 = vmatprep.subr.mxu0 %v2906
    %3189 = vmatpush1.msra.mxu0 %v2905
    %3190 = vmatprep.subr.mxu0 %v2908
    %3191 = vmatpush1.msra.mxu0 %v2907
    %3192 = vmatprep.mubr.f32.mxu0 %v2652
    %3193 = vmatmul.mubr.f32.gmra.mrb[0].mxu0 %v2651
    %v3194 = vpop.f32.mrb[0].mxu0
    %v3195 = vadd.f32 %v3124, %v3194
    %v3196 = vpop.f32.mrb[0].mxu0
    %v3197 = vadd.f32 %v3126, %v3196
    %3198 = vdwg.mxu0
    %v3199 = vsub.f32 0.0, %v3195
    %v3200 = vsub.f32 0.0, %v3197
    %v3201 = vmul.f32 %v3199, 1.442695
    %v3202 = vpow.pop %v3201
    %v3203 = vmul.f32 %v3200, 1.442695
    %v3204 = vpow.pop %v3203
    %v3205 = vadd.f32 %v3202, 1.0
    %v3206 = vadd.f32 %v3204, 1.0
    %v3207 = vrcp.pop %v3205
    %v3208 = vrcp.pop %v3206
    %v3211 = vcombine.low %v3207, %v3208
    %v3213 = vunpack.c.l.s4 1983009808
    %v3214 = vunpack.c.0.s8 %v3213
    %v3215 = vlaneseq
    %v3216 = vshrl.u32 %v3215, 7
    %v3217 = vsub.s32 %v3214, %v3216
    %v3218 = vrot.slane %v3211, %v3217
    %3220 = vst [vmem:[%s24] sm:$0xf] %v3218
    // Predicated region
    $region98: #{simple_vae_forward.1} parent=1 // pred_check
      _
    $region99: #{simple_vae_forward.1} parent=1 // pred_check_branch
      %3222 = sbr.rel (0) target = $region101
    $region100: #{simple_vae_forward.1} parent=1 // pred_region
      %s3224 = ssub.s32 32, 32
      %3225 = vsyncadd [#allocation4], %s3224
      %s3227 = sshll.u32 [#allocation7], 4
      %s3228 = int_to_ptr.vmem [resolvable:$true] %s3227
      %3230 = dma.vmem_to_hbm [thread:$0]  %s3228, 32, %s22, [#allocation4]
    $region101: #{simple_vae_forward.1} parent=1 // pred_fallthru
      _
    // Predicated region
    $region102: #{simple_vae_forward.1} parent=1 // pred_check
      _
    $region103: #{simple_vae_forward.1} parent=1 // pred_check_branch
      %3232 = sbr.rel (0) target = $region105
    $region104: #{simple_vae_forward.1} parent=1 // pred_region
      %s3234 = ssub.s32 32, 32
      %3235 = vsyncadd [#allocation9], %s3234
      %s3237 = sshll.u32 [#allocation8], 4
      %s3238 = int_to_ptr.vmem [resolvable:$true] %s3237
      %3240 = dma.vmem_to_hbm [thread:$0]  %s3238, 32, %s23, [#allocation9]
    $region105: #{simple_vae_forward.1} parent=1 // pred_fallthru
      _
    // Predicated region
    $region106: #{simple_vae_forward.1} parent=1 // pred_check
      _
    $region107: #{simple_vae_forward.1} parent=1 // pred_check_branch
      %3242 = sbr.rel (0) target = $region109
    $region108: #{simple_vae_forward.1} parent=1 // pred_region
      _
    $region109: #{simple_vae_forward.1} parent=1 // pred_fallthru
      _
    // Predicated region
    $region110: #{simple_vae_forward.1} parent=1 // pred_check
      _
    $region111: #{simple_vae_forward.1} parent=1 // pred_check_branch
      %3244 = sbr.rel (0) target = $region113
    $region112: #{simple_vae_forward.1} parent=1 // pred_region
      %3245 = dma.done [#allocation4], 32
    $region113: #{simple_vae_forward.1} parent=1 // pred_fallthru
      _
    // Predicated region
    $region114: #{simple_vae_forward.1} parent=1 // pred_check
      _
    $region115: #{simple_vae_forward.1} parent=1 // pred_check_branch
      %3247 = sbr.rel (0) target = $region117
    $region116: #{simple_vae_forward.1} parent=1 // pred_region
      %3248 = dma.done [#allocation9], 32
    $region117: #{simple_vae_forward.1} parent=1 // pred_fallthru
      _
    // Predicated region
    $region118: #{simple_vae_forward.1} parent=1 // pred_check
      _
    $region119: #{simple_vae_forward.1} parent=1 // pred_check_branch
      %3250 = sbr.rel (0) target = $region121
    $region120: #{simple_vae_forward.1} parent=1 // pred_region
      _
    $region121: #{simple_vae_forward.1} parent=1 // pred_fallthru
      _
    %3251 = vsyncpa [#allocation3], 1
    %3252 = vsyncpa [#allocation6], 1
    %3253 = vsyncpa [#allocation4], 1
    %3254 = vsyncpa [#allocation9], 1

</llo_original>
